<compile_context>
chip_gen: v5e
topology: v5e:2x2
jax: 0.10.0
libtpu: 0.0.40
codegen_flags: <defaults>
</compile_context>

<pallas_src>
import functools
import math

import jax
import jax.numpy as jnp
from jax import lax
from jax.experimental import pallas as pl
from jax.experimental.pallas import tpu as pltpu

N_HEADS = 3          # fixed by the module (nhead=3)
LN_EPS = 1e-5        # PyTorch LayerNorm default
LANE = 128
TB_TARGET = 32       # batch elements per grid step (TB*L >= 256 rows at L=8)


def _round_up(x, m):
    return ((x + m - 1) // m) * m


# ----------------------------------------------------------------------------
# Pallas kernel: TB batch elements per grid step, everything fused.
# ----------------------------------------------------------------------------
def classifier_kernel(mels_ref,
                      pre_w, pre_b,
                      in_w, in_b, out_w, out_b,
                      ln1_g, ln1_b,
                      ff1_w, ff1_b, ff2_w, ff2_b,
                      ln2_g, ln2_b,
                      p1_w, p1_b, p2_w, p2_b,
                      out_ref, *, scale):
    f32 = jnp.float32
    TB, L, _ = mels_ref.shape
    d = out_b.shape[-1]
    dh_pad = in_w.shape[-1] // (3 * N_HEADS)      # 128-lane head slot
    hp = N_HEADS * dh_pad                         # width of each of Q/K/V blocks

    def mm(a, w_ref):
        # bf16 x bf16 MXU matmul with f32 accumulation.
        return jnp.dot(a.astype(w_ref.dtype), w_ref[...],
                       preferred_element_type=f32)

    def layernorm(a, g_ref, b_ref):
        mu = jnp.mean(a, axis=-1, keepdims=True)
        var = jnp.mean((a - mu) ** 2, axis=-1, keepdims=True)
        return (a - mu) * lax.rsqrt(var + LN_EPS) * g_ref[...] + b_ref[...]

    # token-major activations: (TB*L, .)
    x = mels_ref[...].reshape(TB * L, mels_ref.shape[-1])      # (TB*L, 128)

    # prenet: Linear(40 -> d)  (feature dim zero-padded to 128 lanes)
    h = mm(x, pre_w) + pre_b[...]                              # (TB*L, d) f32

    # --- self attention (MultiheadAttention, 3 heads, 128-lane head slots) ---
    qkv = mm(h, in_w) + in_b[...]                              # (TB*L, 3*hp)

    head_outs = []
    for hd in range(N_HEADS):                                  # static 3-way unroll
        lo = hd * dh_pad                                       # lane-aligned offsets
        qh = qkv[:, 0 * hp + lo:0 * hp + lo + dh_pad].reshape(TB, L, dh_pad)
        kh = qkv[:, 1 * hp + lo:1 * hp + lo + dh_pad].reshape(TB, L, dh_pad)
        vh = qkv[:, 2 * hp + lo:2 * hp + lo + dh_pad].reshape(TB, L, dh_pad)
        s = jnp.einsum('bqd,bkd->bqk',
                       qh.astype(jnp.bfloat16), kh.astype(jnp.bfloat16),
                       preferred_element_type=f32) * scale     # (TB, L, L)
        s = s - jnp.max(s, axis=-1, keepdims=True)
        p = jnp.exp(s)
        p = p * pl.reciprocal(jnp.sum(p, axis=-1, keepdims=True), approx=True)
        oh = jnp.einsum('bqk,bkd->bqd',
                        p.astype(jnp.bfloat16), vh.astype(jnp.bfloat16),
                        preferred_element_type=f32)            # (TB, L, dh_pad)
        head_outs.append(oh.reshape(TB * L, dh_pad))
    attn = jnp.concatenate(head_outs, axis=-1)                 # (TB*L, hp), 128-aligned
    attn = mm(attn, out_w) + out_b[...]                        # out_proj -> (TB*L, d)

    # post-norm residual block 1  (dropout is identity in eval)
    h1 = layernorm(h + attn, ln1_g, ln1_b)

    # feed-forward: Linear(d -> 256) -> relu -> Linear(256 -> d)
    ff = mm(jnp.maximum(mm(h1, ff1_w) + ff1_b[...], 0.0), ff2_w) + ff2_b[...]
    h2 = layernorm(h1 + ff, ln2_g, ln2_b)

    # mean pooling over length
    stats = jnp.mean(h2.reshape(TB, L, d), axis=1)             # (TB, d)

    # prediction head: Linear -> ReLU -> Linear  (n_spks zero-padded to 640 lanes)
    p1 = jnp.maximum(mm(stats, p1_w) + p1_b[...], 0.0)
    out_ref[...] = mm(p1, p2_w) + p2_b[...]                    # (TB, n_pad)


# ----------------------------------------------------------------------------
# Host-side weight packing (lane alignment + bf16) and wrapper
# ----------------------------------------------------------------------------
WEIGHT_NAMES = ('pre_w', 'pre_b', 'in_w', 'in_b', 'out_w', 'out_b',
                'ln1_g', 'ln1_b', 'ff1_w', 'ff1_b', 'ff2_w', 'ff2_b',
                'ln2_g', 'ln2_b', 'p1_w', 'p1_b', 'p2_w', 'p2_b')


def pack_params(params, compute_dtype=jnp.bfloat16):
    """Repack weights once on the host: zero-pad each attention head to a
    128-lane slot, pad mel-feature / n_spks dims to multiples of 128, and cast
    matmul weights to bf16 (accumulation stays f32 inside the kernel)."""
    d = params['pre_w'].shape[1]
    dh = d // N_HEADS
    dh_pad = _round_up(dh, LANE)
    f_in = params['pre_w'].shape[0]
    f_pad = _round_up(f_in, LANE)
    n_spks = params['p2_w'].shape[1]
    n_pad = _round_up(n_spks, LANE)

    def head_pack_cols(w):
        # (r, d) -> (r, N_HEADS*dh_pad): group columns by head, pad each slot.
        r = w.shape[0]
        w3 = w.reshape(r, N_HEADS, dh)
        return jnp.pad(w3, ((0, 0), (0, 0), (0, dh_pad - dh))).reshape(
            r, N_HEADS * dh_pad)

    in_w, in_b = params['in_w'], params['in_b']
    in_wp = jnp.concatenate(
        [head_pack_cols(in_w[:, i * d:(i + 1) * d]) for i in range(3)], axis=1)
    in_bp = jnp.concatenate(
        [head_pack_cols(in_b[:, i * d:(i + 1) * d]) for i in range(3)], axis=1)

    out_wp = jnp.pad(params['out_w'].reshape(N_HEADS, dh, d),
                     ((0, 0), (0, dh_pad - dh), (0, 0))
                     ).reshape(N_HEADS * dh_pad, d)

    cd = compute_dtype
    packed = dict(params)
    packed['pre_w'] = jnp.pad(params['pre_w'],
                              ((0, f_pad - f_in), (0, 0))).astype(cd)
    packed['in_w'] = in_wp.astype(cd)
    packed['in_b'] = in_bp
    packed['out_w'] = out_wp.astype(cd)
    packed['ff1_w'] = params['ff1_w'].astype(cd)
    packed['ff2_w'] = params['ff2_w'].astype(cd)
    packed['p1_w'] = params['p1_w'].astype(cd)
    packed['p2_w'] = jnp.pad(params['p2_w'],
                             ((0, 0), (0, n_pad - n_spks))).astype(cd)
    packed['p2_b'] = jnp.pad(params['p2_b'], ((0, 0), (0, n_pad - n_spks)))
    return packed


@functools.partial(jax.jit, static_argnames=('n_spks',))
def classifier_forward(mels, packed, n_spks):
    B, L, F = mels.shape
    d = packed['out_b'].shape[1]
    dh = d // N_HEADS                       # true head dim (80) for the softmax scale
    f_pad = packed['pre_w'].shape[0]
    n_pad = packed['p2_w'].shape[1]

    TB = min(TB_TARGET, B)                  # batch elements per grid step
    B_pad = _round_up(B, TB)
    mels_p = jnp.pad(mels.astype(jnp.float32),
                     ((0, B_pad - B), (0, 0), (0, f_pad - F)))

    weights = [packed[n] for n in WEIGHT_NAMES]
    in_specs = [pl.BlockSpec((TB, L, f_pad), lambda b: (b, 0, 0))]
    for _ in weights:                       # all packed weights are 2-D, grid-invariant
        in_specs.append(pl.BlockSpec(_.shape, lambda b: (0, 0)))

    kernel = functools.partial(classifier_kernel, scale=1.0 / math.sqrt(dh))
    out = pl.pallas_call(
        kernel,
        out_shape=jax.ShapeDtypeStruct((B_pad, n_pad), jnp.float32),
        grid=(B_pad // TB,),
        in_specs=in_specs,
        out_specs=pl.BlockSpec((TB, n_pad), lambda b: (b, 0)),
        compiler_params=pltpu.CompilerParams(
            dimension_semantics=("parallel",),
            vmem_limit_bytes=32 * 1024 * 1024),
    )(mels_p, *weights)
    return out[:B, :n_spks]


# ----------------------------------------------------------------------------
# Deterministic parameter init (shapes follow the nn.Module __init__)
# ----------------------------------------------------------------------------
def init_params(key, d_model=240, n_spks=600, d_ff=256):
    ks = jax.random.split(key, 14)

    def w(k, shape, fan_in):
        return jax.random.normal(k, shape, jnp.float32) / jnp.sqrt(jnp.float32(fan_in))

    return {
        # prenet: Linear(40, d_model)
        'pre_w': w(ks[0], (40, d_model), 40),
        'pre_b': w(ks[1], (1, d_model), d_model),
        # MultiheadAttention in_proj (pre-transposed: x @ W) and out_proj
        'in_w': w(ks[2], (d_model, 3 * d_model), d_model),
        'in_b': w(ks[3], (1, 3 * d_model), d_model),
        'out_w': w(ks[4], (d_model, d_model), d_model),
        'out_b': w(ks[5], (1, d_model), d_model),
        'ln1_g': jnp.ones((1, d_model), jnp.float32),
        'ln1_b': jnp.zeros((1, d_model), jnp.float32),
        # feed-forward
        'ff1_w': w(ks[6], (d_model, d_ff), d_model),
        'ff1_b': w(ks[7], (1, d_ff), d_model),
        'ff2_w': w(ks[8], (d_ff, d_model), d_ff),
        'ff2_b': w(ks[9], (1, d_model), d_ff),
        'ln2_g': jnp.ones((1, d_model), jnp.float32),
        'ln2_b': jnp.zeros((1, d_model), jnp.float32),
        # pred head
        'p1_w': w(ks[10], (d_model, d_model), d_model),
        'p1_b': w(ks[11], (1, d_model), d_model),
        'p2_w': w(ks[12], (d_model, n_spks), d_model),
        'p2_b': w(ks[13], (1, n_spks), d_model),
    }


# ----------------------------------------------------------------------------
# Pure-JAX reference (mirrors PyTorch eval-mode semantics) for a sanity check
# ----------------------------------------------------------------------------
def reference_forward(mels, params):
    hp = functools.partial(jnp.matmul, precision=lax.Precision.HIGHEST)
    h = hp(mels, params['pre_w']) + params['pre_b'][0]
    d = h.shape[-1]
    dh = d // N_HEADS
    qkv = hp(h, params['in_w']) + params['in_b'][0]
    q, k, v = qkv[..., :d], qkv[..., d:2 * d], qkv[..., 2 * d:]

    def split(x):
        B, L, _ = x.shape
        return x.reshape(B, L, N_HEADS, dh).transpose(0, 2, 1, 3)

    qh, kh, vh = split(q), split(k), split(v)
    s = jnp.einsum('bhqd,bhkd->bhqk', qh, kh,
                   precision=lax.Precision.HIGHEST) / jnp.sqrt(jnp.float32(dh))
    p = jax.nn.softmax(s, axis=-1)
    o = jnp.einsum('bhqk,bhkd->bhqd', p, vh, precision=lax.Precision.HIGHEST)
    B, _, L, _ = o.shape
    o = o.transpose(0, 2, 1, 3).reshape(B, L, d)
    attn = hp(o, params['out_w']) + params['out_b'][0]

    def ln(a, g, b):
        mu = a.mean(-1, keepdims=True)
        var = ((a - mu) ** 2).mean(-1, keepdims=True)
        return (a - mu) / jnp.sqrt(var + LN_EPS) * g[0] + b[0]

    h1 = ln(h + attn, params['ln1_g'], params['ln1_b'])
    ff = hp(jnp.maximum(hp(h1, params['ff1_w']) + params['ff1_b'][0], 0.0),
            params['ff2_w']) + params['ff2_b'][0]
    h2 = ln(h1 + ff, params['ln2_g'], params['ln2_b'])
    stats = h2.mean(axis=1)
    p1 = jnp.maximum(hp(stats, params['p1_w']) + params['p1_b'][0], 0.0)
    return hp(p1, params['p2_w']) + params['p2_b'][0]


if __name__ == "__main__":
    key = jax.random.PRNGKey(0)
    pkey, xkey = jax.random.split(key)

    B, L = 2, 8
    D_MODEL, N_SPKS = 240, 600          # module defaults

    params = init_params(pkey, D_MODEL, N_SPKS)
    mels = jax.random.normal(xkey, (B, L, 40), jnp.float32)

    packed = pack_params(params)        # host-side, once
    out = classifier_forward(mels, packed, n_spks=N_SPKS)
    out = jax.block_until_ready(out)

    assert out.shape == (B, N_SPKS), out.shape
    ref = reference_forward(mels, params)
    max_err = float(jnp.max(jnp.abs(out - ref)))
    # bf16 matmul weights/activations (f32 accumulation) -> looser tolerance.
    if max_err > 1.5e-1:
        raise AssertionError(f"kernel/reference mismatch: max abs err = {max_err}")

    print("KERNEL_OK")
</pallas_src>

<mosaic_0001>
module attributes {stable_mosaic.version = 11 : i64} {
  func.func @classifier_kernel(%arg0: i32, %arg1: memref<2x8x128xf32, #tpu.memory_space<vmem>>, %arg2: memref<128x240xbf16, #tpu.memory_space<vmem>>, %arg3: memref<1x240xf32, #tpu.memory_space<vmem>>, %arg4: memref<240x1152xbf16, #tpu.memory_space<vmem>>, %arg5: memref<1x1152xf32, #tpu.memory_space<vmem>>, %arg6: memref<384x240xbf16, #tpu.memory_space<vmem>>, %arg7: memref<1x240xf32, #tpu.memory_space<vmem>>, %arg8: memref<1x240xf32, #tpu.memory_space<vmem>>, %arg9: memref<1x240xf32, #tpu.memory_space<vmem>>, %arg10: memref<240x256xbf16, #tpu.memory_space<vmem>>, %arg11: memref<1x256xf32, #tpu.memory_space<vmem>>, %arg12: memref<256x240xbf16, #tpu.memory_space<vmem>>, %arg13: memref<1x240xf32, #tpu.memory_space<vmem>>, %arg14: memref<1x240xf32, #tpu.memory_space<vmem>>, %arg15: memref<1x240xf32, #tpu.memory_space<vmem>>, %arg16: memref<240x240xbf16, #tpu.memory_space<vmem>>, %arg17: memref<1x240xf32, #tpu.memory_space<vmem>>, %arg18: memref<240x640xbf16, #tpu.memory_space<vmem>>, %arg19: memref<1x640xf32, #tpu.memory_space<vmem>>, %arg20: memref<2x640xf32, #tpu.memory_space<vmem>>) attributes {dimension_semantics = [#tpu.dimension_semantics<parallel>], iteration_bounds = array<i64: 1>, scalar_prefetch = 0 : i64, scratch_operands = 0 : i64, tpu.core_type = #tpu.core_type<tc>, window_params = [{transform_indices = @transform_0, window_bounds = array<i64: 2, 8, 128>}, {pipeline_mode = #tpu.pipeline_mode<synchronous>, transform_indices = @transform_1, window_bounds = array<i64: 128, 240>}, {pipeline_mode = #tpu.pipeline_mode<synchronous>, transform_indices = @transform_2, window_bounds = array<i64: 1, 240>}, {pipeline_mode = #tpu.pipeline_mode<synchronous>, transform_indices = @transform_3, window_bounds = array<i64: 240, 1152>}, {pipeline_mode = #tpu.pipeline_mode<synchronous>, transform_indices = @transform_4, window_bounds = array<i64: 1, 1152>}, {pipeline_mode = #tpu.pipeline_mode<synchronous>, transform_indices = @transform_5, window_bounds = array<i64: 384, 240>}, {pipeline_mode = #tpu.pipeline_mode<synchronous>, transform_indices = @transform_6, window_bounds = array<i64: 1, 240>}, {pipeline_mode = #tpu.pipeline_mode<synchronous>, transform_indices = @transform_7, window_bounds = array<i64: 1, 240>}, {pipeline_mode = #tpu.pipeline_mode<synchronous>, transform_indices = @transform_8, window_bounds = array<i64: 1, 240>}, {pipeline_mode = #tpu.pipeline_mode<synchronous>, transform_indices = @transform_9, window_bounds = array<i64: 240, 256>}, {pipeline_mode = #tpu.pipeline_mode<synchronous>, transform_indices = @transform_10, window_bounds = array<i64: 1, 256>}, {pipeline_mode = #tpu.pipeline_mode<synchronous>, transform_indices = @transform_11, window_bounds = array<i64: 256, 240>}, {pipeline_mode = #tpu.pipeline_mode<synchronous>, transform_indices = @transform_12, window_bounds = array<i64: 1, 240>}, {pipeline_mode = #tpu.pipeline_mode<synchronous>, transform_indices = @transform_13, window_bounds = array<i64: 1, 240>}, {pipeline_mode = #tpu.pipeline_mode<synchronous>, transform_indices = @transform_14, window_bounds = array<i64: 1, 240>}, {pipeline_mode = #tpu.pipeline_mode<synchronous>, transform_indices = @transform_15, window_bounds = array<i64: 240, 240>}, {pipeline_mode = #tpu.pipeline_mode<synchronous>, transform_indices = @transform_16, window_bounds = array<i64: 1, 240>}, {pipeline_mode = #tpu.pipeline_mode<synchronous>, transform_indices = @transform_17, window_bounds = array<i64: 240, 640>}, {pipeline_mode = #tpu.pipeline_mode<synchronous>, transform_indices = @transform_18, window_bounds = array<i64: 1, 640>}, {transform_indices = @transform_19, window_bounds = array<i64: 2, 640>}]} {
    %c0 = arith.constant 0 : index
    %c0_0 = arith.constant 0 : index
    %c0_1 = arith.constant 0 : index
    %0 = vector.load %arg1[%c0, %c0_0, %c0_1] : memref<2x8x128xf32, #tpu.memory_space<vmem>>, vector<2x8x128xf32>
    %1 = vector.shape_cast %0 : vector<2x8x128xf32> to vector<16x128xf32>
    %2 = arith.truncf %1 : vector<16x128xf32> to vector<16x128xbf16>
    %c0_2 = arith.constant 0 : index
    %c0_3 = arith.constant 0 : index
    %3 = vector.load %arg2[%c0_2, %c0_3] : memref<128x240xbf16, #tpu.memory_space<vmem>>, vector<128x240xbf16>
    %cst = arith.constant dense<0.000000e+00> : vector<16x240xf32>
    %4 = tpu.matmul %2, %3, %cst {dimension_numbers = #tpu.dot_dimension_numbers<[1], [0], [0], [1], [0, 0, 1, 1], [], []>} : vector<16x128xbf16>, vector<128x240xbf16>, vector<16x240xf32> -> vector<16x240xf32>
    %c0_4 = arith.constant 0 : index
    %c0_5 = arith.constant 0 : index
    %5 = vector.load %arg3[%c0_4, %c0_5] : memref<1x240xf32, #tpu.memory_space<vmem>>, vector<1x240xf32>
    %6 = vector.broadcast %5 : vector<1x240xf32> to vector<16x240xf32>
    %7 = arith.addf %4, %6 : vector<16x240xf32>
    %8 = arith.truncf %7 : vector<16x240xf32> to vector<16x240xbf16>
    %c0_6 = arith.constant 0 : index
    %c0_7 = arith.constant 0 : index
    %9 = vector.load %arg4[%c0_6, %c0_7] : memref<240x1152xbf16, #tpu.memory_space<vmem>>, vector<240x1152xbf16>
    %cst_8 = arith.constant dense<0.000000e+00> : vector<16x1152xf32>
    %10 = tpu.matmul %8, %9, %cst_8 {dimension_numbers = #tpu.dot_dimension_numbers<[1], [0], [0], [1], [0, 0, 1, 1], [], []>} : vector<16x240xbf16>, vector<240x1152xbf16>, vector<16x1152xf32> -> vector<16x1152xf32>
    %c0_9 = arith.constant 0 : index
    %c0_10 = arith.constant 0 : index
    %11 = vector.load %arg5[%c0_9, %c0_10] : memref<1x1152xf32, #tpu.memory_space<vmem>>, vector<1x1152xf32>
    %12 = vector.broadcast %11 : vector<1x1152xf32> to vector<16x1152xf32>
    %13 = arith.addf %10, %12 : vector<16x1152xf32>
    %14 = vector.extract_strided_slice %13 {offsets = [0, 0], sizes = [16, 128], strides = [1, 1]} : vector<16x1152xf32> to vector<16x128xf32>
    %15 = vector.shape_cast %14 : vector<16x128xf32> to vector<2x8x128xf32>
    %16 = vector.extract_strided_slice %13 {offsets = [0, 384], sizes = [16, 128], strides = [1, 1]} : vector<16x1152xf32> to vector<16x128xf32>
    %17 = vector.shape_cast %16 : vector<16x128xf32> to vector<2x8x128xf32>
    %18 = vector.extract_strided_slice %13 {offsets = [0, 768], sizes = [16, 128], strides = [1, 1]} : vector<16x1152xf32> to vector<16x128xf32>
    %19 = vector.shape_cast %18 : vector<16x128xf32> to vector<2x8x128xf32>
    %20 = arith.truncf %15 : vector<2x8x128xf32> to vector<2x8x128xbf16>
    %21 = arith.truncf %17 : vector<2x8x128xf32> to vector<2x8x128xbf16>
    "tpu.trace_start"() <{level = 10 : i32, message = "bqd,bkd->bqk"}> : () -> ()
    %cst_11 = arith.constant dense<0.000000e+00> : vector<2x8x8xf32>
    %22 = tpu.matmul %20, %21, %cst_11 {dimension_numbers = #tpu.dot_dimension_numbers<[2], [2], [1], [1], [0, 0, 0, 1, 1, 1], [0], [0]>} : vector<2x8x128xbf16>, vector<2x8x128xbf16>, vector<2x8x8xf32> -> vector<2x8x8xf32>
    "tpu.trace_stop"() : () -> ()
    %cst_12 = arith.constant 0.111803398 : f32
    %23 = vector.broadcast %cst_12 : f32 to vector<2x8x8xf32>
    %24 = arith.mulf %22, %23 : vector<2x8x8xf32>
    %cst_13 = arith.constant dense<0xFF800000> : vector<2x8xf32>
    %25 = vector.multi_reduction <maximumf>, %24, %cst_13 [2] : vector<2x8x8xf32> to vector<2x8xf32>
    %26 = vector.shape_cast %25 : vector<2x8xf32> to vector<2x8x1xf32>
    %27 = vector.broadcast %26 : vector<2x8x1xf32> to vector<2x8x8xf32>
    %28 = arith.subf %24, %27 : vector<2x8x8xf32>
    %29 = math.exp %28 : vector<2x8x8xf32>
    %cst_14 = arith.constant dense<0.000000e+00> : vector<2x8xf32>
    %30 = vector.multi_reduction <add>, %29, %cst_14 [2] : vector<2x8x8xf32> to vector<2x8xf32>
    %31 = vector.shape_cast %30 : vector<2x8xf32> to vector<2x8x1xf32>
    %32 = tpu.reciprocal %31 {approx = true} : vector<2x8x1xf32> -> vector<2x8x1xf32>
    %33 = vector.broadcast %32 : vector<2x8x1xf32> to vector<2x8x8xf32>
    %34 = arith.mulf %29, %33 : vector<2x8x8xf32>
    %35 = arith.truncf %34 : vector<2x8x8xf32> to vector<2x8x8xbf16>
    %36 = arith.truncf %19 : vector<2x8x128xf32> to vector<2x8x128xbf16>
    "tpu.trace_start"() <{level = 10 : i32, message = "bqk,bkd->bqd"}> : () -> ()
    %cst_15 = arith.constant dense<0.000000e+00> : vector<2x8x128xf32>
    %37 = tpu.matmul %35, %36, %cst_15 {dimension_numbers = #tpu.dot_dimension_numbers<[2], [1], [1], [2], [0, 0, 0, 1, 1, 2], [0], [0]>} : vector<2x8x8xbf16>, vector<2x8x128xbf16>, vector<2x8x128xf32> -> vector<2x8x128xf32>
    "tpu.trace_stop"() : () -> ()
    %38 = vector.shape_cast %37 : vector<2x8x128xf32> to vector<16x128xf32>
    %39 = vector.extract_strided_slice %13 {offsets = [0, 128], sizes = [16, 128], strides = [1, 1]} : vector<16x1152xf32> to vector<16x128xf32>
    %40 = vector.shape_cast %39 : vector<16x128xf32> to vector<2x8x128xf32>
    %41 = vector.extract_strided_slice %13 {offsets = [0, 512], sizes = [16, 128], strides = [1, 1]} : vector<16x1152xf32> to vector<16x128xf32>
    %42 = vector.shape_cast %41 : vector<16x128xf32> to vector<2x8x128xf32>
    %43 = vector.extract_strided_slice %13 {offsets = [0, 896], sizes = [16, 128], strides = [1, 1]} : vector<16x1152xf32> to vector<16x128xf32>
    %44 = vector.shape_cast %43 : vector<16x128xf32> to vector<2x8x128xf32>
    %45 = arith.truncf %40 : vector<2x8x128xf32> to vector<2x8x128xbf16>
    %46 = arith.truncf %42 : vector<2x8x128xf32> to vector<2x8x128xbf16>
    "tpu.trace_start"() <{level = 10 : i32, message = "bqd,bkd->bqk"}> : () -> ()
    %cst_16 = arith.constant dense<0.000000e+00> : vector<2x8x8xf32>
    %47 = tpu.matmul %45, %46, %cst_16 {dimension_numbers = #tpu.dot_dimension_numbers<[2], [2], [1], [1], [0, 0, 0, 1, 1, 1], [0], [0]>} : vector<2x8x128xbf16>, vector<2x8x128xbf16>, vector<2x8x8xf32> -> vector<2x8x8xf32>
    "tpu.trace_stop"() : () -> ()
    %cst_17 = arith.constant 0.111803398 : f32
    %48 = vector.broadcast %cst_17 : f32 to vector<2x8x8xf32>
    %49 = arith.mulf %47, %48 : vector<2x8x8xf32>
    %cst_18 = arith.constant dense<0xFF800000> : vector<2x8xf32>
    %50 = vector.multi_reduction <maximumf>, %49, %cst_18 [2] : vector<2x8x8xf32> to vector<2x8xf32>
    %51 = vector.shape_cast %50 : vector<2x8xf32> to vector<2x8x1xf32>
    %52 = vector.broadcast %51 : vector<2x8x1xf32> to vector<2x8x8xf32>
    %53 = arith.subf %49, %52 : vector<2x8x8xf32>
    %54 = math.exp %53 : vector<2x8x8xf32>
    %cst_19 = arith.constant dense<0.000000e+00> : vector<2x8xf32>
    %55 = vector.multi_reduction <add>, %54, %cst_19 [2] : vector<2x8x8xf32> to vector<2x8xf32>
    %56 = vector.shape_cast %55 : vector<2x8xf32> to vector<2x8x1xf32>
    %57 = tpu.reciprocal %56 {approx = true} : vector<2x8x1xf32> -> vector<2x8x1xf32>
    %58 = vector.broadcast %57 : vector<2x8x1xf32> to vector<2x8x8xf32>
    %59 = arith.mulf %54, %58 : vector<2x8x8xf32>
    %60 = arith.truncf %59 : vector<2x8x8xf32> to vector<2x8x8xbf16>
    %61 = arith.truncf %44 : vector<2x8x128xf32> to vector<2x8x128xbf16>
    "tpu.trace_start"() <{level = 10 : i32, message = "bqk,bkd->bqd"}> : () -> ()
    %cst_20 = arith.constant dense<0.000000e+00> : vector<2x8x128xf32>
    %62 = tpu.matmul %60, %61, %cst_20 {dimension_numbers = #tpu.dot_dimension_numbers<[2], [1], [1], [2], [0, 0, 0, 1, 1, 2], [0], [0]>} : vector<2x8x8xbf16>, vector<2x8x128xbf16>, vector<2x8x128xf32> -> vector<2x8x128xf32>
    "tpu.trace_stop"() : () -> ()
    %63 = vector.shape_cast %62 : vector<2x8x128xf32> to vector<16x128xf32>
    %64 = vector.extract_strided_slice %13 {offsets = [0, 256], sizes = [16, 128], strides = [1, 1]} : vector<16x1152xf32> to vector<16x128xf32>
    %65 = vector.shape_cast %64 : vector<16x128xf32> to vector<2x8x128xf32>
    %66 = vector.extract_strided_slice %13 {offsets = [0, 640], sizes = [16, 128], strides = [1, 1]} : vector<16x1152xf32> to vector<16x128xf32>
    %67 = vector.shape_cast %66 : vector<16x128xf32> to vector<2x8x128xf32>
    %68 = vector.extract_strided_slice %13 {offsets = [0, 1024], sizes = [16, 128], strides = [1, 1]} : vector<16x1152xf32> to vector<16x128xf32>
    %69 = vector.shape_cast %68 : vector<16x128xf32> to vector<2x8x128xf32>
    %70 = arith.truncf %65 : vector<2x8x128xf32> to vector<2x8x128xbf16>
    %71 = arith.truncf %67 : vector<2x8x128xf32> to vector<2x8x128xbf16>
    "tpu.trace_start"() <{level = 10 : i32, message = "bqd,bkd->bqk"}> : () -> ()
    %cst_21 = arith.constant dense<0.000000e+00> : vector<2x8x8xf32>
    %72 = tpu.matmul %70, %71, %cst_21 {dimension_numbers = #tpu.dot_dimension_numbers<[2], [2], [1], [1], [0, 0, 0, 1, 1, 1], [0], [0]>} : vector<2x8x128xbf16>, vector<2x8x128xbf16>, vector<2x8x8xf32> -> vector<2x8x8xf32>
    "tpu.trace_stop"() : () -> ()
    %cst_22 = arith.constant 0.111803398 : f32
    %73 = vector.broadcast %cst_22 : f32 to vector<2x8x8xf32>
    %74 = arith.mulf %72, %73 : vector<2x8x8xf32>
    %cst_23 = arith.constant dense<0xFF800000> : vector<2x8xf32>
    %75 = vector.multi_reduction <maximumf>, %74, %cst_23 [2] : vector<2x8x8xf32> to vector<2x8xf32>
    %76 = vector.shape_cast %75 : vector<2x8xf32> to vector<2x8x1xf32>
    %77 = vector.broadcast %76 : vector<2x8x1xf32> to vector<2x8x8xf32>
    %78 = arith.subf %74, %77 : vector<2x8x8xf32>
    %79 = math.exp %78 : vector<2x8x8xf32>
    %cst_24 = arith.constant dense<0.000000e+00> : vector<2x8xf32>
    %80 = vector.multi_reduction <add>, %79, %cst_24 [2] : vector<2x8x8xf32> to vector<2x8xf32>
    %81 = vector.shape_cast %80 : vector<2x8xf32> to vector<2x8x1xf32>
    %82 = tpu.reciprocal %81 {approx = true} : vector<2x8x1xf32> -> vector<2x8x1xf32>
    %83 = vector.broadcast %82 : vector<2x8x1xf32> to vector<2x8x8xf32>
    %84 = arith.mulf %79, %83 : vector<2x8x8xf32>
    %85 = arith.truncf %84 : vector<2x8x8xf32> to vector<2x8x8xbf16>
    %86 = arith.truncf %69 : vector<2x8x128xf32> to vector<2x8x128xbf16>
    "tpu.trace_start"() <{level = 10 : i32, message = "bqk,bkd->bqd"}> : () -> ()
    %cst_25 = arith.constant dense<0.000000e+00> : vector<2x8x128xf32>
    %87 = tpu.matmul %85, %86, %cst_25 {dimension_numbers = #tpu.dot_dimension_numbers<[2], [1], [1], [2], [0, 0, 0, 1, 1, 2], [0], [0]>} : vector<2x8x8xbf16>, vector<2x8x128xbf16>, vector<2x8x128xf32> -> vector<2x8x128xf32>
    "tpu.trace_stop"() : () -> ()
    %88 = vector.shape_cast %87 : vector<2x8x128xf32> to vector<16x128xf32>
    %89 = tpu.concatenate %38, %63, %88 in 1 : vector<16x128xf32>, vector<16x128xf32>, vector<16x128xf32> -> vector<16x384xf32>
    %90 = arith.truncf %89 : vector<16x384xf32> to vector<16x384xbf16>
    %c0_26 = arith.constant 0 : index
    %c0_27 = arith.constant 0 : index
    %91 = vector.load %arg6[%c0_26, %c0_27] : memref<384x240xbf16, #tpu.memory_space<vmem>>, vector<384x240xbf16>
    %cst_28 = arith.constant dense<0.000000e+00> : vector<16x240xf32>
    %92 = tpu.matmul %90, %91, %cst_28 {dimension_numbers = #tpu.dot_dimension_numbers<[1], [0], [0], [1], [0, 0, 1, 1], [], []>} : vector<16x384xbf16>, vector<384x240xbf16>, vector<16x240xf32> -> vector<16x240xf32>
    %c0_29 = arith.constant 0 : index
    %c0_30 = arith.constant 0 : index
    %93 = vector.load %arg7[%c0_29, %c0_30] : memref<1x240xf32, #tpu.memory_space<vmem>>, vector<1x240xf32>
    %94 = vector.broadcast %93 : vector<1x240xf32> to vector<16x240xf32>
    %95 = arith.addf %92, %94 : vector<16x240xf32>
    %96 = arith.addf %7, %95 : vector<16x240xf32>
    %cst_31 = arith.constant dense<0.000000e+00> : vector<16xf32>
    %97 = vector.multi_reduction <add>, %96, %cst_31 [1] : vector<16x240xf32> to vector<16xf32>
    %98 = vector.shape_cast %97 : vector<16xf32> to vector<16x1xf32>
    %cst_32 = arith.constant 2.400000e+02 : f32
    %99 = vector.broadcast %cst_32 : f32 to vector<16x1xf32>
    %100 = arith.divf %98, %99 : vector<16x1xf32>
    %101 = vector.broadcast %100 : vector<16x1xf32> to vector<16x240xf32>
    %102 = arith.subf %96, %101 : vector<16x240xf32>
    %103 = arith.mulf %102, %102 : vector<16x240xf32>
    %cst_33 = arith.constant dense<0.000000e+00> : vector<16xf32>
    %104 = vector.multi_reduction <add>, %103, %cst_33 [1] : vector<16x240xf32> to vector<16xf32>
    %105 = vector.shape_cast %104 : vector<16xf32> to vector<16x1xf32>
    %cst_34 = arith.constant 2.400000e+02 : f32
    %106 = vector.broadcast %cst_34 : f32 to vector<16x1xf32>
    %107 = arith.divf %105, %106 : vector<16x1xf32>
    %108 = vector.broadcast %100 : vector<16x1xf32> to vector<16x240xf32>
    %109 = arith.subf %96, %108 : vector<16x240xf32>
    %cst_35 = arith.constant 9.99999974E-6 : f32
    %110 = vector.broadcast %cst_35 : f32 to vector<16x1xf32>
    %111 = arith.addf %107, %110 : vector<16x1xf32>
    %112 = math.rsqrt %111 : vector<16x1xf32>
    %113 = vector.broadcast %112 : vector<16x1xf32> to vector<16x240xf32>
    %114 = arith.mulf %109, %113 : vector<16x240xf32>
    %c0_36 = arith.constant 0 : index
    %c0_37 = arith.constant 0 : index
    %115 = vector.load %arg8[%c0_36, %c0_37] : memref<1x240xf32, #tpu.memory_space<vmem>>, vector<1x240xf32>
    %116 = vector.broadcast %115 : vector<1x240xf32> to vector<16x240xf32>
    %117 = arith.mulf %114, %116 : vector<16x240xf32>
    %c0_38 = arith.constant 0 : index
    %c0_39 = arith.constant 0 : index
    %118 = vector.load %arg9[%c0_38, %c0_39] : memref<1x240xf32, #tpu.memory_space<vmem>>, vector<1x240xf32>
    %119 = vector.broadcast %118 : vector<1x240xf32> to vector<16x240xf32>
    %120 = arith.addf %117, %119 : vector<16x240xf32>
    %121 = arith.truncf %120 : vector<16x240xf32> to vector<16x240xbf16>
    %c0_40 = arith.constant 0 : index
    %c0_41 = arith.constant 0 : index
    %122 = vector.load %arg10[%c0_40, %c0_41] : memref<240x256xbf16, #tpu.memory_space<vmem>>, vector<240x256xbf16>
    %cst_42 = arith.constant dense<0.000000e+00> : vector<16x256xf32>
    %123 = tpu.matmul %121, %122, %cst_42 {dimension_numbers = #tpu.dot_dimension_numbers<[1], [0], [0], [1], [0, 0, 1, 1], [], []>} : vector<16x240xbf16>, vector<240x256xbf16>, vector<16x256xf32> -> vector<16x256xf32>
    %c0_43 = arith.constant 0 : index
    %c0_44 = arith.constant 0 : index
    %124 = vector.load %arg11[%c0_43, %c0_44] : memref<1x256xf32, #tpu.memory_space<vmem>>, vector<1x256xf32>
    %125 = vector.broadcast %124 : vector<1x256xf32> to vector<16x256xf32>
    %126 = arith.addf %123, %125 : vector<16x256xf32>
    %cst_45 = arith.constant 0.000000e+00 : f32
    %127 = vector.broadcast %cst_45 : f32 to vector<16x256xf32>
    %128 = arith.maximumf %126, %127 : vector<16x256xf32>
    %129 = arith.truncf %128 : vector<16x256xf32> to vector<16x256xbf16>
    %c0_46 = arith.constant 0 : index
    %c0_47 = arith.constant 0 : index
    %130 = vector.load %arg12[%c0_46, %c0_47] : memref<256x240xbf16, #tpu.memory_space<vmem>>, vector<256x240xbf16>
    %cst_48 = arith.constant dense<0.000000e+00> : vector<16x240xf32>
    %131 = tpu.matmul %129, %130, %cst_48 {dimension_numbers = #tpu.dot_dimension_numbers<[1], [0], [0], [1], [0, 0, 1, 1], [], []>} : vector<16x256xbf16>, vector<256x240xbf16>, vector<16x240xf32> -> vector<16x240xf32>
    %c0_49 = arith.constant 0 : index
    %c0_50 = arith.constant 0 : index
    %132 = vector.load %arg13[%c0_49, %c0_50] : memref<1x240xf32, #tpu.memory_space<vmem>>, vector<1x240xf32>
    %133 = vector.broadcast %132 : vector<1x240xf32> to vector<16x240xf32>
    %134 = arith.addf %131, %133 : vector<16x240xf32>
    %135 = arith.addf %120, %134 : vector<16x240xf32>
    %cst_51 = arith.constant dense<0.000000e+00> : vector<16xf32>
    %136 = vector.multi_reduction <add>, %135, %cst_51 [1] : vector<16x240xf32> to vector<16xf32>
    %137 = vector.shape_cast %136 : vector<16xf32> to vector<16x1xf32>
    %cst_52 = arith.constant 2.400000e+02 : f32
    %138 = vector.broadcast %cst_52 : f32 to vector<16x1xf32>
    %139 = arith.divf %137, %138 : vector<16x1xf32>
    %140 = vector.broadcast %139 : vector<16x1xf32> to vector<16x240xf32>
    %141 = arith.subf %135, %140 : vector<16x240xf32>
    %142 = arith.mulf %141, %141 : vector<16x240xf32>
    %cst_53 = arith.constant dense<0.000000e+00> : vector<16xf32>
    %143 = vector.multi_reduction <add>, %142, %cst_53 [1] : vector<16x240xf32> to vector<16xf32>
    %144 = vector.shape_cast %143 : vector<16xf32> to vector<16x1xf32>
    %cst_54 = arith.constant 2.400000e+02 : f32
    %145 = vector.broadcast %cst_54 : f32 to vector<16x1xf32>
    %146 = arith.divf %144, %145 : vector<16x1xf32>
    %147 = vector.broadcast %139 : vector<16x1xf32> to vector<16x240xf32>
    %148 = arith.subf %135, %147 : vector<16x240xf32>
    %cst_55 = arith.constant 9.99999974E-6 : f32
    %149 = vector.broadcast %cst_55 : f32 to vector<16x1xf32>
    %150 = arith.addf %146, %149 : vector<16x1xf32>
    %151 = math.rsqrt %150 : vector<16x1xf32>
    %152 = vector.broadcast %151 : vector<16x1xf32> to vector<16x240xf32>
    %153 = arith.mulf %148, %152 : vector<16x240xf32>
    %c0_56 = arith.constant 0 : index
    %c0_57 = arith.constant 0 : index
    %154 = vector.load %arg14[%c0_56, %c0_57] : memref<1x240xf32, #tpu.memory_space<vmem>>, vector<1x240xf32>
    %155 = vector.broadcast %154 : vector<1x240xf32> to vector<16x240xf32>
    %156 = arith.mulf %153, %155 : vector<16x240xf32>
    %c0_58 = arith.constant 0 : index
    %c0_59 = arith.constant 0 : index
    %157 = vector.load %arg15[%c0_58, %c0_59] : memref<1x240xf32, #tpu.memory_space<vmem>>, vector<1x240xf32>
    %158 = vector.broadcast %157 : vector<1x240xf32> to vector<16x240xf32>
    %159 = arith.addf %156, %158 : vector<16x240xf32>
    %160 = vector.shape_cast %159 : vector<16x240xf32> to vector<2x8x240xf32>
    %cst_60 = arith.constant dense<0.000000e+00> : vector<2x240xf32>
    %161 = vector.multi_reduction <add>, %160, %cst_60 [1] : vector<2x8x240xf32> to vector<2x240xf32>
    %cst_61 = arith.constant 8.000000e+00 : f32
    %162 = vector.broadcast %cst_61 : f32 to vector<2x240xf32>
    %163 = arith.divf %161, %162 : vector<2x240xf32>
    %164 = arith.truncf %163 : vector<2x240xf32> to vector<2x240xbf16>
    %c0_62 = arith.constant 0 : index
    %c0_63 = arith.constant 0 : index
    %165 = vector.load %arg16[%c0_62, %c0_63] : memref<240x240xbf16, #tpu.memory_space<vmem>>, vector<240x240xbf16>
    %cst_64 = arith.constant dense<0.000000e+00> : vector<2x240xf32>
    %166 = tpu.matmul %164, %165, %cst_64 {dimension_numbers = #tpu.dot_dimension_numbers<[1], [0], [0], [1], [0, 0, 1, 1], [], []>} : vector<2x240xbf16>, vector<240x240xbf16>, vector<2x240xf32> -> vector<2x240xf32>
    %c0_65 = arith.constant 0 : index
    %c0_66 = arith.constant 0 : index
    %167 = vector.load %arg17[%c0_65, %c0_66] : memref<1x240xf32, #tpu.memory_space<vmem>>, vector<1x240xf32>
    %168 = vector.broadcast %167 : vector<1x240xf32> to vector<2x240xf32>
    %169 = arith.addf %166, %168 : vector<2x240xf32>
    %cst_67 = arith.constant 0.000000e+00 : f32
    %170 = vector.broadcast %cst_67 : f32 to vector<2x240xf32>
    %171 = arith.maximumf %169, %170 : vector<2x240xf32>
    %172 = arith.truncf %171 : vector<2x240xf32> to vector<2x240xbf16>
    %c0_68 = arith.constant 0 : index
    %c0_69 = arith.constant 0 : index
    %173 = vector.load %arg18[%c0_68, %c0_69] : memref<240x640xbf16, #tpu.memory_space<vmem>>, vector<240x640xbf16>
    %cst_70 = arith.constant dense<0.000000e+00> : vector<2x640xf32>
    %174 = tpu.matmul %172, %173, %cst_70 {dimension_numbers = #tpu.dot_dimension_numbers<[1], [0], [0], [1], [0, 0, 1, 1], [], []>} : vector<2x240xbf16>, vector<240x640xbf16>, vector<2x640xf32> -> vector<2x640xf32>
    %c0_71 = arith.constant 0 : index
    %c0_72 = arith.constant 0 : index
    %175 = vector.load %arg19[%c0_71, %c0_72] : memref<1x640xf32, #tpu.memory_space<vmem>>, vector<1x640xf32>
    %176 = vector.broadcast %175 : vector<1x640xf32> to vector<2x640xf32>
    %177 = arith.addf %174, %176 : vector<2x640xf32>
    %c0_73 = arith.constant 0 : index
    %c0_74 = arith.constant 0 : index
    %178 = vector.load %arg20[%c0_73, %c0_74] : memref<2x640xf32, #tpu.memory_space<vmem>>, vector<2x640xf32>
    tpu.vector_store %arg20[%c0_73, %c0_74], %177 {strides = array<i32>} : memref<2x640xf32, #tpu.memory_space<vmem>>, vector<2x640xf32>,
    return
  }
  func.func @transform_0(%arg0: i32) -> (i32, i32, i32) {
    %c0_i32 = arith.constant 0 : i32
    %c0_i32_0 = arith.constant 0 : i32
    %c0_i32_1 = arith.constant 0 : i32
    return %arg0, %c0_i32, %c0_i32_0 : i32, i32, i32
  }
  func.func @transform_1(%arg0: i32) -> (i32, i32) {
    %c0_i32 = arith.constant 0 : i32
    %c0_i32_0 = arith.constant 0 : i32
    %c0_i32_1 = arith.constant 0 : i32
    return %c0_i32, %c0_i32_0 : i32, i32
  }
  func.func @transform_2(%arg0: i32) -> (i32, i32) {
    %c0_i32 = arith.constant 0 : i32
    %c0_i32_0 = arith.constant 0 : i32
    %c0_i32_1 = arith.constant 0 : i32
    return %c0_i32, %c0_i32_0 : i32, i32
  }
  func.func @transform_3(%arg0: i32) -> (i32, i32) {
    %c0_i32 = arith.constant 0 : i32
    %c0_i32_0 = arith.constant 0 : i32
    %c0_i32_1 = arith.constant 0 : i32
    return %c0_i32, %c0_i32_0 : i32, i32
  }
  func.func @transform_4(%arg0: i32) -> (i32, i32) {
    %c0_i32 = arith.constant 0 : i32
    %c0_i32_0 = arith.constant 0 : i32
    %c0_i32_1 = arith.constant 0 : i32
    return %c0_i32, %c0_i32_0 : i32, i32
  }
  func.func @transform_5(%arg0: i32) -> (i32, i32) {
    %c0_i32 = arith.constant 0 : i32
    %c0_i32_0 = arith.constant 0 : i32
    %c0_i32_1 = arith.constant 0 : i32
    return %c0_i32, %c0_i32_0 : i32, i32
  }
  func.func @transform_6(%arg0: i32) -> (i32, i32) {
    %c0_i32 = arith.constant 0 : i32
    %c0_i32_0 = arith.constant 0 : i32
    %c0_i32_1 = arith.constant 0 : i32
    return %c0_i32, %c0_i32_0 : i32, i32
  }
  func.func @transform_7(%arg0: i32) -> (i32, i32) {
    %c0_i32 = arith.constant 0 : i32
    %c0_i32_0 = arith.constant 0 : i32
    %c0_i32_1 = arith.constant 0 : i32
    return %c0_i32, %c0_i32_0 : i32, i32
  }
  func.func @transform_8(%arg0: i32) -> (i32, i32) {
    %c0_i32 = arith.constant 0 : i32
    %c0_i32_0 = arith.constant 0 : i32
    %c0_i32_1 = arith.constant 0 : i32
    return %c0_i32, %c0_i32_0 : i32, i32
  }
  func.func @transform_9(%arg0: i32) -> (i32, i32) {
    %c0_i32 = arith.constant 0 : i32
    %c0_i32_0 = arith.constant 0 : i32
    %c0_i32_1 = arith.constant 0 : i32
    return %c0_i32, %c0_i32_0 : i32, i32
  }
  func.func @transform_10(%arg0: i32) -> (i32, i32) {
    %c0_i32 = arith.constant 0 : i32
    %c0_i32_0 = arith.constant 0 : i32
    %c0_i32_1 = arith.constant 0 : i32
    return %c0_i32, %c0_i32_0 : i32, i32
  }
  func.func @transform_11(%arg0: i32) -> (i32, i32) {
    %c0_i32 = arith.constant 0 : i32
    %c0_i32_0 = arith.constant 0 : i32
    %c0_i32_1 = arith.constant 0 : i32
    return %c0_i32, %c0_i32_0 : i32, i32
  }
  func.func @transform_12(%arg0: i32) -> (i32, i32) {
    %c0_i32 = arith.constant 0 : i32
    %c0_i32_0 = arith.constant 0 : i32
    %c0_i32_1 = arith.constant 0 : i32
    return %c0_i32, %c0_i32_0 : i32, i32
  }
  func.func @transform_13(%arg0: i32) -> (i32, i32) {
    %c0_i32 = arith.constant 0 : i32
    %c0_i32_0 = arith.constant 0 : i32
    %c0_i32_1 = arith.constant 0 : i32
    return %c0_i32, %c0_i32_0 : i32, i32
  }
  func.func @transform_14(%arg0: i32) -> (i32, i32) {
    %c0_i32 = arith.constant 0 : i32
    %c0_i32_0 = arith.constant 0 : i32
    %c0_i32_1 = arith.constant 0 : i32
    return %c0_i32, %c0_i32_0 : i32, i32
  }
  func.func @transform_15(%arg0: i32) -> (i32, i32) {
    %c0_i32 = arith.constant 0 : i32
    %c0_i32_0 = arith.constant 0 : i32
    %c0_i32_1 = arith.constant 0 : i32
    return %c0_i32, %c0_i32_0 : i32, i32
  }
  func.func @transform_16(%arg0: i32) -> (i32, i32) {
    %c0_i32 = arith.constant 0 : i32
    %c0_i32_0 = arith.constant 0 : i32
    %c0_i32_1 = arith.constant 0 : i32
    return %c0_i32, %c0_i32_0 : i32, i32
  }
  func.func @transform_17(%arg0: i32) -> (i32, i32) {
    %c0_i32 = arith.constant 0 : i32
    %c0_i32_0 = arith.constant 0 : i32
    %c0_i32_1 = arith.constant 0 : i32
    return %c0_i32, %c0_i32_0 : i32, i32
  }
  func.func @transform_18(%arg0: i32) -> (i32, i32) {
    %c0_i32 = arith.constant 0 : i32
    %c0_i32_0 = arith.constant 0 : i32
    %c0_i32_1 = arith.constant 0 : i32
    return %c0_i32, %c0_i32_0 : i32, i32
  }
  func.func @transform_19(%arg0: i32) -> (i32, i32) {
    %c0_i32 = arith.constant 0 : i32
    %c0_i32_0 = arith.constant 0 : i32
    return %arg0, %c0_i32 : i32, i32
  }
}

</mosaic_0001>

<llo_original>
// kernel: classifier_forward.1
$region0: #{classifier_forward.1}
  #allocation0 [shape = 'u32[]', space=smem, size = 0x4, offset = 0x4, fixed_abs, tag = 'smem constant byte address 0x4 - core index']
  #allocation1 [shape = 'u32[72,128]{1,0:T(1,128)}', space=vmem, size = 0x9000, scoped, tag = 'internal scratch']
  %s0 = inlined_call_operand.vmem [shape: f32[2,8,128], index: 0, kind: input, shape index: {}]
  %s1 = inlined_call_operand.vmem [shape: bf16[128,240], index: 1, kind: input, shape index: {}]
  %s2 = inlined_call_operand.vmem [shape: f32[1,240], index: 2, kind: input, shape index: {}]
  %s3 = inlined_call_operand.hbm [shape: bf16[240,1152], index: 3, kind: input, shape index: {}]
  %s4 = inlined_call_operand.vmem [shape: f32[1,1152], index: 4, kind: input, shape index: {}]
  %s5 = inlined_call_operand.vmem [shape: bf16[384,240], index: 5, kind: input, shape index: {}]
  %s6 = inlined_call_operand.vmem [shape: f32[1,240], index: 6, kind: input, shape index: {}]
  %s7 = inlined_call_operand.vmem [shape: f32[1,240], index: 7, kind: input, shape index: {}]
  %s8 = inlined_call_operand.vmem [shape: f32[1,240], index: 8, kind: input, shape index: {}]
  %s9 = inlined_call_operand.vmem [shape: bf16[240,256], index: 9, kind: input, shape index: {}]
  %s10 = inlined_call_operand.vmem [shape: f32[1,256], index: 10, kind: input, shape index: {}]
  %s11 = inlined_call_operand.vmem [shape: bf16[256,240], index: 11, kind: input, shape index: {}]
  %s12 = inlined_call_operand.vmem [shape: f32[1,240], index: 12, kind: input, shape index: {}]
  %s13 = inlined_call_operand.vmem [shape: f32[1,240], index: 13, kind: input, shape index: {}]
  %s14 = inlined_call_operand.vmem [shape: f32[1,240], index: 14, kind: input, shape index: {}]
  %s15 = inlined_call_operand.hbm [shape: bf16[240,240], index: 15, kind: input, shape index: {}]
  %s16 = inlined_call_operand.vmem [shape: f32[1,240], index: 16, kind: input, shape index: {}]
  %s17 = inlined_call_operand.vmem [shape: bf16[240,640], index: 17, kind: input, shape index: {}]
  %s18 = inlined_call_operand.vmem [shape: f32[1,640], index: 18, kind: input, shape index: {}]
  %s19 = inlined_call_operand.hbm [shape: f32[2,640], index: 19, kind: output, shape index: {}]
  %s20 = sld [smem:[#allocation0]]
  $region94: #{classifier_forward.1} parent=0
    _
  %s22 = ssub.s32 1, %s20
  %s23 = scalar_select 0, %s22, %s20
  $region1: #{classifier_forward.1} parent=0
    #allocation2 [shape = 'u8[552960]{0}', space=vmem, size = 0x87000, scoped, tag = 'input window, operand 3, single buffered']
    #allocation3 [shape = 's32[1]{0}', space=sflag, size = 0x4, scoped, tag = 'scoped memory for classifier_forward.1']
    #allocation4 [shape = 's32[1]{0}', space=sflag, size = 0x4, scoped, tag = 'scoped memory for classifier_forward.1']
    #allocation5 [shape = 'u8[122880]{0}', space=vmem, size = 0x1e000, scoped, tag = 'input window, operand 15, single buffered']
    #allocation6 [shape = 's32[1]{0}', space=sflag, size = 0x4, scoped, tag = 'scoped memory for classifier_forward.1']
    #allocation7 [shape = 'u8[5120]{0}', space=vmem, size = 0x1400, scoped, tag = 'output window, operand 0, single buffered']
    %24 = vsyncpa [#allocation3], 0
    %25 = vsyncpa [#allocation6], 0
    %26 = vsyncpa [#allocation4], 0
    // Predicated region
    $region2: #{classifier_forward.1} parent=1 // pred_check
      _
    $region3: #{classifier_forward.1} parent=1 // pred_check_branch
      %28 = sbr.rel (0) target = $region5
    $region4: #{classifier_forward.1} parent=1 // pred_region
      _
    $region5: #{classifier_forward.1} parent=1 // pred_fallthru
      _
    // Predicated region
    $region6: #{classifier_forward.1} parent=1 // pred_check
      _
    $region7: #{classifier_forward.1} parent=1 // pred_check_branch
      %30 = sbr.rel (0) target = $region9
    $region8: #{classifier_forward.1} parent=1 // pred_region
      _
    $region9: #{classifier_forward.1} parent=1 // pred_fallthru
      _
    // Predicated region
    $region10: #{classifier_forward.1} parent=1 // pred_check
      _
    $region11: #{classifier_forward.1} parent=1 // pred_check_branch
      %32 = sbr.rel (0) target = $region13
    $region12: #{classifier_forward.1} parent=1 // pred_region
      _
    $region13: #{classifier_forward.1} parent=1 // pred_fallthru
      _
    // Predicated region
    $region14: #{classifier_forward.1} parent=1 // pred_check
      _
    $region15: #{classifier_forward.1} parent=1 // pred_check_branch
      %34 = sbr.rel (0) target = $region17
    $region16: #{classifier_forward.1} parent=1 // pred_region
      %36 = vsyncadd [#allocation3], 0
      %s37 = sshll.u32 %s3, 4
      %s38 = int_to_ptr.hbm [resolvable:$true] %s37
      %s39 = sshll.u32 [#allocation2], 4
      %s40 = int_to_ptr.vmem [resolvable:$true] %s39
      %45 = dma.hbm_to_vmem [thread:$0]  %s38, 17280, %s40, [#allocation3], 576, 576, 36
    $region17: #{classifier_forward.1} parent=1 // pred_fallthru
      _
    // Predicated region
    $region18: #{classifier_forward.1} parent=1 // pred_check
      _
    $region19: #{classifier_forward.1} parent=1 // pred_check_branch
      %47 = sbr.rel (0) target = $region21
    $region20: #{classifier_forward.1} parent=1 // pred_region
      _
    $region21: #{classifier_forward.1} parent=1 // pred_fallthru
      _
    // Predicated region
    $region22: #{classifier_forward.1} parent=1 // pred_check
      _
    $region23: #{classifier_forward.1} parent=1 // pred_check_branch
      %49 = sbr.rel (0) target = $region25
    $region24: #{classifier_forward.1} parent=1 // pred_region
      _
    $region25: #{classifier_forward.1} parent=1 // pred_fallthru
      _
    // Predicated region
    $region26: #{classifier_forward.1} parent=1 // pred_check
      _
    $region27: #{classifier_forward.1} parent=1 // pred_check_branch
      %51 = sbr.rel (0) target = $region29
    $region28: #{classifier_forward.1} parent=1 // pred_region
      _
    $region29: #{classifier_forward.1} parent=1 // pred_fallthru
      _
    // Predicated region
    $region30: #{classifier_forward.1} parent=1 // pred_check
      _
    $region31: #{classifier_forward.1} parent=1 // pred_check_branch
      %53 = sbr.rel (0) target = $region33
    $region32: #{classifier_forward.1} parent=1 // pred_region
      _
    $region33: #{classifier_forward.1} parent=1 // pred_fallthru
      _
    // Predicated region
    $region34: #{classifier_forward.1} parent=1 // pred_check
      _
    $region35: #{classifier_forward.1} parent=1 // pred_check_branch
      %55 = sbr.rel (0) target = $region37
    $region36: #{classifier_forward.1} parent=1 // pred_region
      _
    $region37: #{classifier_forward.1} parent=1 // pred_fallthru
      _
    // Predicated region
    $region38: #{classifier_forward.1} parent=1 // pred_check
      _
    $region39: #{classifier_forward.1} parent=1 // pred_check_branch
      %57 = sbr.rel (0) target = $region41
    $region40: #{classifier_forward.1} parent=1 // pred_region
      _
    $region41: #{classifier_forward.1} parent=1 // pred_fallthru
      _
    // Predicated region
    $region42: #{classifier_forward.1} parent=1 // pred_check
      _
    $region43: #{classifier_forward.1} parent=1 // pred_check_branch
      %59 = sbr.rel (0) target = $region45
    $region44: #{classifier_forward.1} parent=1 // pred_region
      _
    $region45: #{classifier_forward.1} parent=1 // pred_fallthru
      _
    // Predicated region
    $region46: #{classifier_forward.1} parent=1 // pred_check
      _
    $region47: #{classifier_forward.1} parent=1 // pred_check_branch
      %61 = sbr.rel (0) target = $region49
    $region48: #{classifier_forward.1} parent=1 // pred_region
      _
    $region49: #{classifier_forward.1} parent=1 // pred_fallthru
      _
    // Predicated region
    $region50: #{classifier_forward.1} parent=1 // pred_check
      _
    $region51: #{classifier_forward.1} parent=1 // pred_check_branch
      %63 = sbr.rel (0) target = $region53
    $region52: #{classifier_forward.1} parent=1 // pred_region
      _
    $region53: #{classifier_forward.1} parent=1 // pred_fallthru
      _
    // Predicated region
    $region54: #{classifier_forward.1} parent=1 // pred_check
      _
    $region55: #{classifier_forward.1} parent=1 // pred_check_branch
      %65 = sbr.rel (0) target = $region57
    $region56: #{classifier_forward.1} parent=1 // pred_region
      _
    $region57: #{classifier_forward.1} parent=1 // pred_fallthru
      _
    // Predicated region
    $region58: #{classifier_forward.1} parent=1 // pred_check
      _
    $region59: #{classifier_forward.1} parent=1 // pred_check_branch
      %67 = sbr.rel (0) target = $region61
    $region60: #{classifier_forward.1} parent=1 // pred_region
      _
    $region61: #{classifier_forward.1} parent=1 // pred_fallthru
      _
    // Predicated region
    $region62: #{classifier_forward.1} parent=1 // pred_check
      _
    $region63: #{classifier_forward.1} parent=1 // pred_check_branch
      %69 = sbr.rel (0) target = $region65
    $region64: #{classifier_forward.1} parent=1 // pred_region
      %71 = vsyncadd [#allocation6], 0
      %s72 = sshll.u32 %s15, 4
      %s73 = int_to_ptr.hbm [resolvable:$true] %s72
      %s74 = sshll.u32 [#allocation5], 4
      %s75 = int_to_ptr.vmem [resolvable:$true] %s74
      %80 = dma.hbm_to_vmem [thread:$0]  %s73, 3840, %s75, [#allocation6], 128, 128, 8
    $region65: #{classifier_forward.1} parent=1 // pred_fallthru
      _
    // Predicated region
    $region66: #{classifier_forward.1} parent=1 // pred_check
      _
    $region67: #{classifier_forward.1} parent=1 // pred_check_branch
      %82 = sbr.rel (0) target = $region69
    $region68: #{classifier_forward.1} parent=1 // pred_region
      _
    $region69: #{classifier_forward.1} parent=1 // pred_fallthru
      _
    // Predicated region
    $region70: #{classifier_forward.1} parent=1 // pred_check
      _
    $region71: #{classifier_forward.1} parent=1 // pred_check_branch
      %84 = sbr.rel (0) target = $region73
    $region72: #{classifier_forward.1} parent=1 // pred_region
      _
    $region73: #{classifier_forward.1} parent=1 // pred_fallthru
      _
    // Predicated region
    $region74: #{classifier_forward.1} parent=1 // pred_check
      _
    $region75: #{classifier_forward.1} parent=1 // pred_check_branch
      %86 = sbr.rel (0) target = $region77
    $region76: #{classifier_forward.1} parent=1 // pred_region
      _
    $region77: #{classifier_forward.1} parent=1 // pred_fallthru
      _
    // Predicated region
    $region78: #{classifier_forward.1} parent=1 // pred_check
      _
    $region79: #{classifier_forward.1} parent=1 // pred_check_branch
      %88 = sbr.rel (0) target = $region81
    $region80: #{classifier_forward.1} parent=1 // pred_region
      %90 = dma.done [#allocation3], 17280
    $region81: #{classifier_forward.1} parent=1 // pred_fallthru
      _
    // Predicated region
    $region82: #{classifier_forward.1} parent=1 // pred_check
      _
    $region83: #{classifier_forward.1} parent=1 // pred_check_branch
      %92 = sbr.rel (0) target = $region85
    $region84: #{classifier_forward.1} parent=1 // pred_region
      %94 = dma.done [#allocation6], 3840
    $region85: #{classifier_forward.1} parent=1 // pred_fallthru
      _
    %v96 = vld [vmem:[%s0] sm:$0xff]
    %v97 = vld [vmem:[%s0 + $0x8] sm:$0xff]
    %v98 = vpack.c.bf16 %v97, %v96
    %v99 = vld [vmem:[%s1] sm:$0xff]
    %v100 = vld [vmem:[%s1 + $0x8] sm:$0xff]
    %v101 = vld [vmem:[%s1 + $0x10] sm:$0xff]
    %v102 = vld [vmem:[%s1 + $0x18] sm:$0xff]
    %v103 = vld [vmem:[%s1 + $0x20] sm:$0xff]
    %v104 = vld [vmem:[%s1 + $0x28] sm:$0xff]
    %v105 = vld [vmem:[%s1 + $0x30] sm:$0xff]
    %v106 = vld [vmem:[%s1 + $0x38] sm:$0xff]
    %v107 = vld [vmem:[%s1 + $0x40] sm:$0xff]
    %v108 = vld [vmem:[%s1 + $0x48] sm:$0xff]
    %v109 = vld [vmem:[%s1 + $0x50] sm:$0xff]
    %v110 = vld [vmem:[%s1 + $0x58] sm:$0xff]
    %v111 = vld [vmem:[%s1 + $0x60] sm:$0xff]
    %v112 = vld [vmem:[%s1 + $0x68] sm:$0xff]
    %v113 = vld [vmem:[%s1 + $0x70] sm:$0xff]
    %v114 = vld [vmem:[%s1 + $0x78] sm:$0xff]
    %v115 = vld [vmem:[%s2] sm:$0x3]
    %v117 = vperm.slane %v115, 0
    %v118 = vperm.slane %v115, 1
    %v137 = vunpack.c.l.b16 %v99
    %v138 = vunpack.c.h.b16 %v99
    %v139 = vunpack.c.l.b16 %v100
    %v140 = vunpack.c.h.b16 %v100
    %v141 = vunpack.c.l.b16 %v101
    %v142 = vunpack.c.h.b16 %v101
    %v143 = vunpack.c.l.b16 %v102
    %v144 = vunpack.c.h.b16 %v102
    %v145 = vunpack.c.l.b16 %v103
    %v146 = vunpack.c.h.b16 %v103
    %v147 = vunpack.c.l.b16 %v104
    %v148 = vunpack.c.h.b16 %v104
    %v149 = vunpack.c.l.b16 %v105
    %v150 = vunpack.c.h.b16 %v105
    %v151 = vunpack.c.l.b16 %v106
    %v152 = vunpack.c.h.b16 %v106
    %v153 = vunpack.c.l.b16 %v107
    %v154 = vunpack.c.h.b16 %v107
    %v155 = vunpack.c.l.b16 %v108
    %v156 = vunpack.c.h.b16 %v108
    %v157 = vunpack.c.l.b16 %v109
    %v158 = vunpack.c.h.b16 %v109
    %v159 = vunpack.c.l.b16 %v110
    %v160 = vunpack.c.h.b16 %v110
    %v161 = vunpack.c.l.b16 %v111
    %v162 = vunpack.c.h.b16 %v111
    %v163 = vunpack.c.l.b16 %v112
    %v164 = vunpack.c.h.b16 %v112
    %v165 = vunpack.c.l.b16 %v113
    %v166 = vunpack.c.h.b16 %v113
    %v167 = vunpack.c.l.b16 %v114
    %v168 = vunpack.c.h.b16 %v114
    %v169 = vpack.c.b16 %v139, %v137
    %v170 = vpack.c.b16 %v140, %v138
    %v171 = vpack.c.b16 %v143, %v141
    %v172 = vpack.c.b16 %v144, %v142
    %v173 = vpack.c.b16 %v147, %v145
    %v174 = vpack.c.b16 %v148, %v146
    %v175 = vpack.c.b16 %v151, %v149
    %v176 = vpack.c.b16 %v152, %v150
    %v177 = vpack.c.b16 %v155, %v153
    %v178 = vpack.c.b16 %v156, %v154
    %v179 = vpack.c.b16 %v159, %v157
    %v180 = vpack.c.b16 %v160, %v158
    %v181 = vpack.c.b16 %v163, %v161
    %v182 = vpack.c.b16 %v164, %v162
    %v183 = vpack.c.b16 %v167, %v165
    %v184 = vpack.c.b16 %v168, %v166
    %201 = vmatpush.bf16.msra.mxu0 %v183
    %202 = vmatpush.bf16.msra.mxu0 %v181
    %203 = vmatpush.bf16.msra.mxu0 %v179
    %204 = vmatpush.bf16.msra.mxu0 %v177
    %205 = vmatpush.bf16.msra.mxu0 %v175
    %206 = vmatpush.bf16.msra.mxu0 %v173
    %207 = vmatpush.bf16.msra.mxu0 %v171
    %208 = vmatpush.bf16.msra.mxu0 %v169
    %209 = vmatmul.bf16.gmra.mxu0 %v98
    %v210 = vpop.f32.mrf.mxu0
    %v211 = vadd.f32 %v117, %v210
    %v212 = vpop.f32.mrf.mxu0
    %v213 = vadd.f32 %v117, %v212
    %214 = vdwg.mxu0
    %215 = vmatpush.bf16.msra.mxu0 %v184
    %216 = vmatpush.bf16.msra.mxu0 %v182
    %217 = vmatpush.bf16.msra.mxu0 %v180
    %218 = vmatpush.bf16.msra.mxu0 %v178
    %219 = vmatpush.bf16.msra.mxu0 %v176
    %220 = vmatpush.bf16.msra.mxu0 %v174
    %221 = vmatpush.bf16.msra.mxu0 %v172
    %222 = vmatpush.bf16.msra.mxu0 %v170
    %223 = vmatmul.bf16.gmra.mxu0 %v98
    %v224 = vpop.f32.mrf.mxu0
    %v225 = vadd.f32 %v118, %v224
    %v226 = vpop.f32.mrf.mxu0
    %v227 = vadd.f32 %v118, %v226
    %228 = vdwg.mxu0
    %v229 = vpack.c.bf16 %v213, %v211
    %v230 = vpack.c.bf16 %v227, %v225
    %v231 = vld [vmem:[#allocation2] sm:$0xff]
    %v232 = vld [vmem:[#allocation2 + $0x8] sm:$0xff]
    %v233 = vld [vmem:[#allocation2 + $0x10] sm:$0xff]
    %v234 = vld [vmem:[#allocation2 + $0x18] sm:$0xff]
    %v235 = vld [vmem:[#allocation2 + $0x20] sm:$0xf]
    %v236 = vld [vmem:[#allocation2 + $0x24] sm:$0xff]
    %v237 = vld [vmem:[#allocation2 + $0x2c] sm:$0xff]
    %v238 = vld [vmem:[#allocation2 + $0x34] sm:$0xff]
    %v239 = vld [vmem:[#allocation2 + $0x3c] sm:$0xff]
    %v240 = vld [vmem:[#allocation2 + $0x44] sm:$0xf]
    %v241 = vld [vmem:[#allocation2 + $0x48] sm:$0xff]
    %v242 = vld [vmem:[#allocation2 + $0x50] sm:$0xff]
    %v243 = vld [vmem:[#allocation2 + $0x58] sm:$0xff]
    %v244 = vld [vmem:[#allocation2 + $0x60] sm:$0xff]
    %v245 = vld [vmem:[#allocation2 + $0x68] sm:$0xf]
    %v246 = vld [vmem:[#allocation2 + $0x6c] sm:$0xff]
    %v247 = vld [vmem:[#allocation2 + $0x74] sm:$0xff]
    %v248 = vld [vmem:[#allocation2 + $0x7c] sm:$0xff]
    %v249 = vld [vmem:[#allocation2 + $0x84] sm:$0xff]
    %v250 = vld [vmem:[#allocation2 + $0x8c] sm:$0xf]
    %v251 = vld [vmem:[#allocation2 + $0x90] sm:$0xff]
    %v252 = vld [vmem:[#allocation2 + $0x98] sm:$0xff]
    %v253 = vld [vmem:[#allocation2 + $0xa0] sm:$0xff]
    %v254 = vld [vmem:[#allocation2 + $0xa8] sm:$0xff]
    %v255 = vld [vmem:[#allocation2 + $0xb0] sm:$0xf]
    %v256 = vld [vmem:[#allocation2 + $0xb4] sm:$0xff]
    %v257 = vld [vmem:[#allocation2 + $0xbc] sm:$0xff]
    %v258 = vld [vmem:[#allocation2 + $0xc4] sm:$0xff]
    %v259 = vld [vmem:[#allocation2 + $0xcc] sm:$0xff]
    %v260 = vld [vmem:[#allocation2 + $0xd4] sm:$0xf]
    %v261 = vld [vmem:[#allocation2 + $0xd8] sm:$0xff]
    %v262 = vld [vmem:[#allocation2 + $0xe0] sm:$0xff]
    %v263 = vld [vmem:[#allocation2 + $0xe8] sm:$0xff]
    %v264 = vld [vmem:[#allocation2 + $0xf0] sm:$0xff]
    %v265 = vld [vmem:[#allocation2 + $0xf8] sm:$0xf]
    %v266 = vld [vmem:[#allocation2 + $0xfc] sm:$0xff]
    %v267 = vld [vmem:[#allocation2 + $0x104] sm:$0xff]
    %v268 = vld [vmem:[#allocation2 + $0x10c] sm:$0xff]
    %v269 = vld [vmem:[#allocation2 + $0x114] sm:$0xff]
    %v270 = vld [vmem:[#allocation2 + $0x11c] sm:$0xf]
    %v271 = vld [vmem:[#allocation2 + $0x120] sm:$0xff]
    %v272 = vld [vmem:[#allocation2 + $0x128] sm:$0xff]
    %v273 = vld [vmem:[#allocation2 + $0x130] sm:$0xff]
    %v274 = vld [vmem:[#allocation2 + $0x138] sm:$0xff]
    %v275 = vld [vmem:[#allocation2 + $0x140] sm:$0xf]
    %v276 = vld [vmem:[#allocation2 + $0x144] sm:$0xff]
    %v277 = vld [vmem:[#allocation2 + $0x14c] sm:$0xff]
    %v278 = vld [vmem:[#allocation2 + $0x154] sm:$0xff]
    %v279 = vld [vmem:[#allocation2 + $0x15c] sm:$0xff]
    %v280 = vld [vmem:[#allocation2 + $0x164] sm:$0xf]
    %v281 = vld [vmem:[#allocation2 + $0x168] sm:$0xff]
    %v282 = vld [vmem:[#allocation2 + $0x170] sm:$0xff]
    %v283 = vld [vmem:[#allocation2 + $0x178] sm:$0xff]
    %v284 = vld [vmem:[#allocation2 + $0x180] sm:$0xff]
    %v285 = vld [vmem:[#allocation2 + $0x188] sm:$0xf]
    %v286 = vld [vmem:[#allocation2 + $0x18c] sm:$0xff]
    %v287 = vld [vmem:[#allocation2 + $0x194] sm:$0xff]
    %v288 = vld [vmem:[#allocation2 + $0x19c] sm:$0xff]
    %v289 = vld [vmem:[#allocation2 + $0x1a4] sm:$0xff]
    %v290 = vld [vmem:[#allocation2 + $0x1ac] sm:$0xf]
    %v291 = vld [vmem:[#allocation2 + $0x1b0] sm:$0xff]
    %v292 = vld [vmem:[#allocation2 + $0x1b8] sm:$0xff]
    %v293 = vld [vmem:[#allocation2 + $0x1c0] sm:$0xff]
    %v294 = vld [vmem:[#allocation2 + $0x1c8] sm:$0xff]
    %v295 = vld [vmem:[#allocation2 + $0x1d0] sm:$0xf]
    %v296 = vld [vmem:[#allocation2 + $0x1d4] sm:$0xff]
    %v297 = vld [vmem:[#allocation2 + $0x1dc] sm:$0xff]
    %v298 = vld [vmem:[#allocation2 + $0x1e4] sm:$0xff]
    %v299 = vld [vmem:[#allocation2 + $0x1ec] sm:$0xff]
    %v300 = vld [vmem:[#allocation2 + $0x1f4] sm:$0xf]
    %v301 = vld [vmem:[#allocation2 + $0x1f8] sm:$0xff]
    %v302 = vld [vmem:[#allocation2 + $0x200] sm:$0xff]
    %v303 = vld [vmem:[#allocation2 + $0x208] sm:$0xff]
    %v304 = vld [vmem:[#allocation2 + $0x210] sm:$0xff]
    %v305 = vld [vmem:[#allocation2 + $0x218] sm:$0xf]
    %v306 = vld [vmem:[#allocation2 + $0x21c] sm:$0xff]
    %v307 = vld [vmem:[#allocation2 + $0x224] sm:$0xff]
    %v308 = vld [vmem:[#allocation2 + $0x22c] sm:$0xff]
    %v309 = vld [vmem:[#allocation2 + $0x234] sm:$0xff]
    %v310 = vld [vmem:[#allocation2 + $0x23c] sm:$0xf]
    %v311 = vld [vmem:[#allocation2 + $0x240] sm:$0xff]
    %v312 = vld [vmem:[#allocation2 + $0x248] sm:$0xff]
    %v313 = vld [vmem:[#allocation2 + $0x250] sm:$0xff]
    %v314 = vld [vmem:[#allocation2 + $0x258] sm:$0xff]
    %v315 = vld [vmem:[#allocation2 + $0x260] sm:$0xf]
    %v316 = vld [vmem:[#allocation2 + $0x264] sm:$0xff]
    %v317 = vld [vmem:[#allocation2 + $0x26c] sm:$0xff]
    %v318 = vld [vmem:[#allocation2 + $0x274] sm:$0xff]
    %v319 = vld [vmem:[#allocation2 + $0x27c] sm:$0xff]
    %v320 = vld [vmem:[#allocation2 + $0x284] sm:$0xf]
    %v321 = vld [vmem:[#allocation2 + $0x288] sm:$0xff]
    %v322 = vld [vmem:[#allocation2 + $0x290] sm:$0xff]
    %v323 = vld [vmem:[#allocation2 + $0x298] sm:$0xff]
    %v324 = vld [vmem:[#allocation2 + $0x2a0] sm:$0xff]
    %v325 = vld [vmem:[#allocation2 + $0x2a8] sm:$0xf]
    %v326 = vld [vmem:[#allocation2 + $0x2ac] sm:$0xff]
    %v327 = vld [vmem:[#allocation2 + $0x2b4] sm:$0xff]
    %v328 = vld [vmem:[#allocation2 + $0x2bc] sm:$0xff]
    %v329 = vld [vmem:[#allocation2 + $0x2c4] sm:$0xff]
    %v330 = vld [vmem:[#allocation2 + $0x2cc] sm:$0xf]
    %v331 = vld [vmem:[#allocation2 + $0x2d0] sm:$0xff]
    %v332 = vld [vmem:[#allocation2 + $0x2d8] sm:$0xff]
    %v333 = vld [vmem:[#allocation2 + $0x2e0] sm:$0xff]
    %v334 = vld [vmem:[#allocation2 + $0x2e8] sm:$0xff]
    %v335 = vld [vmem:[#allocation2 + $0x2f0] sm:$0xf]
    %v336 = vld [vmem:[#allocation2 + $0x2f4] sm:$0xff]
    %v337 = vld [vmem:[#allocation2 + $0x2fc] sm:$0xff]
    %v338 = vld [vmem:[#allocation2 + $0x304] sm:$0xff]
    %v339 = vld [vmem:[#allocation2 + $0x30c] sm:$0xff]
    %v340 = vld [vmem:[#allocation2 + $0x314] sm:$0xf]
    %v341 = vld [vmem:[#allocation2 + $0x318] sm:$0xff]
    %v342 = vld [vmem:[#allocation2 + $0x320] sm:$0xff]
    %v343 = vld [vmem:[#allocation2 + $0x328] sm:$0xff]
    %v344 = vld [vmem:[#allocation2 + $0x330] sm:$0xff]
    %v345 = vld [vmem:[#allocation2 + $0x338] sm:$0xf]
    %v346 = vld [vmem:[#allocation2 + $0x33c] sm:$0xff]
    %v347 = vld [vmem:[#allocation2 + $0x344] sm:$0xff]
    %v348 = vld [vmem:[#allocation2 + $0x34c] sm:$0xff]
    %v349 = vld [vmem:[#allocation2 + $0x354] sm:$0xff]
    %v350 = vld [vmem:[#allocation2 + $0x35c] sm:$0xf]
    %v351 = vld [vmem:[#allocation2 + $0x360] sm:$0xff]
    %v352 = vld [vmem:[#allocation2 + $0x368] sm:$0xff]
    %v353 = vld [vmem:[#allocation2 + $0x370] sm:$0xff]
    %v354 = vld [vmem:[#allocation2 + $0x378] sm:$0xff]
    %v355 = vld [vmem:[#allocation2 + $0x380] sm:$0xf]
    %v356 = vld [vmem:[#allocation2 + $0x384] sm:$0xff]
    %v357 = vld [vmem:[#allocation2 + $0x38c] sm:$0xff]
    %v358 = vld [vmem:[#allocation2 + $0x394] sm:$0xff]
    %v359 = vld [vmem:[#allocation2 + $0x39c] sm:$0xff]
    %v360 = vld [vmem:[#allocation2 + $0x3a4] sm:$0xf]
    %v361 = vld [vmem:[#allocation2 + $0x3a8] sm:$0xff]
    %v362 = vld [vmem:[#allocation2 + $0x3b0] sm:$0xff]
    %v363 = vld [vmem:[#allocation2 + $0x3b8] sm:$0xff]
    %v364 = vld [vmem:[#allocation2 + $0x3c0] sm:$0xff]
    %v365 = vld [vmem:[#allocation2 + $0x3c8] sm:$0xf]
    %v366 = vld [vmem:[#allocation2 + $0x3cc] sm:$0xff]
    %v367 = vld [vmem:[#allocation2 + $0x3d4] sm:$0xff]
    %v368 = vld [vmem:[#allocation2 + $0x3dc] sm:$0xff]
    %v369 = vld [vmem:[#allocation2 + $0x3e4] sm:$0xff]
    %v370 = vld [vmem:[#allocation2 + $0x3ec] sm:$0xf]
    %v371 = vld [vmem:[#allocation2 + $0x3f0] sm:$0xff]
    %v372 = vld [vmem:[#allocation2 + $0x3f8] sm:$0xff]
    %v373 = vld [vmem:[#allocation2 + $0x400] sm:$0xff]
    %v374 = vld [vmem:[#allocation2 + $0x408] sm:$0xff]
    %v375 = vld [vmem:[#allocation2 + $0x410] sm:$0xf]
    %v376 = vld [vmem:[#allocation2 + $0x414] sm:$0xff]
    %v377 = vld [vmem:[#allocation2 + $0x41c] sm:$0xff]
    %v378 = vld [vmem:[#allocation2 + $0x424] sm:$0xff]
    %v379 = vld [vmem:[#allocation2 + $0x42c] sm:$0xff]
    %v380 = vld [vmem:[#allocation2 + $0x434] sm:$0xf]
    %v381 = vld [vmem:[%s4] sm:$0xff]
    %v382 = vld [vmem:[%s4 + $0x8] sm:$0x1]
    %v385 = vperm.slane %v381, 0
    %v386 = vperm.slane %v381, 1
    %v387 = vperm.slane %v381, 2
    %v388 = vperm.slane %v381, 3
    %v389 = vperm.slane %v381, 4
    %v390 = vperm.slane %v381, 5
    %v391 = vperm.slane %v381, 6
    %v392 = vperm.slane %v381, 7
    %v393 = vperm.slane %v382, 0
    %v553 = vunpack.c.l.b16 %v231
    %v554 = vunpack.c.h.b16 %v231
    %v555 = vunpack.c.l.b16 %v232
    %v556 = vunpack.c.h.b16 %v232
    %v557 = vunpack.c.l.b16 %v233
    %v558 = vunpack.c.h.b16 %v233
    %v559 = vunpack.c.l.b16 %v234
    %v560 = vunpack.c.h.b16 %v234
    %v561 = vunpack.c.l.b16 %v235
    %v562 = vunpack.c.l.b16 %v236
    %v563 = vunpack.c.h.b16 %v236
    %v564 = vunpack.c.l.b16 %v237
    %v565 = vunpack.c.h.b16 %v237
    %v566 = vunpack.c.l.b16 %v238
    %v567 = vunpack.c.h.b16 %v238
    %v568 = vunpack.c.l.b16 %v239
    %v569 = vunpack.c.h.b16 %v239
    %v570 = vunpack.c.l.b16 %v240
    %v571 = vunpack.c.l.b16 %v241
    %v572 = vunpack.c.h.b16 %v241
    %v573 = vunpack.c.l.b16 %v242
    %v574 = vunpack.c.h.b16 %v242
    %v575 = vunpack.c.l.b16 %v243
    %v576 = vunpack.c.h.b16 %v243
    %v577 = vunpack.c.l.b16 %v244
    %v578 = vunpack.c.h.b16 %v244
    %v579 = vunpack.c.l.b16 %v245
    %v580 = vunpack.c.l.b16 %v246
    %v581 = vunpack.c.h.b16 %v246
    %v582 = vunpack.c.l.b16 %v247
    %v583 = vunpack.c.h.b16 %v247
    %v584 = vunpack.c.l.b16 %v248
    %v585 = vunpack.c.h.b16 %v248
    %v586 = vunpack.c.l.b16 %v249
    %v587 = vunpack.c.h.b16 %v249
    %v588 = vunpack.c.l.b16 %v250
    %v589 = vunpack.c.l.b16 %v251
    %v590 = vunpack.c.h.b16 %v251
    %v591 = vunpack.c.l.b16 %v252
    %v592 = vunpack.c.h.b16 %v252
    %v593 = vunpack.c.l.b16 %v253
    %v594 = vunpack.c.h.b16 %v253
    %v595 = vunpack.c.l.b16 %v254
    %v596 = vunpack.c.h.b16 %v254
    %v597 = vunpack.c.l.b16 %v255
    %v598 = vunpack.c.l.b16 %v256
    %v599 = vunpack.c.h.b16 %v256
    %v600 = vunpack.c.l.b16 %v257
    %v601 = vunpack.c.h.b16 %v257
    %v602 = vunpack.c.l.b16 %v258
    %v603 = vunpack.c.h.b16 %v258
    %v604 = vunpack.c.l.b16 %v259
    %v605 = vunpack.c.h.b16 %v259
    %v606 = vunpack.c.l.b16 %v260
    %v607 = vunpack.c.l.b16 %v261
    %v608 = vunpack.c.h.b16 %v261
    %v609 = vunpack.c.l.b16 %v262
    %v610 = vunpack.c.h.b16 %v262
    %v611 = vunpack.c.l.b16 %v263
    %v612 = vunpack.c.h.b16 %v263
    %v613 = vunpack.c.l.b16 %v264
    %v614 = vunpack.c.h.b16 %v264
    %v615 = vunpack.c.l.b16 %v265
    %v616 = vunpack.c.l.b16 %v266
    %v617 = vunpack.c.h.b16 %v266
    %v618 = vunpack.c.l.b16 %v267
    %v619 = vunpack.c.h.b16 %v267
    %v620 = vunpack.c.l.b16 %v268
    %v621 = vunpack.c.h.b16 %v268
    %v622 = vunpack.c.l.b16 %v269
    %v623 = vunpack.c.h.b16 %v269
    %v624 = vunpack.c.l.b16 %v270
    %v625 = vunpack.c.l.b16 %v271
    %v626 = vunpack.c.h.b16 %v271
    %v627 = vunpack.c.l.b16 %v272
    %v628 = vunpack.c.h.b16 %v272
    %v629 = vunpack.c.l.b16 %v273
    %v630 = vunpack.c.h.b16 %v273
    %v631 = vunpack.c.l.b16 %v274
    %v632 = vunpack.c.h.b16 %v274
    %v633 = vunpack.c.l.b16 %v275
    %v634 = vunpack.c.l.b16 %v276
    %v635 = vunpack.c.h.b16 %v276
    %v636 = vunpack.c.l.b16 %v277
    %v637 = vunpack.c.h.b16 %v277
    %v638 = vunpack.c.l.b16 %v278
    %v639 = vunpack.c.h.b16 %v278
    %v640 = vunpack.c.l.b16 %v279
    %v641 = vunpack.c.h.b16 %v279
    %v642 = vunpack.c.l.b16 %v280
    %v643 = vunpack.c.l.b16 %v281
    %v644 = vunpack.c.h.b16 %v281
    %v645 = vunpack.c.l.b16 %v282
    %v646 = vunpack.c.h.b16 %v282
    %v647 = vunpack.c.l.b16 %v283
    %v648 = vunpack.c.h.b16 %v283
    %v649 = vunpack.c.l.b16 %v284
    %v650 = vunpack.c.h.b16 %v284
    %v651 = vunpack.c.l.b16 %v285
    %v652 = vunpack.c.l.b16 %v286
    %v653 = vunpack.c.h.b16 %v286
    %v654 = vunpack.c.l.b16 %v287
    %v655 = vunpack.c.h.b16 %v287
    %v656 = vunpack.c.l.b16 %v288
    %v657 = vunpack.c.h.b16 %v288
    %v658 = vunpack.c.l.b16 %v289
    %v659 = vunpack.c.h.b16 %v289
    %v660 = vunpack.c.l.b16 %v290
    %v661 = vunpack.c.l.b16 %v291
    %v662 = vunpack.c.h.b16 %v291
    %v663 = vunpack.c.l.b16 %v292
    %v664 = vunpack.c.h.b16 %v292
    %v665 = vunpack.c.l.b16 %v293
    %v666 = vunpack.c.h.b16 %v293
    %v667 = vunpack.c.l.b16 %v294
    %v668 = vunpack.c.h.b16 %v294
    %v669 = vunpack.c.l.b16 %v295
    %v670 = vunpack.c.l.b16 %v296
    %v671 = vunpack.c.h.b16 %v296
    %v672 = vunpack.c.l.b16 %v297
    %v673 = vunpack.c.h.b16 %v297
    %v674 = vunpack.c.l.b16 %v298
    %v675 = vunpack.c.h.b16 %v298
    %v676 = vunpack.c.l.b16 %v299
    %v677 = vunpack.c.h.b16 %v299
    %v678 = vunpack.c.l.b16 %v300
    %v679 = vunpack.c.l.b16 %v301
    %v680 = vunpack.c.h.b16 %v301
    %v681 = vunpack.c.l.b16 %v302
    %v682 = vunpack.c.h.b16 %v302
    %v683 = vunpack.c.l.b16 %v303
    %v684 = vunpack.c.h.b16 %v303
    %v685 = vunpack.c.l.b16 %v304
    %v686 = vunpack.c.h.b16 %v304
    %v687 = vunpack.c.l.b16 %v305
    %v688 = vunpack.c.l.b16 %v306
    %v689 = vunpack.c.h.b16 %v306
    %v690 = vunpack.c.l.b16 %v307
    %v691 = vunpack.c.h.b16 %v307
    %v692 = vunpack.c.l.b16 %v308
    %v693 = vunpack.c.h.b16 %v308
    %v694 = vunpack.c.l.b16 %v309
    %v695 = vunpack.c.h.b16 %v309
    %v696 = vunpack.c.l.b16 %v310
    %v697 = vunpack.c.l.b16 %v311
    %v698 = vunpack.c.h.b16 %v311
    %v699 = vunpack.c.l.b16 %v312
    %v700 = vunpack.c.h.b16 %v312
    %v701 = vunpack.c.l.b16 %v313
    %v702 = vunpack.c.h.b16 %v313
    %v703 = vunpack.c.l.b16 %v314
    %v704 = vunpack.c.h.b16 %v314
    %v705 = vunpack.c.l.b16 %v315
    %v706 = vunpack.c.l.b16 %v316
    %v707 = vunpack.c.h.b16 %v316
    %v708 = vunpack.c.l.b16 %v317
    %v709 = vunpack.c.h.b16 %v317
    %v710 = vunpack.c.l.b16 %v318
    %v711 = vunpack.c.h.b16 %v318
    %v712 = vunpack.c.l.b16 %v319
    %v713 = vunpack.c.h.b16 %v319
    %v714 = vunpack.c.l.b16 %v320
    %v715 = vunpack.c.l.b16 %v321
    %v716 = vunpack.c.h.b16 %v321
    %v717 = vunpack.c.l.b16 %v322
    %v718 = vunpack.c.h.b16 %v322
    %v719 = vunpack.c.l.b16 %v323
    %v720 = vunpack.c.h.b16 %v323
    %v721 = vunpack.c.l.b16 %v324
    %v722 = vunpack.c.h.b16 %v324
    %v723 = vunpack.c.l.b16 %v325
    %v724 = vunpack.c.l.b16 %v326
    %v725 = vunpack.c.h.b16 %v326
    %v726 = vunpack.c.l.b16 %v327
    %v727 = vunpack.c.h.b16 %v327
    %v728 = vunpack.c.l.b16 %v328
    %v729 = vunpack.c.h.b16 %v328
    %v730 = vunpack.c.l.b16 %v329
    %v731 = vunpack.c.h.b16 %v329
    %v732 = vunpack.c.l.b16 %v330
    %v733 = vunpack.c.l.b16 %v331
    %v734 = vunpack.c.h.b16 %v331
    %v735 = vunpack.c.l.b16 %v332
    %v736 = vunpack.c.h.b16 %v332
    %v737 = vunpack.c.l.b16 %v333
    %v738 = vunpack.c.h.b16 %v333
    %v739 = vunpack.c.l.b16 %v334
    %v740 = vunpack.c.h.b16 %v334
    %v741 = vunpack.c.l.b16 %v335
    %v742 = vunpack.c.l.b16 %v336
    %v743 = vunpack.c.h.b16 %v336
    %v744 = vunpack.c.l.b16 %v337
    %v745 = vunpack.c.h.b16 %v337
    %v746 = vunpack.c.l.b16 %v338
    %v747 = vunpack.c.h.b16 %v338
    %v748 = vunpack.c.l.b16 %v339
    %v749 = vunpack.c.h.b16 %v339
    %v750 = vunpack.c.l.b16 %v340
    %v751 = vunpack.c.l.b16 %v341
    %v752 = vunpack.c.h.b16 %v341
    %v753 = vunpack.c.l.b16 %v342
    %v754 = vunpack.c.h.b16 %v342
    %v755 = vunpack.c.l.b16 %v343
    %v756 = vunpack.c.h.b16 %v343
    %v757 = vunpack.c.l.b16 %v344
    %v758 = vunpack.c.h.b16 %v344
    %v759 = vunpack.c.l.b16 %v345
    %v760 = vunpack.c.l.b16 %v346
    %v761 = vunpack.c.h.b16 %v346
    %v762 = vunpack.c.l.b16 %v347
    %v763 = vunpack.c.h.b16 %v347
    %v764 = vunpack.c.l.b16 %v348
    %v765 = vunpack.c.h.b16 %v348
    %v766 = vunpack.c.l.b16 %v349
    %v767 = vunpack.c.h.b16 %v349
    %v768 = vunpack.c.l.b16 %v350
    %v769 = vunpack.c.l.b16 %v351
    %v770 = vunpack.c.h.b16 %v351
    %v771 = vunpack.c.l.b16 %v352
    %v772 = vunpack.c.h.b16 %v352
    %v773 = vunpack.c.l.b16 %v353
    %v774 = vunpack.c.h.b16 %v353
    %v775 = vunpack.c.l.b16 %v354
    %v776 = vunpack.c.h.b16 %v354
    %v777 = vunpack.c.l.b16 %v355
    %v778 = vunpack.c.l.b16 %v356
    %v779 = vunpack.c.h.b16 %v356
    %v780 = vunpack.c.l.b16 %v357
    %v781 = vunpack.c.h.b16 %v357
    %v782 = vunpack.c.l.b16 %v358
    %v783 = vunpack.c.h.b16 %v358
    %v784 = vunpack.c.l.b16 %v359
    %v785 = vunpack.c.h.b16 %v359
    %v786 = vunpack.c.l.b16 %v360
    %v787 = vunpack.c.l.b16 %v361
    %v788 = vunpack.c.h.b16 %v361
    %v789 = vunpack.c.l.b16 %v362
    %v790 = vunpack.c.h.b16 %v362
    %v791 = vunpack.c.l.b16 %v363
    %v792 = vunpack.c.h.b16 %v363
    %v793 = vunpack.c.l.b16 %v364
    %v794 = vunpack.c.h.b16 %v364
    %v795 = vunpack.c.l.b16 %v365
    %v796 = vunpack.c.l.b16 %v366
    %v797 = vunpack.c.h.b16 %v366
    %v798 = vunpack.c.l.b16 %v367
    %v799 = vunpack.c.h.b16 %v367
    %v800 = vunpack.c.l.b16 %v368
    %v801 = vunpack.c.h.b16 %v368
    %v802 = vunpack.c.l.b16 %v369
    %v803 = vunpack.c.h.b16 %v369
    %v804 = vunpack.c.l.b16 %v370
    %v805 = vunpack.c.l.b16 %v371
    %v806 = vunpack.c.h.b16 %v371
    %v807 = vunpack.c.l.b16 %v372
    %v808 = vunpack.c.h.b16 %v372
    %v809 = vunpack.c.l.b16 %v373
    %v810 = vunpack.c.h.b16 %v373
    %v811 = vunpack.c.l.b16 %v374
    %v812 = vunpack.c.h.b16 %v374
    %v813 = vunpack.c.l.b16 %v375
    %v814 = vunpack.c.l.b16 %v376
    %v815 = vunpack.c.h.b16 %v376
    %v816 = vunpack.c.l.b16 %v377
    %v817 = vunpack.c.h.b16 %v377
    %v818 = vunpack.c.l.b16 %v378
    %v819 = vunpack.c.h.b16 %v378
    %v820 = vunpack.c.l.b16 %v379
    %v821 = vunpack.c.h.b16 %v379
    %v822 = vunpack.c.l.b16 %v380
    %v823 = vpack.c.b16 %v562, %v553
    %v824 = vpack.c.b16 %v563, %v554
    %v825 = vpack.c.b16 %v564, %v555
    %v826 = vpack.c.b16 %v565, %v556
    %v827 = vpack.c.b16 %v566, %v557
    %v828 = vpack.c.b16 %v567, %v558
    %v829 = vpack.c.b16 %v568, %v559
    %v830 = vpack.c.b16 %v569, %v560
    %v831 = vpack.c.b16 %v570, %v561
    %v832 = vpack.c.b16 %v580, %v571
    %v833 = vpack.c.b16 %v581, %v572
    %v834 = vpack.c.b16 %v582, %v573
    %v835 = vpack.c.b16 %v583, %v574
    %v836 = vpack.c.b16 %v584, %v575
    %v837 = vpack.c.b16 %v585, %v576
    %v838 = vpack.c.b16 %v586, %v577
    %v839 = vpack.c.b16 %v587, %v578
    %v840 = vpack.c.b16 %v588, %v579
    %v841 = vpack.c.b16 %v598, %v589
    %v842 = vpack.c.b16 %v599, %v590
    %v843 = vpack.c.b16 %v600, %v591
    %v844 = vpack.c.b16 %v601, %v592
    %v845 = vpack.c.b16 %v602, %v593
    %v846 = vpack.c.b16 %v603, %v594
    %v847 = vpack.c.b16 %v604, %v595
    %v848 = vpack.c.b16 %v605, %v596
    %v849 = vpack.c.b16 %v606, %v597
    %v850 = vpack.c.b16 %v616, %v607
    %v851 = vpack.c.b16 %v617, %v608
    %v852 = vpack.c.b16 %v618, %v609
    %v853 = vpack.c.b16 %v619, %v610
    %v854 = vpack.c.b16 %v620, %v611
    %v855 = vpack.c.b16 %v621, %v612
    %v856 = vpack.c.b16 %v622, %v613
    %v857 = vpack.c.b16 %v623, %v614
    %v858 = vpack.c.b16 %v624, %v615
    %v859 = vpack.c.b16 %v634, %v625
    %v860 = vpack.c.b16 %v635, %v626
    %v861 = vpack.c.b16 %v636, %v627
    %v862 = vpack.c.b16 %v637, %v628
    %v863 = vpack.c.b16 %v638, %v629
    %v864 = vpack.c.b16 %v639, %v630
    %v865 = vpack.c.b16 %v640, %v631
    %v866 = vpack.c.b16 %v641, %v632
    %v867 = vpack.c.b16 %v642, %v633
    %v868 = vpack.c.b16 %v652, %v643
    %v869 = vpack.c.b16 %v653, %v644
    %v870 = vpack.c.b16 %v654, %v645
    %v871 = vpack.c.b16 %v655, %v646
    %v872 = vpack.c.b16 %v656, %v647
    %v873 = vpack.c.b16 %v657, %v648
    %v874 = vpack.c.b16 %v658, %v649
    %v875 = vpack.c.b16 %v659, %v650
    %v876 = vpack.c.b16 %v660, %v651
    %v877 = vpack.c.b16 %v670, %v661
    %v878 = vpack.c.b16 %v671, %v662
    %v879 = vpack.c.b16 %v672, %v663
    %v880 = vpack.c.b16 %v673, %v664
    %v881 = vpack.c.b16 %v674, %v665
    %v882 = vpack.c.b16 %v675, %v666
    %v883 = vpack.c.b16 %v676, %v667
    %v884 = vpack.c.b16 %v677, %v668
    %v885 = vpack.c.b16 %v678, %v669
    %v886 = vpack.c.b16 %v688, %v679
    %v887 = vpack.c.b16 %v689, %v680
    %v888 = vpack.c.b16 %v690, %v681
    %v889 = vpack.c.b16 %v691, %v682
    %v890 = vpack.c.b16 %v692, %v683
    %v891 = vpack.c.b16 %v693, %v684
    %v892 = vpack.c.b16 %v694, %v685
    %v893 = vpack.c.b16 %v695, %v686
    %v894 = vpack.c.b16 %v696, %v687
    %v895 = vpack.c.b16 %v706, %v697
    %v896 = vpack.c.b16 %v707, %v698
    %v897 = vpack.c.b16 %v708, %v699
    %v898 = vpack.c.b16 %v709, %v700
    %v899 = vpack.c.b16 %v710, %v701
    %v900 = vpack.c.b16 %v711, %v702
    %v901 = vpack.c.b16 %v712, %v703
    %v902 = vpack.c.b16 %v713, %v704
    %v903 = vpack.c.b16 %v714, %v705
    %v904 = vpack.c.b16 %v724, %v715
    %v905 = vpack.c.b16 %v725, %v716
    %v906 = vpack.c.b16 %v726, %v717
    %v907 = vpack.c.b16 %v727, %v718
    %v908 = vpack.c.b16 %v728, %v719
    %v909 = vpack.c.b16 %v729, %v720
    %v910 = vpack.c.b16 %v730, %v721
    %v911 = vpack.c.b16 %v731, %v722
    %v912 = vpack.c.b16 %v732, %v723
    %v913 = vpack.c.b16 %v742, %v733
    %v914 = vpack.c.b16 %v743, %v734
    %v915 = vpack.c.b16 %v744, %v735
    %v916 = vpack.c.b16 %v745, %v736
    %v917 = vpack.c.b16 %v746, %v737
    %v918 = vpack.c.b16 %v747, %v738
    %v919 = vpack.c.b16 %v748, %v739
    %v920 = vpack.c.b16 %v749, %v740
    %v921 = vpack.c.b16 %v750, %v741
    %v922 = vpack.c.b16 %v760, %v751
    %v923 = vpack.c.b16 %v761, %v752
    %v924 = vpack.c.b16 %v762, %v753
    %v925 = vpack.c.b16 %v763, %v754
    %v926 = vpack.c.b16 %v764, %v755
    %v927 = vpack.c.b16 %v765, %v756
    %v928 = vpack.c.b16 %v766, %v757
    %v929 = vpack.c.b16 %v767, %v758
    %v930 = vpack.c.b16 %v768, %v759
    %v931 = vpack.c.b16 %v778, %v769
    %v932 = vpack.c.b16 %v779, %v770
    %v933 = vpack.c.b16 %v780, %v771
    %v934 = vpack.c.b16 %v781, %v772
    %v935 = vpack.c.b16 %v782, %v773
    %v936 = vpack.c.b16 %v783, %v774
    %v937 = vpack.c.b16 %v784, %v775
    %v938 = vpack.c.b16 %v785, %v776
    %v939 = vpack.c.b16 %v786, %v777
    %v940 = vpack.c.b16 %v796, %v787
    %v941 = vpack.c.b16 %v797, %v788
    %v942 = vpack.c.b16 %v798, %v789
    %v943 = vpack.c.b16 %v799, %v790
    %v944 = vpack.c.b16 %v800, %v791
    %v945 = vpack.c.b16 %v801, %v792
    %v946 = vpack.c.b16 %v802, %v793
    %v947 = vpack.c.b16 %v803, %v794
    %v948 = vpack.c.b16 %v804, %v795
    %v949 = vpack.c.b16 %v814, %v805
    %v950 = vpack.c.b16 %v815, %v806
    %v951 = vpack.c.b16 %v816, %v807
    %v952 = vpack.c.b16 %v817, %v808
    %v953 = vpack.c.b16 %v818, %v809
    %v954 = vpack.c.b16 %v819, %v810
    %v955 = vpack.c.b16 %v820, %v811
    %v956 = vpack.c.b16 %v821, %v812
    %v957 = vpack.c.b16 %v822, %v813
    %vm1093 = vcmask 916480
    %v1095 = vsel %vm1093, %v230, 0
    %1097 = vmatpush.bf16.msra.mxu0 %v886
    %1098 = vmatpush.bf16.msra.mxu0 %v877
    %1099 = vmatpush.bf16.msra.mxu0 %v868
    %1100 = vmatpush.bf16.msra.mxu0 %v859
    %1101 = vmatpush.bf16.msra.mxu0 %v850
    %1102 = vmatpush.bf16.msra.mxu0 %v841
    %1103 = vmatpush.bf16.msra.mxu0 %v832
    %1104 = vmatpush.bf16.msra.mxu0 %v823
    %1105 = vmatmul.bf16.gmra.mxu0 %v229
    %v1106 = vpop.f32.mrf.mxu0
    %v1107 = vadd.f32 %v385, %v1106
    %v1108 = vpop.f32.mrf.mxu0
    %v1109 = vadd.f32 %v385, %v1108
    %1110 = vdwg.mxu0
    %1111 = vmatpush.bf16.msra.mxu0 0
    %1112 = vmatpush.bf16.msra.mxu0 %v949
    %1113 = vmatpush.bf16.msra.mxu0 %v940
    %1114 = vmatpush.bf16.msra.mxu0 %v931
    %1115 = vmatpush.bf16.msra.mxu0 %v922
    %1116 = vmatpush.bf16.msra.mxu0 %v913
    %1117 = vmatpush.bf16.msra.mxu0 %v904
    %1118 = vmatpush.bf16.msra.mxu0 %v895
    %1119 = vmatmul.bf16.gmra.mxu0 %v1095
    %v1120 = vpop.f32.mrf.mxu0
    %v1121 = vadd.f32 %v1107, %v1120
    %v1122 = vpop.f32.mrf.mxu0
    %v1123 = vadd.f32 %v1109, %v1122
    %1124 = vdwg.mxu0
    %1125 = vmatpush.bf16.msra.mxu0 %v887
    %1126 = vmatpush.bf16.msra.mxu0 %v878
    %1127 = vmatpush.bf16.msra.mxu0 %v869
    %1128 = vmatpush.bf16.msra.mxu0 %v860
    %1129 = vmatpush.bf16.msra.mxu0 %v851
    %1130 = vmatpush.bf16.msra.mxu0 %v842
    %1131 = vmatpush.bf16.msra.mxu0 %v833
    %1132 = vmatpush.bf16.msra.mxu0 %v824
    %1133 = vmatmul.bf16.gmra.mxu0 %v229
    %v1134 = vpop.f32.mrf.mxu0
    %v1135 = vadd.f32 %v386, %v1134
    %v1136 = vpop.f32.mrf.mxu0
    %v1137 = vadd.f32 %v386, %v1136
    %1138 = vdwg.mxu0
    %1139 = vmatpush.bf16.msra.mxu0 0
    %1140 = vmatpush.bf16.msra.mxu0 %v950
    %1141 = vmatpush.bf16.msra.mxu0 %v941
    %1142 = vmatpush.bf16.msra.mxu0 %v932
    %1143 = vmatpush.bf16.msra.mxu0 %v923
    %1144 = vmatpush.bf16.msra.mxu0 %v914
    %1145 = vmatpush.bf16.msra.mxu0 %v905
    %1146 = vmatpush.bf16.msra.mxu0 %v896
    %1147 = vmatmul.bf16.gmra.mxu0 %v1095
    %v1148 = vpop.f32.mrf.mxu0
    %v1149 = vadd.f32 %v1135, %v1148
    %v1150 = vpop.f32.mrf.mxu0
    %v1151 = vadd.f32 %v1137, %v1150
    %1152 = vdwg.mxu0
    %1153 = vmatpush.bf16.msra.mxu0 %v888
    %1154 = vmatpush.bf16.msra.mxu0 %v879
    %1155 = vmatpush.bf16.msra.mxu0 %v870
    %1156 = vmatpush.bf16.msra.mxu0 %v861
    %1157 = vmatpush.bf16.msra.mxu0 %v852
    %1158 = vmatpush.bf16.msra.mxu0 %v843
    %1159 = vmatpush.bf16.msra.mxu0 %v834
    %1160 = vmatpush.bf16.msra.mxu0 %v825
    %1161 = vmatmul.bf16.gmra.mxu0 %v229
    %v1162 = vpop.f32.mrf.mxu0
    %v1163 = vadd.f32 %v387, %v1162
    %v1164 = vpop.f32.mrf.mxu0
    %v1165 = vadd.f32 %v387, %v1164
    %1166 = vdwg.mxu0
    %1167 = vmatpush.bf16.msra.mxu0 0
    %1168 = vmatpush.bf16.msra.mxu0 %v951
    %1169 = vmatpush.bf16.msra.mxu0 %v942
    %1170 = vmatpush.bf16.msra.mxu0 %v933
    %1171 = vmatpush.bf16.msra.mxu0 %v924
    %1172 = vmatpush.bf16.msra.mxu0 %v915
    %1173 = vmatpush.bf16.msra.mxu0 %v906
    %1174 = vmatpush.bf16.msra.mxu0 %v897
    %1175 = vmatmul.bf16.gmra.mxu0 %v1095
    %v1176 = vpop.f32.mrf.mxu0
    %v1177 = vadd.f32 %v1163, %v1176
    %v1178 = vpop.f32.mrf.mxu0
    %v1179 = vadd.f32 %v1165, %v1178
    %1180 = vdwg.mxu0
    %1181 = vmatpush.bf16.msra.mxu0 %v889
    %1182 = vmatpush.bf16.msra.mxu0 %v880
    %1183 = vmatpush.bf16.msra.mxu0 %v871
    %1184 = vmatpush.bf16.msra.mxu0 %v862
    %1185 = vmatpush.bf16.msra.mxu0 %v853
    %1186 = vmatpush.bf16.msra.mxu0 %v844
    %1187 = vmatpush.bf16.msra.mxu0 %v835
    %1188 = vmatpush.bf16.msra.mxu0 %v826
    %1189 = vmatmul.bf16.gmra.mxu0 %v229
    %v1190 = vpop.f32.mrf.mxu0
    %v1191 = vadd.f32 %v388, %v1190
    %v1192 = vpop.f32.mrf.mxu0
    %v1193 = vadd.f32 %v388, %v1192
    %1194 = vdwg.mxu0
    %1195 = vmatpush.bf16.msra.mxu0 0
    %1196 = vmatpush.bf16.msra.mxu0 %v952
    %1197 = vmatpush.bf16.msra.mxu0 %v943
    %1198 = vmatpush.bf16.msra.mxu0 %v934
    %1199 = vmatpush.bf16.msra.mxu0 %v925
    %1200 = vmatpush.bf16.msra.mxu0 %v916
    %1201 = vmatpush.bf16.msra.mxu0 %v907
    %1202 = vmatpush.bf16.msra.mxu0 %v898
    %1203 = vmatmul.bf16.gmra.mxu0 %v1095
    %v1204 = vpop.f32.mrf.mxu0
    %v1205 = vadd.f32 %v1191, %v1204
    %v1206 = vpop.f32.mrf.mxu0
    %v1207 = vadd.f32 %v1193, %v1206
    %1208 = vdwg.mxu0
    %1209 = vmatpush.bf16.msra.mxu0 %v890
    %1210 = vmatpush.bf16.msra.mxu0 %v881
    %1211 = vmatpush.bf16.msra.mxu0 %v872
    %1212 = vmatpush.bf16.msra.mxu0 %v863
    %1213 = vmatpush.bf16.msra.mxu0 %v854
    %1214 = vmatpush.bf16.msra.mxu0 %v845
    %1215 = vmatpush.bf16.msra.mxu0 %v836
    %1216 = vmatpush.bf16.msra.mxu0 %v827
    %1217 = vmatmul.bf16.gmra.mxu0 %v229
    %v1218 = vpop.f32.mrf.mxu0
    %v1219 = vadd.f32 %v389, %v1218
    %v1220 = vpop.f32.mrf.mxu0
    %v1221 = vadd.f32 %v389, %v1220
    %1222 = vdwg.mxu0
    %1223 = vmatpush.bf16.msra.mxu0 0
    %1224 = vmatpush.bf16.msra.mxu0 %v953
    %1225 = vmatpush.bf16.msra.mxu0 %v944
    %1226 = vmatpush.bf16.msra.mxu0 %v935
    %1227 = vmatpush.bf16.msra.mxu0 %v926
    %1228 = vmatpush.bf16.msra.mxu0 %v917
    %1229 = vmatpush.bf16.msra.mxu0 %v908
    %1230 = vmatpush.bf16.msra.mxu0 %v899
    %1231 = vmatmul.bf16.gmra.mxu0 %v1095
    %v1232 = vpop.f32.mrf.mxu0
    %v1233 = vadd.f32 %v1219, %v1232
    %v1234 = vpop.f32.mrf.mxu0
    %v1235 = vadd.f32 %v1221, %v1234
    %1236 = vdwg.mxu0
    %1237 = vmatpush.bf16.msra.mxu0 %v891
    %1238 = vmatpush.bf16.msra.mxu0 %v882
    %1239 = vmatpush.bf16.msra.mxu0 %v873
    %1240 = vmatpush.bf16.msra.mxu0 %v864
    %1241 = vmatpush.bf16.msra.mxu0 %v855
    %1242 = vmatpush.bf16.msra.mxu0 %v846
    %1243 = vmatpush.bf16.msra.mxu0 %v837
    %1244 = vmatpush.bf16.msra.mxu0 %v828
    %1245 = vmatmul.bf16.gmra.mxu0 %v229
    %v1246 = vpop.f32.mrf.mxu0
    %v1247 = vadd.f32 %v390, %v1246
    %v1248 = vpop.f32.mrf.mxu0
    %v1249 = vadd.f32 %v390, %v1248
    %1250 = vdwg.mxu0
    %1251 = vmatpush.bf16.msra.mxu0 0
    %1252 = vmatpush.bf16.msra.mxu0 %v954
    %1253 = vmatpush.bf16.msra.mxu0 %v945
    %1254 = vmatpush.bf16.msra.mxu0 %v936
    %1255 = vmatpush.bf16.msra.mxu0 %v927
    %1256 = vmatpush.bf16.msra.mxu0 %v918
    %1257 = vmatpush.bf16.msra.mxu0 %v909
    %1258 = vmatpush.bf16.msra.mxu0 %v900
    %1259 = vmatmul.bf16.gmra.mxu0 %v1095
    %v1260 = vpop.f32.mrf.mxu0
    %v1261 = vadd.f32 %v1247, %v1260
    %v1262 = vpop.f32.mrf.mxu0
    %v1263 = vadd.f32 %v1249, %v1262
    %1264 = vdwg.mxu0
    %1265 = vmatpush.bf16.msra.mxu0 %v892
    %1266 = vmatpush.bf16.msra.mxu0 %v883
    %1267 = vmatpush.bf16.msra.mxu0 %v874
    %1268 = vmatpush.bf16.msra.mxu0 %v865
    %1269 = vmatpush.bf16.msra.mxu0 %v856
    %1270 = vmatpush.bf16.msra.mxu0 %v847
    %1271 = vmatpush.bf16.msra.mxu0 %v838
    %1272 = vmatpush.bf16.msra.mxu0 %v829
    %1273 = vmatmul.bf16.gmra.mxu0 %v229
    %v1274 = vpop.f32.mrf.mxu0
    %v1275 = vadd.f32 %v391, %v1274
    %v1276 = vpop.f32.mrf.mxu0
    %v1277 = vadd.f32 %v391, %v1276
    %1278 = vdwg.mxu0
    %1279 = vmatpush.bf16.msra.mxu0 0
    %1280 = vmatpush.bf16.msra.mxu0 %v955
    %1281 = vmatpush.bf16.msra.mxu0 %v946
    %1282 = vmatpush.bf16.msra.mxu0 %v937
    %1283 = vmatpush.bf16.msra.mxu0 %v928
    %1284 = vmatpush.bf16.msra.mxu0 %v919
    %1285 = vmatpush.bf16.msra.mxu0 %v910
    %1286 = vmatpush.bf16.msra.mxu0 %v901
    %1287 = vmatmul.bf16.gmra.mxu0 %v1095
    %v1288 = vpop.f32.mrf.mxu0
    %v1289 = vadd.f32 %v1275, %v1288
    %v1290 = vpop.f32.mrf.mxu0
    %v1291 = vadd.f32 %v1277, %v1290
    %1292 = vdwg.mxu0
    %1293 = vmatpush.bf16.msra.mxu0 %v893
    %1294 = vmatpush.bf16.msra.mxu0 %v884
    %1295 = vmatpush.bf16.msra.mxu0 %v875
    %1296 = vmatpush.bf16.msra.mxu0 %v866
    %1297 = vmatpush.bf16.msra.mxu0 %v857
    %1298 = vmatpush.bf16.msra.mxu0 %v848
    %1299 = vmatpush.bf16.msra.mxu0 %v839
    %1300 = vmatpush.bf16.msra.mxu0 %v830
    %1301 = vmatmul.bf16.gmra.mxu0 %v229
    %v1302 = vpop.f32.mrf.mxu0
    %v1303 = vadd.f32 %v392, %v1302
    %v1304 = vpop.f32.mrf.mxu0
    %v1305 = vadd.f32 %v392, %v1304
    %1306 = vdwg.mxu0
    %1307 = vmatpush.bf16.msra.mxu0 0
    %1308 = vmatpush.bf16.msra.mxu0 %v956
    %1309 = vmatpush.bf16.msra.mxu0 %v947
    %1310 = vmatpush.bf16.msra.mxu0 %v938
    %1311 = vmatpush.bf16.msra.mxu0 %v929
    %1312 = vmatpush.bf16.msra.mxu0 %v920
    %1313 = vmatpush.bf16.msra.mxu0 %v911
    %1314 = vmatpush.bf16.msra.mxu0 %v902
    %1315 = vmatmul.bf16.gmra.mxu0 %v1095
    %v1316 = vpop.f32.mrf.mxu0
    %v1317 = vadd.f32 %v1303, %v1316
    %v1318 = vpop.f32.mrf.mxu0
    %v1319 = vadd.f32 %v1305, %v1318
    %1320 = vdwg.mxu0
    %1321 = vmatpush.bf16.msra.mxu0 %v894
    %1322 = vmatpush.bf16.msra.mxu0 %v885
    %1323 = vmatpush.bf16.msra.mxu0 %v876
    %1324 = vmatpush.bf16.msra.mxu0 %v867
    %1325 = vmatpush.bf16.msra.mxu0 %v858
    %1326 = vmatpush.bf16.msra.mxu0 %v849
    %1327 = vmatpush.bf16.msra.mxu0 %v840
    %1328 = vmatpush.bf16.msra.mxu0 %v831
    %1329 = vmatmul.bf16.gmra.mxu0 %v229
    %v1330 = vpop.f32.mrf.mxu0
    %v1331 = vadd.f32 %v393, %v1330
    %v1332 = vpop.f32.mrf.mxu0
    %v1333 = vadd.f32 %v393, %v1332
    %1334 = vdwg.mxu0
    %1335 = vmatpush.bf16.msra.mxu0 0
    %1336 = vmatpush.bf16.msra.mxu0 %v957
    %1337 = vmatpush.bf16.msra.mxu0 %v948
    %1338 = vmatpush.bf16.msra.mxu0 %v939
    %1339 = vmatpush.bf16.msra.mxu0 %v930
    %1340 = vmatpush.bf16.msra.mxu0 %v921
    %1341 = vmatpush.bf16.msra.mxu0 %v912
    %1342 = vmatpush.bf16.msra.mxu0 %v903
    %1343 = vmatmul.bf16.gmra.mxu0 %v1095
    %v1344 = vpop.f32.mrf.mxu0
    %v1345 = vadd.f32 %v1331, %v1344
    %v1346 = vpop.f32.mrf.mxu0
    %v1347 = vadd.f32 %v1333, %v1346
    %1348 = vdwg.mxu0
    %v1349 = vpack.c.bf16 %v1121, %v1121
    %v1350 = vpack.c.bf16 %v1123, %v1123
    %v1351 = vpack.c.bf16 %v1205, %v1205
    %v1352 = vpack.c.bf16 %v1207, %v1207
    %1353 = vmatpush.bf16.xpose.msra.mxu0 0
    %1354 = vmatpush.bf16.xpose.msra.mxu0 0
    %1355 = vmatpush.bf16.xpose.msra.mxu0 0
    %1356 = vmatpush.bf16.xpose.msra.mxu0 0
    %1357 = vmatpush.bf16.xpose.msra.mxu0 0
    %1358 = vmatpush.bf16.xpose.msra.mxu0 0
    %1359 = vmatpush.bf16.xpose.msra.mxu0 0
    %1360 = vmatpush.bf16.xpose.msra.mxu0 %v1351
    %1361 = vmatmul.bf16.gmra.mxu0 %v1349
    %v1362 = vpop.f32.mrf.mxu0
    %v1363 = vadd.f32 0.0, %v1362
    %v1364 = vpop.f32.mrf.mxu0
    %1365 = vdwg.mxu0
    %1366 = vmatpush.bf16.xpose.msra.mxu0 0
    %1367 = vmatpush.bf16.xpose.msra.mxu0 0
    %1368 = vmatpush.bf16.xpose.msra.mxu0 0
    %1369 = vmatpush.bf16.xpose.msra.mxu0 0
    %1370 = vmatpush.bf16.xpose.msra.mxu0 0
    %1371 = vmatpush.bf16.xpose.msra.mxu0 0
    %1372 = vmatpush.bf16.xpose.msra.mxu0 0
    %1373 = vmatpush.bf16.xpose.msra.mxu0 %v1352
    %1374 = vmatmul.bf16.gmra.mxu0 %v1350
    %v1375 = vpop.f32.mrf.mxu0
    %v1376 = vadd.f32 0.0, %v1375
    %v1377 = vpop.f32.mrf.mxu0
    %1378 = vdwg.mxu0
    %v1379 = vmul.f32 %v1363, 0.1118034
    %v1380 = vmul.f32 %v1376, 0.1118034
    %vm1381 = vcmask 64512
    %v1382 = vsel %vm1381, %v1379, -inf
    %1383 = vmax.xlane.f32.xlu0 %v1382
    %v1384 = vpop.xlane.xlu0 %1383
    %v1385 = vsel %vm1381, %v1380, -inf
    %1386 = vmax.xlane.f32.xlu0 %v1385
    %v1387 = vpop.xlane.xlu0 %1386
    %v1388 = vsub.f32 %v1379, %v1384
    %v1389 = vsub.f32 %v1380, %v1387
    %v1390 = vmul.f32 %v1388, 1.442695
    %v1391 = vpow.pop %v1390
    %v1392 = vmul.f32 %v1389, 1.442695
    %v1393 = vpow.pop %v1392
    %v1394 = vsel %vm1381, %v1391, 0.0
    %1395 = vadd.xlane.f32.xlu0 %v1394
    %v1396 = vpop.xlane.xlu0 %1395
    %v1397 = vsel %vm1381, %v1393, 0.0
    %1398 = vadd.xlane.f32.xlu0 %v1397
    %v1399 = vpop.xlane.xlu0 %1398
    %v1400 = vrcp.pop %v1396
    %v1401 = vrcp.pop %v1399
    %v1402 = vmul.f32 %v1391, %v1400
    %v1403 = vmul.f32 %v1393, %v1401
    %v1404 = vpack.c.bf16 %v1402, %v1402
    %v1405 = vpack.c.bf16 %v1403, %v1403
    %v1406 = vpack.c.bf16 %v1289, %v1289
    %v1407 = vpack.c.bf16 %v1291, %v1291
    %v1409 = vsel %vm1381, %v1404, 0
    %vm1411 = vcmask 1043456
    %v1413 = vsel %vm1411, %v1406, 0
    %1415 = vmatpush.bf16.msra.mxu0 0
    %1416 = vmatpush.bf16.msra.mxu0 0
    %1417 = vmatpush.bf16.msra.mxu0 0
    %1418 = vmatpush.bf16.msra.mxu0 0
    %1419 = vmatpush.bf16.msra.mxu0 0
    %1420 = vmatpush.bf16.msra.mxu0 0
    %1421 = vmatpush.bf16.msra.mxu0 0
    %1422 = vmatpush.bf16.msra.mxu0 %v1413
    %1423 = vmatmul.bf16.gmra.mxu0 %v1409
    %v1424 = vpop.f32.mrf.mxu0
    %v1425 = vadd.f32 0.0, %v1424
    %v1426 = vpop.f32.mrf.mxu0
    %1427 = vdwg.mxu0
    %v1429 = vsel %vm1381, %v1405, 0
    %v1432 = vsel %vm1411, %v1407, 0
    %1434 = vmatpush.bf16.msra.mxu0 0
    %1435 = vmatpush.bf16.msra.mxu0 0
    %1436 = vmatpush.bf16.msra.mxu0 0
    %1437 = vmatpush.bf16.msra.mxu0 0
    %1438 = vmatpush.bf16.msra.mxu0 0
    %1439 = vmatpush.bf16.msra.mxu0 0
    %1440 = vmatpush.bf16.msra.mxu0 0
    %1441 = vmatpush.bf16.msra.mxu0 %v1432
    %1442 = vmatmul.bf16.gmra.mxu0 %v1429
    %v1443 = vpop.f32.mrf.mxu0
    %v1444 = vadd.f32 0.0, %v1443
    %v1445 = vpop.f32.mrf.mxu0
    %1446 = vdwg.mxu0
    %v1447 = vpack.c.bf16 %v1149, %v1149
    %v1448 = vpack.c.bf16 %v1151, %v1151
    %v1449 = vpack.c.bf16 %v1233, %v1233
    %v1450 = vpack.c.bf16 %v1235, %v1235
    %1451 = vmatpush.bf16.xpose.msra.mxu0 0
    %1452 = vmatpush.bf16.xpose.msra.mxu0 0
    %1453 = vmatpush.bf16.xpose.msra.mxu0 0
    %1454 = vmatpush.bf16.xpose.msra.mxu0 0
    %1455 = vmatpush.bf16.xpose.msra.mxu0 0
    %1456 = vmatpush.bf16.xpose.msra.mxu0 0
    %1457 = vmatpush.bf16.xpose.msra.mxu0 0
    %1458 = vmatpush.bf16.xpose.msra.mxu0 %v1449
    %1459 = vmatmul.bf16.gmra.mxu0 %v1447
    %v1460 = vpop.f32.mrf.mxu0
    %v1461 = vadd.f32 0.0, %v1460
    %v1462 = vpop.f32.mrf.mxu0
    %1463 = vdwg.mxu0
    %1464 = vmatpush.bf16.xpose.msra.mxu0 0
    %1465 = vmatpush.bf16.xpose.msra.mxu0 0
    %1466 = vmatpush.bf16.xpose.msra.mxu0 0
    %1467 = vmatpush.bf16.xpose.msra.mxu0 0
    %1468 = vmatpush.bf16.xpose.msra.mxu0 0
    %1469 = vmatpush.bf16.xpose.msra.mxu0 0
    %1470 = vmatpush.bf16.xpose.msra.mxu0 0
    %1471 = vmatpush.bf16.xpose.msra.mxu0 %v1450
    %1472 = vmatmul.bf16.gmra.mxu0 %v1448
    %v1473 = vpop.f32.mrf.mxu0
    %v1474 = vadd.f32 0.0, %v1473
    %v1475 = vpop.f32.mrf.mxu0
    %1476 = vdwg.mxu0
    %v1477 = vmul.f32 %v1461, 0.1118034
    %v1478 = vmul.f32 %v1474, 0.1118034
    %v1479 = vsel %vm1381, %v1477, -inf
    %1480 = vmax.xlane.f32.xlu0 %v1479
    %v1481 = vpop.xlane.xlu0 %1480
    %v1482 = vsel %vm1381, %v1478, -inf
    %1483 = vmax.xlane.f32.xlu0 %v1482
    %v1484 = vpop.xlane.xlu0 %1483
    %v1485 = vsub.f32 %v1477, %v1481
    %v1486 = vsub.f32 %v1478, %v1484
    %v1487 = vmul.f32 %v1485, 1.442695
    %v1488 = vpow.pop %v1487
    %v1489 = vmul.f32 %v1486, 1.442695
    %v1490 = vpow.pop %v1489
    %v1491 = vsel %vm1381, %v1488, 0.0
    %1492 = vadd.xlane.f32.xlu0 %v1491
    %v1493 = vpop.xlane.xlu0 %1492
    %v1494 = vsel %vm1381, %v1490, 0.0
    %1495 = vadd.xlane.f32.xlu0 %v1494
    %v1496 = vpop.xlane.xlu0 %1495
    %v1497 = vrcp.pop %v1493
    %v1498 = vrcp.pop %v1496
    %v1499 = vmul.f32 %v1488, %v1497
    %v1500 = vmul.f32 %v1490, %v1498
    %v1501 = vpack.c.bf16 %v1499, %v1499
    %v1502 = vpack.c.bf16 %v1500, %v1500
    %v1503 = vpack.c.bf16 %v1317, %v1317
    %v1504 = vpack.c.bf16 %v1319, %v1319
    %v1506 = vsel %vm1381, %v1501, 0
    %v1509 = vsel %vm1411, %v1503, 0
    %1511 = vmatpush.bf16.msra.mxu0 0
    %1512 = vmatpush.bf16.msra.mxu0 0
    %1513 = vmatpush.bf16.msra.mxu0 0
    %1514 = vmatpush.bf16.msra.mxu0 0
    %1515 = vmatpush.bf16.msra.mxu0 0
    %1516 = vmatpush.bf16.msra.mxu0 0
    %1517 = vmatpush.bf16.msra.mxu0 0
    %1518 = vmatpush.bf16.msra.mxu0 %v1509
    %1519 = vmatmul.bf16.gmra.mxu0 %v1506
    %v1520 = vpop.f32.mrf.mxu0
    %v1521 = vadd.f32 0.0, %v1520
    %v1522 = vpop.f32.mrf.mxu0
    %1523 = vdwg.mxu0
    %v1525 = vsel %vm1381, %v1502, 0
    %v1528 = vsel %vm1411, %v1504, 0
    %1530 = vmatpush.bf16.msra.mxu0 0
    %1531 = vmatpush.bf16.msra.mxu0 0
    %1532 = vmatpush.bf16.msra.mxu0 0
    %1533 = vmatpush.bf16.msra.mxu0 0
    %1534 = vmatpush.bf16.msra.mxu0 0
    %1535 = vmatpush.bf16.msra.mxu0 0
    %1536 = vmatpush.bf16.msra.mxu0 0
    %1537 = vmatpush.bf16.msra.mxu0 %v1528
    %1538 = vmatmul.bf16.gmra.mxu0 %v1525
    %v1539 = vpop.f32.mrf.mxu0
    %v1540 = vadd.f32 0.0, %v1539
    %v1541 = vpop.f32.mrf.mxu0
    %1542 = vdwg.mxu0
    %v1543 = vpack.c.bf16 %v1177, %v1177
    %v1544 = vpack.c.bf16 %v1179, %v1179
    %v1545 = vpack.c.bf16 %v1261, %v1261
    %v1546 = vpack.c.bf16 %v1263, %v1263
    %1547 = vmatpush.bf16.xpose.msra.mxu0 0
    %1548 = vmatpush.bf16.xpose.msra.mxu0 0
    %1549 = vmatpush.bf16.xpose.msra.mxu0 0
    %1550 = vmatpush.bf16.xpose.msra.mxu0 0
    %1551 = vmatpush.bf16.xpose.msra.mxu0 0
    %1552 = vmatpush.bf16.xpose.msra.mxu0 0
    %1553 = vmatpush.bf16.xpose.msra.mxu0 0
    %1554 = vmatpush.bf16.xpose.msra.mxu0 %v1545
    %1555 = vmatmul.bf16.gmra.mxu0 %v1543
    %v1556 = vpop.f32.mrf.mxu0
    %v1557 = vadd.f32 0.0, %v1556
    %v1558 = vpop.f32.mrf.mxu0
    %1559 = vdwg.mxu0
    %1560 = vmatpush.bf16.xpose.msra.mxu0 0
    %1561 = vmatpush.bf16.xpose.msra.mxu0 0
    %1562 = vmatpush.bf16.xpose.msra.mxu0 0
    %1563 = vmatpush.bf16.xpose.msra.mxu0 0
    %1564 = vmatpush.bf16.xpose.msra.mxu0 0
    %1565 = vmatpush.bf16.xpose.msra.mxu0 0
    %1566 = vmatpush.bf16.xpose.msra.mxu0 0
    %1567 = vmatpush.bf16.xpose.msra.mxu0 %v1546
    %1568 = vmatmul.bf16.gmra.mxu0 %v1544
    %v1569 = vpop.f32.mrf.mxu0
    %v1570 = vadd.f32 0.0, %v1569
    %v1571 = vpop.f32.mrf.mxu0
    %1572 = vdwg.mxu0
    %v1573 = vmul.f32 %v1557, 0.1118034
    %v1574 = vmul.f32 %v1570, 0.1118034
    %v1575 = vsel %vm1381, %v1573, -inf
    %1576 = vmax.xlane.f32.xlu0 %v1575
    %v1577 = vpop.xlane.xlu0 %1576
    %v1578 = vsel %vm1381, %v1574, -inf
    %1579 = vmax.xlane.f32.xlu0 %v1578
    %v1580 = vpop.xlane.xlu0 %1579
    %v1581 = vsub.f32 %v1573, %v1577
    %v1582 = vsub.f32 %v1574, %v1580
    %v1583 = vmul.f32 %v1581, 1.442695
    %v1584 = vpow.pop %v1583
    %v1585 = vmul.f32 %v1582, 1.442695
    %v1586 = vpow.pop %v1585
    %v1587 = vsel %vm1381, %v1584, 0.0
    %1588 = vadd.xlane.f32.xlu0 %v1587
    %v1589 = vpop.xlane.xlu0 %1588
    %v1590 = vsel %vm1381, %v1586, 0.0
    %1591 = vadd.xlane.f32.xlu0 %v1590
    %v1592 = vpop.xlane.xlu0 %1591
    %v1593 = vrcp.pop %v1589
    %v1594 = vrcp.pop %v1592
    %v1595 = vmul.f32 %v1584, %v1593
    %v1596 = vmul.f32 %v1586, %v1594
    %v1597 = vpack.c.bf16 %v1595, %v1595
    %v1598 = vpack.c.bf16 %v1596, %v1596
    %v1599 = vpack.c.bf16 %v1345, %v1345
    %v1600 = vpack.c.bf16 %v1347, %v1347
    %v1602 = vsel %vm1381, %v1597, 0
    %v1605 = vsel %vm1411, %v1599, 0
    %1607 = vmatpush.bf16.msra.mxu0 0
    %1608 = vmatpush.bf16.msra.mxu0 0
    %1609 = vmatpush.bf16.msra.mxu0 0
    %1610 = vmatpush.bf16.msra.mxu0 0
    %1611 = vmatpush.bf16.msra.mxu0 0
    %1612 = vmatpush.bf16.msra.mxu0 0
    %1613 = vmatpush.bf16.msra.mxu0 0
    %1614 = vmatpush.bf16.msra.mxu0 %v1605
    %1615 = vmatmul.bf16.gmra.mxu0 %v1602
    %v1616 = vpop.f32.mrf.mxu0
    %v1617 = vadd.f32 0.0, %v1616
    %v1618 = vpop.f32.mrf.mxu0
    %1619 = vdwg.mxu0
    %v1621 = vsel %vm1381, %v1598, 0
    %v1624 = vsel %vm1411, %v1600, 0
    %1626 = vmatpush.bf16.msra.mxu0 0
    %1627 = vmatpush.bf16.msra.mxu0 0
    %1628 = vmatpush.bf16.msra.mxu0 0
    %1629 = vmatpush.bf16.msra.mxu0 0
    %1630 = vmatpush.bf16.msra.mxu0 0
    %1631 = vmatpush.bf16.msra.mxu0 0
    %1632 = vmatpush.bf16.msra.mxu0 0
    %1633 = vmatpush.bf16.msra.mxu0 %v1624
    %1634 = vmatmul.bf16.gmra.mxu0 %v1621
    %v1635 = vpop.f32.mrf.mxu0
    %v1636 = vadd.f32 0.0, %v1635
    %v1637 = vpop.f32.mrf.mxu0
    %1638 = vdwg.mxu0
    %v1639 = vpack.c.bf16 %v1444, %v1425
    %v1640 = vpack.c.bf16 %v1540, %v1521
    %v1641 = vpack.c.bf16 %v1636, %v1617
    %v1642 = vld [vmem:[%s5] sm:$0xff]
    %v1643 = vld [vmem:[%s5 + $0x8] sm:$0xff]
    %v1644 = vld [vmem:[%s5 + $0x10] sm:$0xff]
    %v1645 = vld [vmem:[%s5 + $0x18] sm:$0xff]
    %v1646 = vld [vmem:[%s5 + $0x20] sm:$0xff]
    %v1647 = vld [vmem:[%s5 + $0x28] sm:$0xff]
    %v1648 = vld [vmem:[%s5 + $0x30] sm:$0xff]
    %v1649 = vld [vmem:[%s5 + $0x38] sm:$0xff]
    %v1650 = vld [vmem:[%s5 + $0x40] sm:$0xff]
    %v1651 = vld [vmem:[%s5 + $0x48] sm:$0xff]
    %v1652 = vld [vmem:[%s5 + $0x50] sm:$0xff]
    %v1653 = vld [vmem:[%s5 + $0x58] sm:$0xff]
    %v1654 = vld [vmem:[%s5 + $0x60] sm:$0xff]
    %v1655 = vld [vmem:[%s5 + $0x68] sm:$0xff]
    %v1656 = vld [vmem:[%s5 + $0x70] sm:$0xff]
    %v1657 = vld [vmem:[%s5 + $0x78] sm:$0xff]
    %v1658 = vld [vmem:[%s5 + $0x80] sm:$0xff]
    %v1659 = vld [vmem:[%s5 + $0x88] sm:$0xff]
    %v1660 = vld [vmem:[%s5 + $0x90] sm:$0xff]
    %v1661 = vld [vmem:[%s5 + $0x98] sm:$0xff]
    %v1662 = vld [vmem:[%s5 + $0xa0] sm:$0xff]
    %v1663 = vld [vmem:[%s5 + $0xa8] sm:$0xff]
    %v1664 = vld [vmem:[%s5 + $0xb0] sm:$0xff]
    %v1665 = vld [vmem:[%s5 + $0xb8] sm:$0xff]
    %v1666 = vld [vmem:[%s5 + $0xc0] sm:$0xff]
    %v1667 = vld [vmem:[%s5 + $0xc8] sm:$0xff]
    %v1668 = vld [vmem:[%s5 + $0xd0] sm:$0xff]
    %v1669 = vld [vmem:[%s5 + $0xd8] sm:$0xff]
    %v1670 = vld [vmem:[%s5 + $0xe0] sm:$0xff]
    %v1671 = vld [vmem:[%s5 + $0xe8] sm:$0xff]
    %v1672 = vld [vmem:[%s5 + $0xf0] sm:$0xff]
    %v1673 = vld [vmem:[%s5 + $0xf8] sm:$0xff]
    %v1674 = vld [vmem:[%s5 + $0x100] sm:$0xff]
    %v1675 = vld [vmem:[%s5 + $0x108] sm:$0xff]
    %v1676 = vld [vmem:[%s5 + $0x110] sm:$0xff]
    %v1677 = vld [vmem:[%s5 + $0x118] sm:$0xff]
    %v1678 = vld [vmem:[%s5 + $0x120] sm:$0xff]
    %v1679 = vld [vmem:[%s5 + $0x128] sm:$0xff]
    %v1680 = vld [vmem:[%s5 + $0x130] sm:$0xff]
    %v1681 = vld [vmem:[%s5 + $0x138] sm:$0xff]
    %v1682 = vld [vmem:[%s5 + $0x140] sm:$0xff]
    %v1683 = vld [vmem:[%s5 + $0x148] sm:$0xff]
    %v1684 = vld [vmem:[%s5 + $0x150] sm:$0xff]
    %v1685 = vld [vmem:[%s5 + $0x158] sm:$0xff]
    %v1686 = vld [vmem:[%s5 + $0x160] sm:$0xff]
    %v1687 = vld [vmem:[%s5 + $0x168] sm:$0xff]
    %v1688 = vld [vmem:[%s5 + $0x170] sm:$0xff]
    %v1689 = vld [vmem:[%s5 + $0x178] sm:$0xff]
    %v1690 = vld [vmem:[%s6] sm:$0x3]
    %v1692 = vperm.slane %v1690, 0
    %v1693 = vperm.slane %v1690, 1
    %v1744 = vunpack.c.l.b16 %v1642
    %v1745 = vunpack.c.h.b16 %v1642
    %v1746 = vunpack.c.l.b16 %v1643
    %v1747 = vunpack.c.h.b16 %v1643
    %v1748 = vunpack.c.l.b16 %v1644
    %v1749 = vunpack.c.h.b16 %v1644
    %v1750 = vunpack.c.l.b16 %v1645
    %v1751 = vunpack.c.h.b16 %v1645
    %v1752 = vunpack.c.l.b16 %v1646
    %v1753 = vunpack.c.h.b16 %v1646
    %v1754 = vunpack.c.l.b16 %v1647
    %v1755 = vunpack.c.h.b16 %v1647
    %v1756 = vunpack.c.l.b16 %v1648
    %v1757 = vunpack.c.h.b16 %v1648
    %v1758 = vunpack.c.l.b16 %v1649
    %v1759 = vunpack.c.h.b16 %v1649
    %v1760 = vunpack.c.l.b16 %v1650
    %v1761 = vunpack.c.h.b16 %v1650
    %v1762 = vunpack.c.l.b16 %v1651
    %v1763 = vunpack.c.h.b16 %v1651
    %v1764 = vunpack.c.l.b16 %v1652
    %v1765 = vunpack.c.h.b16 %v1652
    %v1766 = vunpack.c.l.b16 %v1653
    %v1767 = vunpack.c.h.b16 %v1653
    %v1768 = vunpack.c.l.b16 %v1654
    %v1769 = vunpack.c.h.b16 %v1654
    %v1770 = vunpack.c.l.b16 %v1655
    %v1771 = vunpack.c.h.b16 %v1655
    %v1772 = vunpack.c.l.b16 %v1656
    %v1773 = vunpack.c.h.b16 %v1656
    %v1774 = vunpack.c.l.b16 %v1657
    %v1775 = vunpack.c.h.b16 %v1657
    %v1776 = vunpack.c.l.b16 %v1658
    %v1777 = vunpack.c.h.b16 %v1658
    %v1778 = vunpack.c.l.b16 %v1659
    %v1779 = vunpack.c.h.b16 %v1659
    %v1780 = vunpack.c.l.b16 %v1660
    %v1781 = vunpack.c.h.b16 %v1660
    %v1782 = vunpack.c.l.b16 %v1661
    %v1783 = vunpack.c.h.b16 %v1661
    %v1784 = vunpack.c.l.b16 %v1662
    %v1785 = vunpack.c.h.b16 %v1662
    %v1786 = vunpack.c.l.b16 %v1663
    %v1787 = vunpack.c.h.b16 %v1663
    %v1788 = vunpack.c.l.b16 %v1664
    %v1789 = vunpack.c.h.b16 %v1664
    %v1790 = vunpack.c.l.b16 %v1665
    %v1791 = vunpack.c.h.b16 %v1665
    %v1792 = vunpack.c.l.b16 %v1666
    %v1793 = vunpack.c.h.b16 %v1666
    %v1794 = vunpack.c.l.b16 %v1667
    %v1795 = vunpack.c.h.b16 %v1667
    %v1796 = vunpack.c.l.b16 %v1668
    %v1797 = vunpack.c.h.b16 %v1668
    %v1798 = vunpack.c.l.b16 %v1669
    %v1799 = vunpack.c.h.b16 %v1669
    %v1800 = vunpack.c.l.b16 %v1670
    %v1801 = vunpack.c.h.b16 %v1670
    %v1802 = vunpack.c.l.b16 %v1671
    %v1803 = vunpack.c.h.b16 %v1671
    %v1804 = vunpack.c.l.b16 %v1672
    %v1805 = vunpack.c.h.b16 %v1672
    %v1806 = vunpack.c.l.b16 %v1673
    %v1807 = vunpack.c.h.b16 %v1673
    %v1808 = vunpack.c.l.b16 %v1674
    %v1809 = vunpack.c.h.b16 %v1674
    %v1810 = vunpack.c.l.b16 %v1675
    %v1811 = vunpack.c.h.b16 %v1675
    %v1812 = vunpack.c.l.b16 %v1676
    %v1813 = vunpack.c.h.b16 %v1676
    %v1814 = vunpack.c.l.b16 %v1677
    %v1815 = vunpack.c.h.b16 %v1677
    %v1816 = vunpack.c.l.b16 %v1678
    %v1817 = vunpack.c.h.b16 %v1678
    %v1818 = vunpack.c.l.b16 %v1679
    %v1819 = vunpack.c.h.b16 %v1679
    %v1820 = vunpack.c.l.b16 %v1680
    %v1821 = vunpack.c.h.b16 %v1680
    %v1822 = vunpack.c.l.b16 %v1681
    %v1823 = vunpack.c.h.b16 %v1681
    %v1824 = vunpack.c.l.b16 %v1682
    %v1825 = vunpack.c.h.b16 %v1682
    %v1826 = vunpack.c.l.b16 %v1683
    %v1827 = vunpack.c.h.b16 %v1683
    %v1828 = vunpack.c.l.b16 %v1684
    %v1829 = vunpack.c.h.b16 %v1684
    %v1830 = vunpack.c.l.b16 %v1685
    %v1831 = vunpack.c.h.b16 %v1685
    %v1832 = vunpack.c.l.b16 %v1686
    %v1833 = vunpack.c.h.b16 %v1686
    %v1834 = vunpack.c.l.b16 %v1687
    %v1835 = vunpack.c.h.b16 %v1687
    %v1836 = vunpack.c.l.b16 %v1688
    %v1837 = vunpack.c.h.b16 %v1688
    %v1838 = vunpack.c.l.b16 %v1689
    %v1839 = vunpack.c.h.b16 %v1689
    %v1840 = vpack.c.b16 %v1746, %v1744
    %v1841 = vpack.c.b16 %v1747, %v1745
    %v1842 = vpack.c.b16 %v1750, %v1748
    %v1843 = vpack.c.b16 %v1751, %v1749
    %v1844 = vpack.c.b16 %v1754, %v1752
    %v1845 = vpack.c.b16 %v1755, %v1753
    %v1846 = vpack.c.b16 %v1758, %v1756
    %v1847 = vpack.c.b16 %v1759, %v1757
    %v1848 = vpack.c.b16 %v1762, %v1760
    %v1849 = vpack.c.b16 %v1763, %v1761
    %v1850 = vpack.c.b16 %v1766, %v1764
    %v1851 = vpack.c.b16 %v1767, %v1765
    %v1852 = vpack.c.b16 %v1770, %v1768
    %v1853 = vpack.c.b16 %v1771, %v1769
    %v1854 = vpack.c.b16 %v1774, %v1772
    %v1855 = vpack.c.b16 %v1775, %v1773
    %v1856 = vpack.c.b16 %v1778, %v1776
    %v1857 = vpack.c.b16 %v1779, %v1777
    %v1858 = vpack.c.b16 %v1782, %v1780
    %v1859 = vpack.c.b16 %v1783, %v1781
    %v1860 = vpack.c.b16 %v1786, %v1784
    %v1861 = vpack.c.b16 %v1787, %v1785
    %v1862 = vpack.c.b16 %v1790, %v1788
    %v1863 = vpack.c.b16 %v1791, %v1789
    %v1864 = vpack.c.b16 %v1794, %v1792
    %v1865 = vpack.c.b16 %v1795, %v1793
    %v1866 = vpack.c.b16 %v1798, %v1796
    %v1867 = vpack.c.b16 %v1799, %v1797
    %v1868 = vpack.c.b16 %v1802, %v1800
    %v1869 = vpack.c.b16 %v1803, %v1801
    %v1870 = vpack.c.b16 %v1806, %v1804
    %v1871 = vpack.c.b16 %v1807, %v1805
    %v1872 = vpack.c.b16 %v1810, %v1808
    %v1873 = vpack.c.b16 %v1811, %v1809
    %v1874 = vpack.c.b16 %v1814, %v1812
    %v1875 = vpack.c.b16 %v1815, %v1813
    %v1876 = vpack.c.b16 %v1818, %v1816
    %v1877 = vpack.c.b16 %v1819, %v1817
    %v1878 = vpack.c.b16 %v1822, %v1820
    %v1879 = vpack.c.b16 %v1823, %v1821
    %v1880 = vpack.c.b16 %v1826, %v1824
    %v1881 = vpack.c.b16 %v1827, %v1825
    %v1882 = vpack.c.b16 %v1830, %v1828
    %v1883 = vpack.c.b16 %v1831, %v1829
    %v1884 = vpack.c.b16 %v1834, %v1832
    %v1885 = vpack.c.b16 %v1835, %v1833
    %v1886 = vpack.c.b16 %v1838, %v1836
    %v1887 = vpack.c.b16 %v1839, %v1837
    %1936 = vmatpush.bf16.msra.mxu0 %v1854
    %1937 = vmatpush.bf16.msra.mxu0 %v1852
    %1938 = vmatpush.bf16.msra.mxu0 %v1850
    %1939 = vmatpush.bf16.msra.mxu0 %v1848
    %1940 = vmatpush.bf16.msra.mxu0 %v1846
    %1941 = vmatpush.bf16.msra.mxu0 %v1844
    %1942 = vmatpush.bf16.msra.mxu0 %v1842
    %1943 = vmatpush.bf16.msra.mxu0 %v1840
    %1944 = vmatmul.bf16.gmra.mxu0 %v1639
    %v1945 = vpop.f32.mrf.mxu0
    %v1946 = vadd.f32 %v1692, %v1945
    %v1947 = vpop.f32.mrf.mxu0
    %v1948 = vadd.f32 %v1692, %v1947
    %1949 = vdwg.mxu0
    %1950 = vmatpush.bf16.msra.mxu0 %v1870
    %1951 = vmatpush.bf16.msra.mxu0 %v1868
    %1952 = vmatpush.bf16.msra.mxu0 %v1866
    %1953 = vmatpush.bf16.msra.mxu0 %v1864
    %1954 = vmatpush.bf16.msra.mxu0 %v1862
    %1955 = vmatpush.bf16.msra.mxu0 %v1860
    %1956 = vmatpush.bf16.msra.mxu0 %v1858
    %1957 = vmatpush.bf16.msra.mxu0 %v1856
    %1958 = vmatmul.bf16.gmra.mxu0 %v1640
    %v1959 = vpop.f32.mrf.mxu0
    %v1960 = vadd.f32 %v1946, %v1959
    %v1961 = vpop.f32.mrf.mxu0
    %v1962 = vadd.f32 %v1948, %v1961
    %1963 = vdwg.mxu0
    %1964 = vmatpush.bf16.msra.mxu0 %v1886
    %1965 = vmatpush.bf16.msra.mxu0 %v1884
    %1966 = vmatpush.bf16.msra.mxu0 %v1882
    %1967 = vmatpush.bf16.msra.mxu0 %v1880
    %1968 = vmatpush.bf16.msra.mxu0 %v1878
    %1969 = vmatpush.bf16.msra.mxu0 %v1876
    %1970 = vmatpush.bf16.msra.mxu0 %v1874
    %1971 = vmatpush.bf16.msra.mxu0 %v1872
    %1972 = vmatmul.bf16.gmra.mxu0 %v1641
    %v1973 = vpop.f32.mrf.mxu0
    %v1974 = vadd.f32 %v1960, %v1973
    %v1975 = vpop.f32.mrf.mxu0
    %v1976 = vadd.f32 %v1962, %v1975
    %1977 = vdwg.mxu0
    %1978 = vmatpush.bf16.msra.mxu0 %v1855
    %1979 = vmatpush.bf16.msra.mxu0 %v1853
    %1980 = vmatpush.bf16.msra.mxu0 %v1851
    %1981 = vmatpush.bf16.msra.mxu0 %v1849
    %1982 = vmatpush.bf16.msra.mxu0 %v1847
    %1983 = vmatpush.bf16.msra.mxu0 %v1845
    %1984 = vmatpush.bf16.msra.mxu0 %v1843
    %1985 = vmatpush.bf16.msra.mxu0 %v1841
    %1986 = vmatmul.bf16.gmra.mxu0 %v1639
    %v1987 = vpop.f32.mrf.mxu0
    %v1988 = vadd.f32 %v1693, %v1987
    %v1989 = vpop.f32.mrf.mxu0
    %v1990 = vadd.f32 %v1693, %v1989
    %1991 = vdwg.mxu0
    %1992 = vmatpush.bf16.msra.mxu0 %v1871
    %1993 = vmatpush.bf16.msra.mxu0 %v1869
    %1994 = vmatpush.bf16.msra.mxu0 %v1867
    %1995 = vmatpush.bf16.msra.mxu0 %v1865
    %1996 = vmatpush.bf16.msra.mxu0 %v1863
    %1997 = vmatpush.bf16.msra.mxu0 %v1861
    %1998 = vmatpush.bf16.msra.mxu0 %v1859
    %1999 = vmatpush.bf16.msra.mxu0 %v1857
    %2000 = vmatmul.bf16.gmra.mxu0 %v1640
    %v2001 = vpop.f32.mrf.mxu0
    %v2002 = vadd.f32 %v1988, %v2001
    %v2003 = vpop.f32.mrf.mxu0
    %v2004 = vadd.f32 %v1990, %v2003
    %2005 = vdwg.mxu0
    %2006 = vmatpush.bf16.msra.mxu0 %v1887
    %2007 = vmatpush.bf16.msra.mxu0 %v1885
    %2008 = vmatpush.bf16.msra.mxu0 %v1883
    %2009 = vmatpush.bf16.msra.mxu0 %v1881
    %2010 = vmatpush.bf16.msra.mxu0 %v1879
    %2011 = vmatpush.bf16.msra.mxu0 %v1877
    %2012 = vmatpush.bf16.msra.mxu0 %v1875
    %2013 = vmatpush.bf16.msra.mxu0 %v1873
    %2014 = vmatmul.bf16.gmra.mxu0 %v1641
    %v2015 = vpop.f32.mrf.mxu0
    %v2016 = vadd.f32 %v2002, %v2015
    %v2017 = vpop.f32.mrf.mxu0
    %v2018 = vadd.f32 %v2004, %v2017
    %2019 = vdwg.mxu0
    %v2020 = vadd.f32 %v211, %v1974
    %v2021 = vadd.f32 %v225, %v2016
    %v2022 = vadd.f32 %v213, %v1976
    %v2023 = vadd.f32 %v227, %v2018
    %v2024 = vsel %vm1093, %v2021, 0.0
    %v2025 = vadd.f32 %v2020, %v2024
    %2026 = vadd.xlane.f32.xlu0 %v2025
    %v2027 = vpop.xlane.xlu0 %2026
    %v2028 = vsel %vm1093, %v2023, 0.0
    %v2029 = vadd.f32 %v2022, %v2028
    %2030 = vadd.xlane.f32.xlu0 %v2029
    %v2031 = vpop.xlane.xlu0 %2030
    %v2032 = vrcp.pop 240.0
    %v2033 = vmul.f32 240.0, %v2032
    %v2034 = vsub.f32 1.0, %v2033
    %v2035 = vmul.f32 %v2032, %v2034
    %v2036 = vadd.f32 %v2032, %v2035
    %vm2037 = vweird.f32 %v2032
    %v2038 = vsel %vm2037, %v2032, %v2036
    %v2039 = vmul.f32 %v2027, %v2038
    %v2040 = vmul.f32 %v2031, %v2038
    %v2041 = vsub.f32 %v2020, %v2039
    %v2042 = vsub.f32 %v2021, %v2039
    %v2043 = vsub.f32 %v2022, %v2040
    %v2044 = vsub.f32 %v2023, %v2040
    %v2045 = vmul.f32 %v2041, %v2041
    %v2046 = vmul.f32 %v2042, %v2042
    %v2047 = vmul.f32 %v2043, %v2043
    %v2048 = vmul.f32 %v2044, %v2044
    %v2049 = vsel %vm1093, %v2046, 0.0
    %v2050 = vadd.f32 %v2045, %v2049
    %2051 = vadd.xlane.f32.xlu0 %v2050
    %v2052 = vpop.xlane.xlu0 %2051
    %v2053 = vsel %vm1093, %v2048, 0.0
    %v2054 = vadd.f32 %v2047, %v2053
    %2055 = vadd.xlane.f32.xlu0 %v2054
    %v2056 = vpop.xlane.xlu0 %2055
    %v2057 = vmul.f32 %v2052, %v2038
    %v2058 = vmul.f32 %v2056, %v2038
    %v2059 = vadd.f32 %v2057, 1e-05
    %v2060 = vadd.f32 %v2058, 1e-05
    %v2061 = vrsqrt.pop %v2059
    %v2062 = vmul.f32 %v2061, %v2059
    %v2063 = vmul.f32 %v2062, %v2061
    %v2064 = vmul.f32 0.5, %v2063
    %v2065 = vsub.f32 1.5, %v2064
    %v2066 = vmul.f32 %v2061, %v2065
    %vm2067 = vweird.f32 %v2059
    %vm2068 = vweird.f32 %v2061
    %vm2069 = vmor %vm2067, %vm2068
    %v2070 = vsel %vm2069, %v2061, %v2066
    %v2071 = vrsqrt.pop %v2060
    %v2072 = vmul.f32 %v2071, %v2060
    %v2073 = vmul.f32 %v2072, %v2071
    %v2074 = vmul.f32 0.5, %v2073
    %v2075 = vsub.f32 1.5, %v2074
    %v2076 = vmul.f32 %v2071, %v2075
    %vm2077 = vweird.f32 %v2060
    %vm2078 = vweird.f32 %v2071
    %vm2079 = vmor %vm2077, %vm2078
    %v2080 = vsel %vm2079, %v2071, %v2076
    %v2081 = vmul.f32 %v2041, %v2070
    %v2082 = vmul.f32 %v2042, %v2070
    %v2083 = vmul.f32 %v2043, %v2080
    %v2084 = vmul.f32 %v2044, %v2080
    %v2085 = vld [vmem:[%s7] sm:$0x3]
    %v2087 = vperm.slane %v2085, 0
    %v2088 = vperm.slane %v2085, 1
    %v2091 = vmul.f32 %v2081, %v2087
    %v2092 = vmul.f32 %v2082, %v2088
    %v2093 = vmul.f32 %v2083, %v2087
    %v2094 = vmul.f32 %v2084, %v2088
    %v2095 = vld [vmem:[%s8] sm:$0x3]
    %v2097 = vperm.slane %v2095, 0
    %v2098 = vperm.slane %v2095, 1
    %v2101 = vadd.f32 %v2091, %v2097
    %v2102 = vadd.f32 %v2092, %v2098
    %v2103 = vadd.f32 %v2093, %v2097
    %v2104 = vadd.f32 %v2094, %v2098
    %v2105 = vpack.c.bf16 %v2103, %v2101
    %v2106 = vpack.c.bf16 %v2104, %v2102
    %v2107 = vld [vmem:[%s9] sm:$0xff]
    %v2108 = vld [vmem:[%s9 + $0x8] sm:$0xff]
    %v2109 = vld [vmem:[%s9 + $0x10] sm:$0xff]
    %v2110 = vld [vmem:[%s9 + $0x18] sm:$0xff]
    %v2111 = vld [vmem:[%s9 + $0x20] sm:$0xff]
    %v2112 = vld [vmem:[%s9 + $0x28] sm:$0xff]
    %v2113 = vld [vmem:[%s9 + $0x30] sm:$0xff]
    %v2114 = vld [vmem:[%s9 + $0x38] sm:$0xff]
    %v2115 = vld [vmem:[%s9 + $0x40] sm:$0xff]
    %v2116 = vld [vmem:[%s9 + $0x48] sm:$0xff]
    %v2117 = vld [vmem:[%s9 + $0x50] sm:$0xff]
    %v2118 = vld [vmem:[%s9 + $0x58] sm:$0xff]
    %v2119 = vld [vmem:[%s9 + $0x60] sm:$0xff]
    %v2120 = vld [vmem:[%s9 + $0x68] sm:$0xff]
    %v2121 = vld [vmem:[%s9 + $0x70] sm:$0xff]
    %v2122 = vld [vmem:[%s9 + $0x78] sm:$0xff]
    %v2123 = vld [vmem:[%s9 + $0x80] sm:$0xff]
    %v2124 = vld [vmem:[%s9 + $0x88] sm:$0xff]
    %v2125 = vld [vmem:[%s9 + $0x90] sm:$0xff]
    %v2126 = vld [vmem:[%s9 + $0x98] sm:$0xff]
    %v2127 = vld [vmem:[%s9 + $0xa0] sm:$0xff]
    %v2128 = vld [vmem:[%s9 + $0xa8] sm:$0xff]
    %v2129 = vld [vmem:[%s9 + $0xb0] sm:$0xff]
    %v2130 = vld [vmem:[%s9 + $0xb8] sm:$0xff]
    %v2131 = vld [vmem:[%s9 + $0xc0] sm:$0xff]
    %v2132 = vld [vmem:[%s9 + $0xc8] sm:$0xff]
    %v2133 = vld [vmem:[%s9 + $0xd0] sm:$0xff]
    %v2134 = vld [vmem:[%s9 + $0xd8] sm:$0xff]
    %v2135 = vld [vmem:[%s9 + $0xe0] sm:$0xff]
    %v2136 = vld [vmem:[%s9 + $0xe8] sm:$0xff]
    %v2137 = vld [vmem:[%s10] sm:$0x3]
    %v2139 = vperm.slane %v2137, 0
    %v2140 = vperm.slane %v2137, 1
    %v2173 = vunpack.c.l.b16 %v2107
    %v2174 = vunpack.c.h.b16 %v2107
    %v2175 = vunpack.c.l.b16 %v2108
    %v2176 = vunpack.c.h.b16 %v2108
    %v2177 = vunpack.c.l.b16 %v2109
    %v2178 = vunpack.c.h.b16 %v2109
    %v2179 = vunpack.c.l.b16 %v2110
    %v2180 = vunpack.c.h.b16 %v2110
    %v2181 = vunpack.c.l.b16 %v2111
    %v2182 = vunpack.c.h.b16 %v2111
    %v2183 = vunpack.c.l.b16 %v2112
    %v2184 = vunpack.c.h.b16 %v2112
    %v2185 = vunpack.c.l.b16 %v2113
    %v2186 = vunpack.c.h.b16 %v2113
    %v2187 = vunpack.c.l.b16 %v2114
    %v2188 = vunpack.c.h.b16 %v2114
    %v2189 = vunpack.c.l.b16 %v2115
    %v2190 = vunpack.c.h.b16 %v2115
    %v2191 = vunpack.c.l.b16 %v2116
    %v2192 = vunpack.c.h.b16 %v2116
    %v2193 = vunpack.c.l.b16 %v2117
    %v2194 = vunpack.c.h.b16 %v2117
    %v2195 = vunpack.c.l.b16 %v2118
    %v2196 = vunpack.c.h.b16 %v2118
    %v2197 = vunpack.c.l.b16 %v2119
    %v2198 = vunpack.c.h.b16 %v2119
    %v2199 = vunpack.c.l.b16 %v2120
    %v2200 = vunpack.c.h.b16 %v2120
    %v2201 = vunpack.c.l.b16 %v2121
    %v2202 = vunpack.c.h.b16 %v2121
    %v2203 = vunpack.c.l.b16 %v2122
    %v2204 = vunpack.c.h.b16 %v2122
    %v2205 = vunpack.c.l.b16 %v2123
    %v2206 = vunpack.c.h.b16 %v2123
    %v2207 = vunpack.c.l.b16 %v2124
    %v2208 = vunpack.c.h.b16 %v2124
    %v2209 = vunpack.c.l.b16 %v2125
    %v2210 = vunpack.c.h.b16 %v2125
    %v2211 = vunpack.c.l.b16 %v2126
    %v2212 = vunpack.c.h.b16 %v2126
    %v2213 = vunpack.c.l.b16 %v2127
    %v2214 = vunpack.c.h.b16 %v2127
    %v2215 = vunpack.c.l.b16 %v2128
    %v2216 = vunpack.c.h.b16 %v2128
    %v2217 = vunpack.c.l.b16 %v2129
    %v2218 = vunpack.c.h.b16 %v2129
    %v2219 = vunpack.c.l.b16 %v2130
    %v2220 = vunpack.c.h.b16 %v2130
    %v2221 = vunpack.c.l.b16 %v2131
    %v2222 = vunpack.c.h.b16 %v2131
    %v2223 = vunpack.c.l.b16 %v2132
    %v2224 = vunpack.c.h.b16 %v2132
    %v2225 = vunpack.c.l.b16 %v2133
    %v2226 = vunpack.c.h.b16 %v2133
    %v2227 = vunpack.c.l.b16 %v2134
    %v2228 = vunpack.c.h.b16 %v2134
    %v2229 = vunpack.c.l.b16 %v2135
    %v2230 = vunpack.c.h.b16 %v2135
    %v2231 = vunpack.c.l.b16 %v2136
    %v2232 = vunpack.c.h.b16 %v2136
    %v2233 = vpack.c.b16 %v2175, %v2173
    %v2234 = vpack.c.b16 %v2176, %v2174
    %v2235 = vpack.c.b16 %v2179, %v2177
    %v2236 = vpack.c.b16 %v2180, %v2178
    %v2237 = vpack.c.b16 %v2183, %v2181
    %v2238 = vpack.c.b16 %v2184, %v2182
    %v2239 = vpack.c.b16 %v2187, %v2185
    %v2240 = vpack.c.b16 %v2188, %v2186
    %v2241 = vpack.c.b16 %v2191, %v2189
    %v2242 = vpack.c.b16 %v2192, %v2190
    %v2243 = vpack.c.b16 %v2195, %v2193
    %v2244 = vpack.c.b16 %v2196, %v2194
    %v2245 = vpack.c.b16 %v2199, %v2197
    %v2246 = vpack.c.b16 %v2200, %v2198
    %v2247 = vpack.c.b16 %v2203, %v2201
    %v2248 = vpack.c.b16 %v2204, %v2202
    %v2249 = vpack.c.b16 %v2207, %v2205
    %v2250 = vpack.c.b16 %v2208, %v2206
    %v2251 = vpack.c.b16 %v2211, %v2209
    %v2252 = vpack.c.b16 %v2212, %v2210
    %v2253 = vpack.c.b16 %v2215, %v2213
    %v2254 = vpack.c.b16 %v2216, %v2214
    %v2255 = vpack.c.b16 %v2219, %v2217
    %v2256 = vpack.c.b16 %v2220, %v2218
    %v2257 = vpack.c.b16 %v2223, %v2221
    %v2258 = vpack.c.b16 %v2224, %v2222
    %v2259 = vpack.c.b16 %v2227, %v2225
    %v2260 = vpack.c.b16 %v2228, %v2226
    %v2261 = vpack.c.b16 %v2231, %v2229
    %v2262 = vpack.c.b16 %v2232, %v2230
    %v2294 = vsel %vm1093, %v2106, 0
    %2296 = vmatpush.bf16.msra.mxu0 %v2247
    %2297 = vmatpush.bf16.msra.mxu0 %v2245
    %2298 = vmatpush.bf16.msra.mxu0 %v2243
    %2299 = vmatpush.bf16.msra.mxu0 %v2241
    %2300 = vmatpush.bf16.msra.mxu0 %v2239
    %2301 = vmatpush.bf16.msra.mxu0 %v2237
    %2302 = vmatpush.bf16.msra.mxu0 %v2235
    %2303 = vmatpush.bf16.msra.mxu0 %v2233
    %2304 = vmatmul.bf16.gmra.mxu0 %v2105
    %v2305 = vpop.f32.mrf.mxu0
    %v2306 = vadd.f32 %v2139, %v2305
    %v2307 = vpop.f32.mrf.mxu0
    %v2308 = vadd.f32 %v2139, %v2307
    %2309 = vdwg.mxu0
    %2310 = vmatpush.bf16.msra.mxu0 0
    %2311 = vmatpush.bf16.msra.mxu0 %v2261
    %2312 = vmatpush.bf16.msra.mxu0 %v2259
    %2313 = vmatpush.bf16.msra.mxu0 %v2257
    %2314 = vmatpush.bf16.msra.mxu0 %v2255
    %2315 = vmatpush.bf16.msra.mxu0 %v2253
    %2316 = vmatpush.bf16.msra.mxu0 %v2251
    %2317 = vmatpush.bf16.msra.mxu0 %v2249
    %2318 = vmatmul.bf16.gmra.mxu0 %v2294
    %v2319 = vpop.f32.mrf.mxu0
    %v2320 = vadd.f32 %v2306, %v2319
    %v2321 = vpop.f32.mrf.mxu0
    %v2322 = vadd.f32 %v2308, %v2321
    %2323 = vdwg.mxu0
    %2324 = vmatpush.bf16.msra.mxu0 %v2248
    %2325 = vmatpush.bf16.msra.mxu0 %v2246
    %2326 = vmatpush.bf16.msra.mxu0 %v2244
    %2327 = vmatpush.bf16.msra.mxu0 %v2242
    %2328 = vmatpush.bf16.msra.mxu0 %v2240
    %2329 = vmatpush.bf16.msra.mxu0 %v2238
    %2330 = vmatpush.bf16.msra.mxu0 %v2236
    %2331 = vmatpush.bf16.msra.mxu0 %v2234
    %2332 = vmatmul.bf16.gmra.mxu0 %v2105
    %v2333 = vpop.f32.mrf.mxu0
    %v2334 = vadd.f32 %v2140, %v2333
    %v2335 = vpop.f32.mrf.mxu0
    %v2336 = vadd.f32 %v2140, %v2335
    %2337 = vdwg.mxu0
    %2338 = vmatpush.bf16.msra.mxu0 0
    %2339 = vmatpush.bf16.msra.mxu0 %v2262
    %2340 = vmatpush.bf16.msra.mxu0 %v2260
    %2341 = vmatpush.bf16.msra.mxu0 %v2258
    %2342 = vmatpush.bf16.msra.mxu0 %v2256
    %2343 = vmatpush.bf16.msra.mxu0 %v2254
    %2344 = vmatpush.bf16.msra.mxu0 %v2252
    %2345 = vmatpush.bf16.msra.mxu0 %v2250
    %2346 = vmatmul.bf16.gmra.mxu0 %v2294
    %v2347 = vpop.f32.mrf.mxu0
    %v2348 = vadd.f32 %v2334, %v2347
    %v2349 = vpop.f32.mrf.mxu0
    %v2350 = vadd.f32 %v2336, %v2349
    %2351 = vdwg.mxu0
    %v2352 = vmax.f32 %v2320, 0.0
    %v2353 = vmax.f32 %v2348, 0.0
    %v2354 = vmax.f32 %v2322, 0.0
    %v2355 = vmax.f32 %v2350, 0.0
    %v2356 = vpack.c.bf16 %v2354, %v2352
    %v2357 = vpack.c.bf16 %v2355, %v2353
    %v2358 = vld [vmem:[%s11] sm:$0xff]
    %v2359 = vld [vmem:[%s11 + $0x8] sm:$0xff]
    %v2360 = vld [vmem:[%s11 + $0x10] sm:$0xff]
    %v2361 = vld [vmem:[%s11 + $0x18] sm:$0xff]
    %v2362 = vld [vmem:[%s11 + $0x20] sm:$0xff]
    %v2363 = vld [vmem:[%s11 + $0x28] sm:$0xff]
    %v2364 = vld [vmem:[%s11 + $0x30] sm:$0xff]
    %v2365 = vld [vmem:[%s11 + $0x38] sm:$0xff]
    %v2366 = vld [vmem:[%s11 + $0x40] sm:$0xff]
    %v2367 = vld [vmem:[%s11 + $0x48] sm:$0xff]
    %v2368 = vld [vmem:[%s11 + $0x50] sm:$0xff]
    %v2369 = vld [vmem:[%s11 + $0x58] sm:$0xff]
    %v2370 = vld [vmem:[%s11 + $0x60] sm:$0xff]
    %v2371 = vld [vmem:[%s11 + $0x68] sm:$0xff]
    %v2372 = vld [vmem:[%s11 + $0x70] sm:$0xff]
    %v2373 = vld [vmem:[%s11 + $0x78] sm:$0xff]
    %v2374 = vld [vmem:[%s11 + $0x80] sm:$0xff]
    %v2375 = vld [vmem:[%s11 + $0x88] sm:$0xff]
    %v2376 = vld [vmem:[%s11 + $0x90] sm:$0xff]
    %v2377 = vld [vmem:[%s11 + $0x98] sm:$0xff]
    %v2378 = vld [vmem:[%s11 + $0xa0] sm:$0xff]
    %v2379 = vld [vmem:[%s11 + $0xa8] sm:$0xff]
    %v2380 = vld [vmem:[%s11 + $0xb0] sm:$0xff]
    %v2381 = vld [vmem:[%s11 + $0xb8] sm:$0xff]
    %v2382 = vld [vmem:[%s11 + $0xc0] sm:$0xff]
    %v2383 = vld [vmem:[%s11 + $0xc8] sm:$0xff]
    %v2384 = vld [vmem:[%s11 + $0xd0] sm:$0xff]
    %v2385 = vld [vmem:[%s11 + $0xd8] sm:$0xff]
    %v2386 = vld [vmem:[%s11 + $0xe0] sm:$0xff]
    %v2387 = vld [vmem:[%s11 + $0xe8] sm:$0xff]
    %v2388 = vld [vmem:[%s11 + $0xf0] sm:$0xff]
    %v2389 = vld [vmem:[%s11 + $0xf8] sm:$0xff]
    %v2390 = vld [vmem:[%s12] sm:$0x3]
    %v2392 = vperm.slane %v2390, 0
    %v2393 = vperm.slane %v2390, 1
    %v2428 = vunpack.c.l.b16 %v2358
    %v2429 = vunpack.c.h.b16 %v2358
    %v2430 = vunpack.c.l.b16 %v2359
    %v2431 = vunpack.c.h.b16 %v2359
    %v2432 = vunpack.c.l.b16 %v2360
    %v2433 = vunpack.c.h.b16 %v2360
    %v2434 = vunpack.c.l.b16 %v2361
    %v2435 = vunpack.c.h.b16 %v2361
    %v2436 = vunpack.c.l.b16 %v2362
    %v2437 = vunpack.c.h.b16 %v2362
    %v2438 = vunpack.c.l.b16 %v2363
    %v2439 = vunpack.c.h.b16 %v2363
    %v2440 = vunpack.c.l.b16 %v2364
    %v2441 = vunpack.c.h.b16 %v2364
    %v2442 = vunpack.c.l.b16 %v2365
    %v2443 = vunpack.c.h.b16 %v2365
    %v2444 = vunpack.c.l.b16 %v2366
    %v2445 = vunpack.c.h.b16 %v2366
    %v2446 = vunpack.c.l.b16 %v2367
    %v2447 = vunpack.c.h.b16 %v2367
    %v2448 = vunpack.c.l.b16 %v2368
    %v2449 = vunpack.c.h.b16 %v2368
    %v2450 = vunpack.c.l.b16 %v2369
    %v2451 = vunpack.c.h.b16 %v2369
    %v2452 = vunpack.c.l.b16 %v2370
    %v2453 = vunpack.c.h.b16 %v2370
    %v2454 = vunpack.c.l.b16 %v2371
    %v2455 = vunpack.c.h.b16 %v2371
    %v2456 = vunpack.c.l.b16 %v2372
    %v2457 = vunpack.c.h.b16 %v2372
    %v2458 = vunpack.c.l.b16 %v2373
    %v2459 = vunpack.c.h.b16 %v2373
    %v2460 = vunpack.c.l.b16 %v2374
    %v2461 = vunpack.c.h.b16 %v2374
    %v2462 = vunpack.c.l.b16 %v2375
    %v2463 = vunpack.c.h.b16 %v2375
    %v2464 = vunpack.c.l.b16 %v2376
    %v2465 = vunpack.c.h.b16 %v2376
    %v2466 = vunpack.c.l.b16 %v2377
    %v2467 = vunpack.c.h.b16 %v2377
    %v2468 = vunpack.c.l.b16 %v2378
    %v2469 = vunpack.c.h.b16 %v2378
    %v2470 = vunpack.c.l.b16 %v2379
    %v2471 = vunpack.c.h.b16 %v2379
    %v2472 = vunpack.c.l.b16 %v2380
    %v2473 = vunpack.c.h.b16 %v2380
    %v2474 = vunpack.c.l.b16 %v2381
    %v2475 = vunpack.c.h.b16 %v2381
    %v2476 = vunpack.c.l.b16 %v2382
    %v2477 = vunpack.c.h.b16 %v2382
    %v2478 = vunpack.c.l.b16 %v2383
    %v2479 = vunpack.c.h.b16 %v2383
    %v2480 = vunpack.c.l.b16 %v2384
    %v2481 = vunpack.c.h.b16 %v2384
    %v2482 = vunpack.c.l.b16 %v2385
    %v2483 = vunpack.c.h.b16 %v2385
    %v2484 = vunpack.c.l.b16 %v2386
    %v2485 = vunpack.c.h.b16 %v2386
    %v2486 = vunpack.c.l.b16 %v2387
    %v2487 = vunpack.c.h.b16 %v2387
    %v2488 = vunpack.c.l.b16 %v2388
    %v2489 = vunpack.c.h.b16 %v2388
    %v2490 = vunpack.c.l.b16 %v2389
    %v2491 = vunpack.c.h.b16 %v2389
    %v2492 = vpack.c.b16 %v2430, %v2428
    %v2493 = vpack.c.b16 %v2431, %v2429
    %v2494 = vpack.c.b16 %v2434, %v2432
    %v2495 = vpack.c.b16 %v2435, %v2433
    %v2496 = vpack.c.b16 %v2438, %v2436
    %v2497 = vpack.c.b16 %v2439, %v2437
    %v2498 = vpack.c.b16 %v2442, %v2440
    %v2499 = vpack.c.b16 %v2443, %v2441
    %v2500 = vpack.c.b16 %v2446, %v2444
    %v2501 = vpack.c.b16 %v2447, %v2445
    %v2502 = vpack.c.b16 %v2450, %v2448
    %v2503 = vpack.c.b16 %v2451, %v2449
    %v2504 = vpack.c.b16 %v2454, %v2452
    %v2505 = vpack.c.b16 %v2455, %v2453
    %v2506 = vpack.c.b16 %v2458, %v2456
    %v2507 = vpack.c.b16 %v2459, %v2457
    %v2508 = vpack.c.b16 %v2462, %v2460
    %v2509 = vpack.c.b16 %v2463, %v2461
    %v2510 = vpack.c.b16 %v2466, %v2464
    %v2511 = vpack.c.b16 %v2467, %v2465
    %v2512 = vpack.c.b16 %v2470, %v2468
    %v2513 = vpack.c.b16 %v2471, %v2469
    %v2514 = vpack.c.b16 %v2474, %v2472
    %v2515 = vpack.c.b16 %v2475, %v2473
    %v2516 = vpack.c.b16 %v2478, %v2476
    %v2517 = vpack.c.b16 %v2479, %v2477
    %v2518 = vpack.c.b16 %v2482, %v2480
    %v2519 = vpack.c.b16 %v2483, %v2481
    %v2520 = vpack.c.b16 %v2486, %v2484
    %v2521 = vpack.c.b16 %v2487, %v2485
    %v2522 = vpack.c.b16 %v2490, %v2488
    %v2523 = vpack.c.b16 %v2491, %v2489
    %2556 = vmatpush.bf16.msra.mxu0 %v2506
    %2557 = vmatpush.bf16.msra.mxu0 %v2504
    %2558 = vmatpush.bf16.msra.mxu0 %v2502
    %2559 = vmatpush.bf16.msra.mxu0 %v2500
    %2560 = vmatpush.bf16.msra.mxu0 %v2498
    %2561 = vmatpush.bf16.msra.mxu0 %v2496
    %2562 = vmatpush.bf16.msra.mxu0 %v2494
    %2563 = vmatpush.bf16.msra.mxu0 %v2492
    %2564 = vmatmul.bf16.gmra.mxu0 %v2356
    %v2565 = vpop.f32.mrf.mxu0
    %v2566 = vadd.f32 %v2392, %v2565
    %v2567 = vpop.f32.mrf.mxu0
    %v2568 = vadd.f32 %v2392, %v2567
    %2569 = vdwg.mxu0
    %2570 = vmatpush.bf16.msra.mxu0 %v2522
    %2571 = vmatpush.bf16.msra.mxu0 %v2520
    %2572 = vmatpush.bf16.msra.mxu0 %v2518
    %2573 = vmatpush.bf16.msra.mxu0 %v2516
    %2574 = vmatpush.bf16.msra.mxu0 %v2514
    %2575 = vmatpush.bf16.msra.mxu0 %v2512
    %2576 = vmatpush.bf16.msra.mxu0 %v2510
    %2577 = vmatpush.bf16.msra.mxu0 %v2508
    %2578 = vmatmul.bf16.gmra.mxu0 %v2357
    %v2579 = vpop.f32.mrf.mxu0
    %v2580 = vadd.f32 %v2566, %v2579
    %v2581 = vpop.f32.mrf.mxu0
    %v2582 = vadd.f32 %v2568, %v2581
    %2583 = vdwg.mxu0
    %2584 = vmatpush.bf16.msra.mxu0 %v2507
    %2585 = vmatpush.bf16.msra.mxu0 %v2505
    %2586 = vmatpush.bf16.msra.mxu0 %v2503
    %2587 = vmatpush.bf16.msra.mxu0 %v2501
    %2588 = vmatpush.bf16.msra.mxu0 %v2499
    %2589 = vmatpush.bf16.msra.mxu0 %v2497
    %2590 = vmatpush.bf16.msra.mxu0 %v2495
    %2591 = vmatpush.bf16.msra.mxu0 %v2493
    %2592 = vmatmul.bf16.gmra.mxu0 %v2356
    %v2593 = vpop.f32.mrf.mxu0
    %v2594 = vadd.f32 %v2393, %v2593
    %v2595 = vpop.f32.mrf.mxu0
    %v2596 = vadd.f32 %v2393, %v2595
    %2597 = vdwg.mxu0
    %2598 = vmatpush.bf16.msra.mxu0 %v2523
    %2599 = vmatpush.bf16.msra.mxu0 %v2521
    %2600 = vmatpush.bf16.msra.mxu0 %v2519
    %2601 = vmatpush.bf16.msra.mxu0 %v2517
    %2602 = vmatpush.bf16.msra.mxu0 %v2515
    %2603 = vmatpush.bf16.msra.mxu0 %v2513
    %2604 = vmatpush.bf16.msra.mxu0 %v2511
    %2605 = vmatpush.bf16.msra.mxu0 %v2509
    %2606 = vmatmul.bf16.gmra.mxu0 %v2357
    %v2607 = vpop.f32.mrf.mxu0
    %v2608 = vadd.f32 %v2594, %v2607
    %v2609 = vpop.f32.mrf.mxu0
    %v2610 = vadd.f32 %v2596, %v2609
    %2611 = vdwg.mxu0
    %v2612 = vadd.f32 %v2101, %v2580
    %v2613 = vadd.f32 %v2102, %v2608
    %v2614 = vadd.f32 %v2103, %v2582
    %v2615 = vadd.f32 %v2104, %v2610
    %v2616 = vsel %vm1093, %v2613, 0.0
    %v2617 = vadd.f32 %v2612, %v2616
    %2618 = vadd.xlane.f32.xlu0 %v2617
    %v2619 = vpop.xlane.xlu0 %2618
    %v2620 = vsel %vm1093, %v2615, 0.0
    %v2621 = vadd.f32 %v2614, %v2620
    %2622 = vadd.xlane.f32.xlu0 %v2621
    %v2623 = vpop.xlane.xlu0 %2622
    %v2624 = vmul.f32 %v2619, %v2038
    %v2625 = vmul.f32 %v2623, %v2038
    %v2626 = vsub.f32 %v2612, %v2624
    %v2627 = vsub.f32 %v2613, %v2624
    %v2628 = vsub.f32 %v2614, %v2625
    %v2629 = vsub.f32 %v2615, %v2625
    %v2630 = vmul.f32 %v2626, %v2626
    %v2631 = vmul.f32 %v2627, %v2627
    %v2632 = vmul.f32 %v2628, %v2628
    %v2633 = vmul.f32 %v2629, %v2629
    %v2634 = vsel %vm1093, %v2631, 0.0
    %v2635 = vadd.f32 %v2630, %v2634
    %2636 = vadd.xlane.f32.xlu0 %v2635
    %v2637 = vpop.xlane.xlu0 %2636
    %v2638 = vsel %vm1093, %v2633, 0.0
    %v2639 = vadd.f32 %v2632, %v2638
    %2640 = vadd.xlane.f32.xlu0 %v2639
    %v2641 = vpop.xlane.xlu0 %2640
    %v2642 = vmul.f32 %v2637, %v2038
    %v2643 = vmul.f32 %v2641, %v2038
    %v2644 = vadd.f32 %v2642, 1e-05
    %v2645 = vadd.f32 %v2643, 1e-05
    %v2646 = vrsqrt.pop %v2644
    %v2647 = vmul.f32 %v2646, %v2644
    %v2648 = vmul.f32 %v2647, %v2646
    %v2649 = vmul.f32 0.5, %v2648
    %v2650 = vsub.f32 1.5, %v2649
    %v2651 = vmul.f32 %v2646, %v2650
    %vm2652 = vweird.f32 %v2644
    %vm2653 = vweird.f32 %v2646
    %vm2654 = vmor %vm2652, %vm2653
    %v2655 = vsel %vm2654, %v2646, %v2651
    %v2656 = vrsqrt.pop %v2645
    %v2657 = vmul.f32 %v2656, %v2645
    %v2658 = vmul.f32 %v2657, %v2656
    %v2659 = vmul.f32 0.5, %v2658
    %v2660 = vsub.f32 1.5, %v2659
    %v2661 = vmul.f32 %v2656, %v2660
    %vm2662 = vweird.f32 %v2645
    %vm2663 = vweird.f32 %v2656
    %vm2664 = vmor %vm2662, %vm2663
    %v2665 = vsel %vm2664, %v2656, %v2661
    %v2666 = vmul.f32 %v2626, %v2655
    %v2667 = vmul.f32 %v2627, %v2655
    %v2668 = vmul.f32 %v2628, %v2665
    %v2669 = vmul.f32 %v2629, %v2665
    %v2670 = vld [vmem:[%s13] sm:$0x3]
    %v2672 = vperm.slane %v2670, 0
    %v2673 = vperm.slane %v2670, 1
    %v2676 = vmul.f32 %v2666, %v2672
    %v2677 = vmul.f32 %v2667, %v2673
    %v2678 = vmul.f32 %v2668, %v2672
    %v2679 = vmul.f32 %v2669, %v2673
    %v2680 = vld [vmem:[%s14] sm:$0x3]
    %v2682 = vperm.slane %v2680, 0
    %v2683 = vperm.slane %v2680, 1
    %v2686 = vadd.f32 %v2676, %v2682
    %v2687 = vadd.f32 %v2677, %v2683
    %v2688 = vadd.f32 %v2678, %v2682
    %v2689 = vadd.f32 %v2679, %v2683
    %v2690 = vrot.slane %v2686, 4
    %v2691 = vadd.f32 %v2686, %v2690
    %v2692 = vrot.slane %v2691, 2
    %v2693 = vadd.f32 %v2691, %v2692
    %v2694 = vrot.slane %v2693, 1
    %v2695 = vadd.f32 %v2693, %v2694
    %v2696 = vsel %vm1093, %v2687, 0.0
    %v2697 = vrot.slane %v2696, 4
    %v2698 = vadd.f32 %v2696, %v2697
    %v2699 = vrot.slane %v2698, 2
    %v2700 = vadd.f32 %v2698, %v2699
    %v2701 = vrot.slane %v2700, 1
    %v2702 = vadd.f32 %v2700, %v2701
    %v2703 = vrot.slane %v2688, 4
    %v2704 = vadd.f32 %v2688, %v2703
    %v2705 = vrot.slane %v2704, 2
    %v2706 = vadd.f32 %v2704, %v2705
    %v2707 = vrot.slane %v2706, 1
    %v2708 = vadd.f32 %v2706, %v2707
    %v2709 = vsel %vm1093, %v2689, 0.0
    %v2710 = vrot.slane %v2709, 4
    %v2711 = vadd.f32 %v2709, %v2710
    %v2712 = vrot.slane %v2711, 2
    %v2713 = vadd.f32 %v2711, %v2712
    %v2714 = vrot.slane %v2713, 1
    %v2715 = vadd.f32 %v2713, %v2714
    %v2716 = vrcp.pop 8.0
    %v2717 = vmul.f32 8.0, %v2716
    %v2718 = vsub.f32 1.0, %v2717
    %v2719 = vmul.f32 %v2716, %v2718
    %v2720 = vadd.f32 %v2716, %v2719
    %vm2721 = vweird.f32 %v2716
    %v2722 = vsel %vm2721, %v2716, %v2720
    %v2723 = vmul.f32 %v2695, %v2722
    %v2724 = vmul.f32 %v2702, %v2722
    %v2725 = vmul.f32 %v2708, %v2722
    %v2726 = vmul.f32 %v2715, %v2722
    %v2727 = vpack.c.bf16 %v2723, %v2723
    %v2728 = vpack.c.bf16 %v2724, %v2724
    %v2729 = vpack.c.bf16 %v2725, %v2725
    %v2730 = vpack.c.bf16 %v2726, %v2726
    %v2731 = vld [vmem:[#allocation5] sm:$0xff]
    %v2732 = vld [vmem:[#allocation5 + $0x8] sm:$0xff]
    %v2733 = vld [vmem:[#allocation5 + $0x10] sm:$0xff]
    %v2734 = vld [vmem:[#allocation5 + $0x18] sm:$0xff]
    %v2735 = vld [vmem:[#allocation5 + $0x20] sm:$0xff]
    %v2736 = vld [vmem:[#allocation5 + $0x28] sm:$0xff]
    %v2737 = vld [vmem:[#allocation5 + $0x30] sm:$0xff]
    %v2738 = vld [vmem:[#allocation5 + $0x38] sm:$0xff]
    %v2739 = vld [vmem:[#allocation5 + $0x40] sm:$0xff]
    %v2740 = vld [vmem:[#allocation5 + $0x48] sm:$0xff]
    %v2741 = vld [vmem:[#allocation5 + $0x50] sm:$0xff]
    %v2742 = vld [vmem:[#allocation5 + $0x58] sm:$0xff]
    %v2743 = vld [vmem:[#allocation5 + $0x60] sm:$0xff]
    %v2744 = vld [vmem:[#allocation5 + $0x68] sm:$0xff]
    %v2745 = vld [vmem:[#allocation5 + $0x70] sm:$0xff]
    %v2746 = vld [vmem:[#allocation5 + $0x78] sm:$0xff]
    %v2747 = vld [vmem:[#allocation5 + $0x80] sm:$0xff]
    %v2748 = vld [vmem:[#allocation5 + $0x88] sm:$0xff]
    %v2749 = vld [vmem:[#allocation5 + $0x90] sm:$0xff]
    %v2750 = vld [vmem:[#allocation5 + $0x98] sm:$0xff]
    %v2751 = vld [vmem:[#allocation5 + $0xa0] sm:$0xff]
    %v2752 = vld [vmem:[#allocation5 + $0xa8] sm:$0xff]
    %v2753 = vld [vmem:[#allocation5 + $0xb0] sm:$0xff]
    %v2754 = vld [vmem:[#allocation5 + $0xb8] sm:$0xff]
    %v2755 = vld [vmem:[#allocation5 + $0xc0] sm:$0xff]
    %v2756 = vld [vmem:[#allocation5 + $0xc8] sm:$0xff]
    %v2757 = vld [vmem:[#allocation5 + $0xd0] sm:$0xff]
    %v2758 = vld [vmem:[#allocation5 + $0xd8] sm:$0xff]
    %v2759 = vld [vmem:[#allocation5 + $0xe0] sm:$0xff]
    %v2760 = vld [vmem:[#allocation5 + $0xe8] sm:$0xff]
    %v2761 = vld [vmem:[%s16] sm:$0x3]
    %v2763 = vperm.slane %v2761, 0
    %v2764 = vperm.slane %v2761, 1
    %v2771 = vunpack.c.l.b16 %v2727
    %v2772 = vunpack.c.l.b16 %v2728
    %v2773 = vunpack.c.l.b16 %v2729
    %v2774 = vunpack.c.l.b16 %v2730
    %vm2775 = vcmask 1041409
    %v2776 = vsel %vm2775, %v2773, %v2771
    %v2777 = vsel %vm2775, %v2774, %v2772
    %v2778 = vpack.c.b16 %v2776, %v2776
    %v2779 = vpack.c.b16 %v2777, %v2777
    %v2811 = vunpack.c.l.b16 %v2731
    %v2812 = vunpack.c.h.b16 %v2731
    %v2813 = vunpack.c.l.b16 %v2732
    %v2814 = vunpack.c.h.b16 %v2732
    %v2815 = vunpack.c.l.b16 %v2733
    %v2816 = vunpack.c.h.b16 %v2733
    %v2817 = vunpack.c.l.b16 %v2734
    %v2818 = vunpack.c.h.b16 %v2734
    %v2819 = vunpack.c.l.b16 %v2735
    %v2820 = vunpack.c.h.b16 %v2735
    %v2821 = vunpack.c.l.b16 %v2736
    %v2822 = vunpack.c.h.b16 %v2736
    %v2823 = vunpack.c.l.b16 %v2737
    %v2824 = vunpack.c.h.b16 %v2737
    %v2825 = vunpack.c.l.b16 %v2738
    %v2826 = vunpack.c.h.b16 %v2738
    %v2827 = vunpack.c.l.b16 %v2739
    %v2828 = vunpack.c.h.b16 %v2739
    %v2829 = vunpack.c.l.b16 %v2740
    %v2830 = vunpack.c.h.b16 %v2740
    %v2831 = vunpack.c.l.b16 %v2741
    %v2832 = vunpack.c.h.b16 %v2741
    %v2833 = vunpack.c.l.b16 %v2742
    %v2834 = vunpack.c.h.b16 %v2742
    %v2835 = vunpack.c.l.b16 %v2743
    %v2836 = vunpack.c.h.b16 %v2743
    %v2837 = vunpack.c.l.b16 %v2744
    %v2838 = vunpack.c.h.b16 %v2744
    %v2839 = vunpack.c.l.b16 %v2745
    %v2840 = vunpack.c.h.b16 %v2745
    %v2841 = vunpack.c.l.b16 %v2746
    %v2842 = vunpack.c.h.b16 %v2746
    %v2843 = vunpack.c.l.b16 %v2747
    %v2844 = vunpack.c.h.b16 %v2747
    %v2845 = vunpack.c.l.b16 %v2748
    %v2846 = vunpack.c.h.b16 %v2748
    %v2847 = vunpack.c.l.b16 %v2749
    %v2848 = vunpack.c.h.b16 %v2749
    %v2849 = vunpack.c.l.b16 %v2750
    %v2850 = vunpack.c.h.b16 %v2750
    %v2851 = vunpack.c.l.b16 %v2751
    %v2852 = vunpack.c.h.b16 %v2751
    %v2853 = vunpack.c.l.b16 %v2752
    %v2854 = vunpack.c.h.b16 %v2752
    %v2855 = vunpack.c.l.b16 %v2753
    %v2856 = vunpack.c.h.b16 %v2753
    %v2857 = vunpack.c.l.b16 %v2754
    %v2858 = vunpack.c.h.b16 %v2754
    %v2859 = vunpack.c.l.b16 %v2755
    %v2860 = vunpack.c.h.b16 %v2755
    %v2861 = vunpack.c.l.b16 %v2756
    %v2862 = vunpack.c.h.b16 %v2756
    %v2863 = vunpack.c.l.b16 %v2757
    %v2864 = vunpack.c.h.b16 %v2757
    %v2865 = vunpack.c.l.b16 %v2758
    %v2866 = vunpack.c.h.b16 %v2758
    %v2867 = vunpack.c.l.b16 %v2759
    %v2868 = vunpack.c.h.b16 %v2759
    %v2869 = vunpack.c.l.b16 %v2760
    %v2870 = vunpack.c.h.b16 %v2760
    %v2871 = vpack.c.b16 %v2813, %v2811
    %v2872 = vpack.c.b16 %v2814, %v2812
    %v2873 = vpack.c.b16 %v2817, %v2815
    %v2874 = vpack.c.b16 %v2818, %v2816
    %v2875 = vpack.c.b16 %v2821, %v2819
    %v2876 = vpack.c.b16 %v2822, %v2820
    %v2877 = vpack.c.b16 %v2825, %v2823
    %v2878 = vpack.c.b16 %v2826, %v2824
    %v2879 = vpack.c.b16 %v2829, %v2827
    %v2880 = vpack.c.b16 %v2830, %v2828
    %v2881 = vpack.c.b16 %v2833, %v2831
    %v2882 = vpack.c.b16 %v2834, %v2832
    %v2883 = vpack.c.b16 %v2837, %v2835
    %v2884 = vpack.c.b16 %v2838, %v2836
    %v2885 = vpack.c.b16 %v2841, %v2839
    %v2886 = vpack.c.b16 %v2842, %v2840
    %v2887 = vpack.c.b16 %v2845, %v2843
    %v2888 = vpack.c.b16 %v2846, %v2844
    %v2889 = vpack.c.b16 %v2849, %v2847
    %v2890 = vpack.c.b16 %v2850, %v2848
    %v2891 = vpack.c.b16 %v2853, %v2851
    %v2892 = vpack.c.b16 %v2854, %v2852
    %v2893 = vpack.c.b16 %v2857, %v2855
    %v2894 = vpack.c.b16 %v2858, %v2856
    %v2895 = vpack.c.b16 %v2861, %v2859
    %v2896 = vpack.c.b16 %v2862, %v2860
    %v2897 = vpack.c.b16 %v2865, %v2863
    %v2898 = vpack.c.b16 %v2866, %v2864
    %v2899 = vpack.c.b16 %v2869, %v2867
    %v2900 = vpack.c.b16 %v2870, %v2868
    %v2932 = vsel %vm1093, %v2779, 0
    %2934 = vmatpush.bf16.msra.mxu0 %v2885
    %2935 = vmatpush.bf16.msra.mxu0 %v2883
    %2936 = vmatpush.bf16.msra.mxu0 %v2881
    %2937 = vmatpush.bf16.msra.mxu0 %v2879
    %2938 = vmatpush.bf16.msra.mxu0 %v2877
    %2939 = vmatpush.bf16.msra.mxu0 %v2875
    %2940 = vmatpush.bf16.msra.mxu0 %v2873
    %2941 = vmatpush.bf16.msra.mxu0 %v2871
    %2942 = vmatmul.bf16.gmra.mxu0 %v2778
    %v2943 = vpop.f32.mrf.mxu0
    %v2944 = vadd.f32 %v2763, %v2943
    %v2945 = vpop.f32.mrf.mxu0
    %2946 = vdwg.mxu0
    %2947 = vmatpush.bf16.msra.mxu0 0
    %2948 = vmatpush.bf16.msra.mxu0 %v2899
    %2949 = vmatpush.bf16.msra.mxu0 %v2897
    %2950 = vmatpush.bf16.msra.mxu0 %v2895
    %2951 = vmatpush.bf16.msra.mxu0 %v2893
    %2952 = vmatpush.bf16.msra.mxu0 %v2891
    %2953 = vmatpush.bf16.msra.mxu0 %v2889
    %2954 = vmatpush.bf16.msra.mxu0 %v2887
    %2955 = vmatmul.bf16.gmra.mxu0 %v2932
    %v2956 = vpop.f32.mrf.mxu0
    %v2957 = vadd.f32 %v2944, %v2956
    %v2958 = vpop.f32.mrf.mxu0
    %2959 = vdwg.mxu0
    %2960 = vmatpush.bf16.msra.mxu0 %v2886
    %2961 = vmatpush.bf16.msra.mxu0 %v2884
    %2962 = vmatpush.bf16.msra.mxu0 %v2882
    %2963 = vmatpush.bf16.msra.mxu0 %v2880
    %2964 = vmatpush.bf16.msra.mxu0 %v2878
    %2965 = vmatpush.bf16.msra.mxu0 %v2876
    %2966 = vmatpush.bf16.msra.mxu0 %v2874
    %2967 = vmatpush.bf16.msra.mxu0 %v2872
    %2968 = vmatmul.bf16.gmra.mxu0 %v2778
    %v2969 = vpop.f32.mrf.mxu0
    %v2970 = vadd.f32 %v2764, %v2969
    %v2971 = vpop.f32.mrf.mxu0
    %2972 = vdwg.mxu0
    %2973 = vmatpush.bf16.msra.mxu0 0
    %2974 = vmatpush.bf16.msra.mxu0 %v2900
    %2975 = vmatpush.bf16.msra.mxu0 %v2898
    %2976 = vmatpush.bf16.msra.mxu0 %v2896
    %2977 = vmatpush.bf16.msra.mxu0 %v2894
    %2978 = vmatpush.bf16.msra.mxu0 %v2892
    %2979 = vmatpush.bf16.msra.mxu0 %v2890
    %2980 = vmatpush.bf16.msra.mxu0 %v2888
    %2981 = vmatmul.bf16.gmra.mxu0 %v2932
    %v2982 = vpop.f32.mrf.mxu0
    %v2983 = vadd.f32 %v2970, %v2982
    %v2984 = vpop.f32.mrf.mxu0
    %2985 = vdwg.mxu0
    %v2986 = vmax.f32 %v2957, 0.0
    %v2987 = vmax.f32 %v2983, 0.0
    %v2988 = vpack.c.bf16 %v2986, %v2986
    %v2989 = vpack.c.bf16 %v2987, %v2987
    %v2990 = vld [vmem:[%s17] sm:$0xff]
    %v2991 = vld [vmem:[%s17 + $0x8] sm:$0xff]
    %v2992 = vld [vmem:[%s17 + $0x10] sm:$0xf]
    %v2993 = vld [vmem:[%s17 + $0x14] sm:$0xff]
    %v2994 = vld [vmem:[%s17 + $0x1c] sm:$0xff]
    %v2995 = vld [vmem:[%s17 + $0x24] sm:$0xf]
    %v2996 = vld [vmem:[%s17 + $0x28] sm:$0xff]
    %v2997 = vld [vmem:[%s17 + $0x30] sm:$0xff]
    %v2998 = vld [vmem:[%s17 + $0x38] sm:$0xf]
    %v2999 = vld [vmem:[%s17 + $0x3c] sm:$0xff]
    %v3000 = vld [vmem:[%s17 + $0x44] sm:$0xff]
    %v3001 = vld [vmem:[%s17 + $0x4c] sm:$0xf]
    %v3002 = vld [vmem:[%s17 + $0x50] sm:$0xff]
    %v3003 = vld [vmem:[%s17 + $0x58] sm:$0xff]
    %v3004 = vld [vmem:[%s17 + $0x60] sm:$0xf]
    %v3005 = vld [vmem:[%s17 + $0x64] sm:$0xff]
    %v3006 = vld [vmem:[%s17 + $0x6c] sm:$0xff]
    %v3007 = vld [vmem:[%s17 + $0x74] sm:$0xf]
    %v3008 = vld [vmem:[%s17 + $0x78] sm:$0xff]
    %v3009 = vld [vmem:[%s17 + $0x80] sm:$0xff]
    %v3010 = vld [vmem:[%s17 + $0x88] sm:$0xf]
    %v3011 = vld [vmem:[%s17 + $0x8c] sm:$0xff]
    %v3012 = vld [vmem:[%s17 + $0x94] sm:$0xff]
    %v3013 = vld [vmem:[%s17 + $0x9c] sm:$0xf]
    %v3014 = vld [vmem:[%s17 + $0xa0] sm:$0xff]
    %v3015 = vld [vmem:[%s17 + $0xa8] sm:$0xff]
    %v3016 = vld [vmem:[%s17 + $0xb0] sm:$0xf]
    %v3017 = vld [vmem:[%s17 + $0xb4] sm:$0xff]
    %v3018 = vld [vmem:[%s17 + $0xbc] sm:$0xff]
    %v3019 = vld [vmem:[%s17 + $0xc4] sm:$0xf]
    %v3020 = vld [vmem:[%s17 + $0xc8] sm:$0xff]
    %v3021 = vld [vmem:[%s17 + $0xd0] sm:$0xff]
    %v3022 = vld [vmem:[%s17 + $0xd8] sm:$0xf]
    %v3023 = vld [vmem:[%s17 + $0xdc] sm:$0xff]
    %v3024 = vld [vmem:[%s17 + $0xe4] sm:$0xff]
    %v3025 = vld [vmem:[%s17 + $0xec] sm:$0xf]
    %v3026 = vld [vmem:[%s17 + $0xf0] sm:$0xff]
    %v3027 = vld [vmem:[%s17 + $0xf8] sm:$0xff]
    %v3028 = vld [vmem:[%s17 + $0x100] sm:$0xf]
    %v3029 = vld [vmem:[%s17 + $0x104] sm:$0xff]
    %v3030 = vld [vmem:[%s17 + $0x10c] sm:$0xff]
    %v3031 = vld [vmem:[%s17 + $0x114] sm:$0xf]
    %v3032 = vld [vmem:[%s17 + $0x118] sm:$0xff]
    %v3033 = vld [vmem:[%s17 + $0x120] sm:$0xff]
    %v3034 = vld [vmem:[%s17 + $0x128] sm:$0xf]
    %v3035 = vld [vmem:[%s17 + $0x12c] sm:$0xff]
    %v3036 = vld [vmem:[%s17 + $0x134] sm:$0xff]
    %v3037 = vld [vmem:[%s17 + $0x13c] sm:$0xf]
    %v3038 = vld [vmem:[%s17 + $0x140] sm:$0xff]
    %v3039 = vld [vmem:[%s17 + $0x148] sm:$0xff]
    %v3040 = vld [vmem:[%s17 + $0x150] sm:$0xf]
    %v3041 = vld [vmem:[%s17 + $0x154] sm:$0xff]
    %v3042 = vld [vmem:[%s17 + $0x15c] sm:$0xff]
    %v3043 = vld [vmem:[%s17 + $0x164] sm:$0xf]
    %v3044 = vld [vmem:[%s17 + $0x168] sm:$0xff]
    %v3045 = vld [vmem:[%s17 + $0x170] sm:$0xff]
    %v3046 = vld [vmem:[%s17 + $0x178] sm:$0xf]
    %v3047 = vld [vmem:[%s17 + $0x17c] sm:$0xff]
    %v3048 = vld [vmem:[%s17 + $0x184] sm:$0xff]
    %v3049 = vld [vmem:[%s17 + $0x18c] sm:$0xf]
    %v3050 = vld [vmem:[%s17 + $0x190] sm:$0xff]
    %v3051 = vld [vmem:[%s17 + $0x198] sm:$0xff]
    %v3052 = vld [vmem:[%s17 + $0x1a0] sm:$0xf]
    %v3053 = vld [vmem:[%s17 + $0x1a4] sm:$0xff]
    %v3054 = vld [vmem:[%s17 + $0x1ac] sm:$0xff]
    %v3055 = vld [vmem:[%s17 + $0x1b4] sm:$0xf]
    %v3056 = vld [vmem:[%s17 + $0x1b8] sm:$0xff]
    %v3057 = vld [vmem:[%s17 + $0x1c0] sm:$0xff]
    %v3058 = vld [vmem:[%s17 + $0x1c8] sm:$0xf]
    %v3059 = vld [vmem:[%s17 + $0x1cc] sm:$0xff]
    %v3060 = vld [vmem:[%s17 + $0x1d4] sm:$0xff]
    %v3061 = vld [vmem:[%s17 + $0x1dc] sm:$0xf]
    %v3062 = vld [vmem:[%s17 + $0x1e0] sm:$0xff]
    %v3063 = vld [vmem:[%s17 + $0x1e8] sm:$0xff]
    %v3064 = vld [vmem:[%s17 + $0x1f0] sm:$0xf]
    %v3065 = vld [vmem:[%s17 + $0x1f4] sm:$0xff]
    %v3066 = vld [vmem:[%s17 + $0x1fc] sm:$0xff]
    %v3067 = vld [vmem:[%s17 + $0x204] sm:$0xf]
    %v3068 = vld [vmem:[%s17 + $0x208] sm:$0xff]
    %v3069 = vld [vmem:[%s17 + $0x210] sm:$0xff]
    %v3070 = vld [vmem:[%s17 + $0x218] sm:$0xf]
    %v3071 = vld [vmem:[%s17 + $0x21c] sm:$0xff]
    %v3072 = vld [vmem:[%s17 + $0x224] sm:$0xff]
    %v3073 = vld [vmem:[%s17 + $0x22c] sm:$0xf]
    %v3074 = vld [vmem:[%s17 + $0x230] sm:$0xff]
    %v3075 = vld [vmem:[%s17 + $0x238] sm:$0xff]
    %v3076 = vld [vmem:[%s17 + $0x240] sm:$0xf]
    %v3077 = vld [vmem:[%s17 + $0x244] sm:$0xff]
    %v3078 = vld [vmem:[%s17 + $0x24c] sm:$0xff]
    %v3079 = vld [vmem:[%s17 + $0x254] sm:$0xf]
    %v3080 = vld [vmem:[%s18] sm:$0x1f]
    %v3082 = vperm.slane %v3080, 0
    %v3083 = vperm.slane %v3080, 1
    %v3084 = vperm.slane %v3080, 2
    %v3085 = vperm.slane %v3080, 3
    %v3086 = vperm.slane %v3080, 4
    %v3182 = vunpack.c.l.b16 %v2990
    %v3183 = vunpack.c.h.b16 %v2990
    %v3184 = vunpack.c.l.b16 %v2991
    %v3185 = vunpack.c.h.b16 %v2991
    %v3186 = vunpack.c.l.b16 %v2992
    %v3187 = vunpack.c.l.b16 %v2993
    %v3188 = vunpack.c.h.b16 %v2993
    %v3189 = vunpack.c.l.b16 %v2994
    %v3190 = vunpack.c.h.b16 %v2994
    %v3191 = vunpack.c.l.b16 %v2995
    %v3192 = vunpack.c.l.b16 %v2996
    %v3193 = vunpack.c.h.b16 %v2996
    %v3194 = vunpack.c.l.b16 %v2997
    %v3195 = vunpack.c.h.b16 %v2997
    %v3196 = vunpack.c.l.b16 %v2998
    %v3197 = vunpack.c.l.b16 %v2999
    %v3198 = vunpack.c.h.b16 %v2999
    %v3199 = vunpack.c.l.b16 %v3000
    %v3200 = vunpack.c.h.b16 %v3000
    %v3201 = vunpack.c.l.b16 %v3001
    %v3202 = vunpack.c.l.b16 %v3002
    %v3203 = vunpack.c.h.b16 %v3002
    %v3204 = vunpack.c.l.b16 %v3003
    %v3205 = vunpack.c.h.b16 %v3003
    %v3206 = vunpack.c.l.b16 %v3004
    %v3207 = vunpack.c.l.b16 %v3005
    %v3208 = vunpack.c.h.b16 %v3005
    %v3209 = vunpack.c.l.b16 %v3006
    %v3210 = vunpack.c.h.b16 %v3006
    %v3211 = vunpack.c.l.b16 %v3007
    %v3212 = vunpack.c.l.b16 %v3008
    %v3213 = vunpack.c.h.b16 %v3008
    %v3214 = vunpack.c.l.b16 %v3009
    %v3215 = vunpack.c.h.b16 %v3009
    %v3216 = vunpack.c.l.b16 %v3010
    %v3217 = vunpack.c.l.b16 %v3011
    %v3218 = vunpack.c.h.b16 %v3011
    %v3219 = vunpack.c.l.b16 %v3012
    %v3220 = vunpack.c.h.b16 %v3012
    %v3221 = vunpack.c.l.b16 %v3013
    %v3222 = vunpack.c.l.b16 %v3014
    %v3223 = vunpack.c.h.b16 %v3014
    %v3224 = vunpack.c.l.b16 %v3015
    %v3225 = vunpack.c.h.b16 %v3015
    %v3226 = vunpack.c.l.b16 %v3016
    %v3227 = vunpack.c.l.b16 %v3017
    %v3228 = vunpack.c.h.b16 %v3017
    %v3229 = vunpack.c.l.b16 %v3018
    %v3230 = vunpack.c.h.b16 %v3018
    %v3231 = vunpack.c.l.b16 %v3019
    %v3232 = vunpack.c.l.b16 %v3020
    %v3233 = vunpack.c.h.b16 %v3020
    %v3234 = vunpack.c.l.b16 %v3021
    %v3235 = vunpack.c.h.b16 %v3021
    %v3236 = vunpack.c.l.b16 %v3022
    %v3237 = vunpack.c.l.b16 %v3023
    %v3238 = vunpack.c.h.b16 %v3023
    %v3239 = vunpack.c.l.b16 %v3024
    %v3240 = vunpack.c.h.b16 %v3024
    %v3241 = vunpack.c.l.b16 %v3025
    %v3242 = vunpack.c.l.b16 %v3026
    %v3243 = vunpack.c.h.b16 %v3026
    %v3244 = vunpack.c.l.b16 %v3027
    %v3245 = vunpack.c.h.b16 %v3027
    %v3246 = vunpack.c.l.b16 %v3028
    %v3247 = vunpack.c.l.b16 %v3029
    %v3248 = vunpack.c.h.b16 %v3029
    %v3249 = vunpack.c.l.b16 %v3030
    %v3250 = vunpack.c.h.b16 %v3030
    %v3251 = vunpack.c.l.b16 %v3031
    %v3252 = vunpack.c.l.b16 %v3032
    %v3253 = vunpack.c.h.b16 %v3032
    %v3254 = vunpack.c.l.b16 %v3033
    %v3255 = vunpack.c.h.b16 %v3033
    %v3256 = vunpack.c.l.b16 %v3034
    %v3257 = vunpack.c.l.b16 %v3035
    %v3258 = vunpack.c.h.b16 %v3035
    %v3259 = vunpack.c.l.b16 %v3036
    %v3260 = vunpack.c.h.b16 %v3036
    %v3261 = vunpack.c.l.b16 %v3037
    %v3262 = vunpack.c.l.b16 %v3038
    %v3263 = vunpack.c.h.b16 %v3038
    %v3264 = vunpack.c.l.b16 %v3039
    %v3265 = vunpack.c.h.b16 %v3039
    %v3266 = vunpack.c.l.b16 %v3040
    %v3267 = vunpack.c.l.b16 %v3041
    %v3268 = vunpack.c.h.b16 %v3041
    %v3269 = vunpack.c.l.b16 %v3042
    %v3270 = vunpack.c.h.b16 %v3042
    %v3271 = vunpack.c.l.b16 %v3043
    %v3272 = vunpack.c.l.b16 %v3044
    %v3273 = vunpack.c.h.b16 %v3044
    %v3274 = vunpack.c.l.b16 %v3045
    %v3275 = vunpack.c.h.b16 %v3045
    %v3276 = vunpack.c.l.b16 %v3046
    %v3277 = vunpack.c.l.b16 %v3047
    %v3278 = vunpack.c.h.b16 %v3047
    %v3279 = vunpack.c.l.b16 %v3048
    %v3280 = vunpack.c.h.b16 %v3048
    %v3281 = vunpack.c.l.b16 %v3049
    %v3282 = vunpack.c.l.b16 %v3050
    %v3283 = vunpack.c.h.b16 %v3050
    %v3284 = vunpack.c.l.b16 %v3051
    %v3285 = vunpack.c.h.b16 %v3051
    %v3286 = vunpack.c.l.b16 %v3052
    %v3287 = vunpack.c.l.b16 %v3053
    %v3288 = vunpack.c.h.b16 %v3053
    %v3289 = vunpack.c.l.b16 %v3054
    %v3290 = vunpack.c.h.b16 %v3054
    %v3291 = vunpack.c.l.b16 %v3055
    %v3292 = vunpack.c.l.b16 %v3056
    %v3293 = vunpack.c.h.b16 %v3056
    %v3294 = vunpack.c.l.b16 %v3057
    %v3295 = vunpack.c.h.b16 %v3057
    %v3296 = vunpack.c.l.b16 %v3058
    %v3297 = vunpack.c.l.b16 %v3059
    %v3298 = vunpack.c.h.b16 %v3059
    %v3299 = vunpack.c.l.b16 %v3060
    %v3300 = vunpack.c.h.b16 %v3060
    %v3301 = vunpack.c.l.b16 %v3061
    %v3302 = vunpack.c.l.b16 %v3062
    %v3303 = vunpack.c.h.b16 %v3062
    %v3304 = vunpack.c.l.b16 %v3063
    %v3305 = vunpack.c.h.b16 %v3063
    %v3306 = vunpack.c.l.b16 %v3064
    %v3307 = vunpack.c.l.b16 %v3065
    %v3308 = vunpack.c.h.b16 %v3065
    %v3309 = vunpack.c.l.b16 %v3066
    %v3310 = vunpack.c.h.b16 %v3066
    %v3311 = vunpack.c.l.b16 %v3067
    %v3312 = vunpack.c.l.b16 %v3068
    %v3313 = vunpack.c.h.b16 %v3068
    %v3314 = vunpack.c.l.b16 %v3069
    %v3315 = vunpack.c.h.b16 %v3069
    %v3316 = vunpack.c.l.b16 %v3070
    %v3317 = vunpack.c.l.b16 %v3071
    %v3318 = vunpack.c.h.b16 %v3071
    %v3319 = vunpack.c.l.b16 %v3072
    %v3320 = vunpack.c.h.b16 %v3072
    %v3321 = vunpack.c.l.b16 %v3073
    %v3322 = vunpack.c.l.b16 %v3074
    %v3323 = vunpack.c.h.b16 %v3074
    %v3324 = vunpack.c.l.b16 %v3075
    %v3325 = vunpack.c.h.b16 %v3075
    %v3326 = vunpack.c.l.b16 %v3076
    %v3327 = vunpack.c.l.b16 %v3077
    %v3328 = vunpack.c.h.b16 %v3077
    %v3329 = vunpack.c.l.b16 %v3078
    %v3330 = vunpack.c.h.b16 %v3078
    %v3331 = vunpack.c.l.b16 %v3079
    %v3332 = vpack.c.b16 %v3187, %v3182
    %v3333 = vpack.c.b16 %v3188, %v3183
    %v3334 = vpack.c.b16 %v3189, %v3184
    %v3335 = vpack.c.b16 %v3190, %v3185
    %v3336 = vpack.c.b16 %v3191, %v3186
    %v3337 = vpack.c.b16 %v3197, %v3192
    %v3338 = vpack.c.b16 %v3198, %v3193
    %v3339 = vpack.c.b16 %v3199, %v3194
    %v3340 = vpack.c.b16 %v3200, %v3195
    %v3341 = vpack.c.b16 %v3201, %v3196
    %v3342 = vpack.c.b16 %v3207, %v3202
    %v3343 = vpack.c.b16 %v3208, %v3203
    %v3344 = vpack.c.b16 %v3209, %v3204
    %v3345 = vpack.c.b16 %v3210, %v3205
    %v3346 = vpack.c.b16 %v3211, %v3206
    %v3347 = vpack.c.b16 %v3217, %v3212
    %v3348 = vpack.c.b16 %v3218, %v3213
    %v3349 = vpack.c.b16 %v3219, %v3214
    %v3350 = vpack.c.b16 %v3220, %v3215
    %v3351 = vpack.c.b16 %v3221, %v3216
    %v3352 = vpack.c.b16 %v3227, %v3222
    %v3353 = vpack.c.b16 %v3228, %v3223
    %v3354 = vpack.c.b16 %v3229, %v3224
    %v3355 = vpack.c.b16 %v3230, %v3225
    %v3356 = vpack.c.b16 %v3231, %v3226
    %v3357 = vpack.c.b16 %v3237, %v3232
    %v3358 = vpack.c.b16 %v3238, %v3233
    %v3359 = vpack.c.b16 %v3239, %v3234
    %v3360 = vpack.c.b16 %v3240, %v3235
    %v3361 = vpack.c.b16 %v3241, %v3236
    %v3362 = vpack.c.b16 %v3247, %v3242
    %v3363 = vpack.c.b16 %v3248, %v3243
    %v3364 = vpack.c.b16 %v3249, %v3244
    %v3365 = vpack.c.b16 %v3250, %v3245
    %v3366 = vpack.c.b16 %v3251, %v3246
    %v3367 = vpack.c.b16 %v3257, %v3252
    %v3368 = vpack.c.b16 %v3258, %v3253
    %v3369 = vpack.c.b16 %v3259, %v3254
    %v3370 = vpack.c.b16 %v3260, %v3255
    %v3371 = vpack.c.b16 %v3261, %v3256
    %v3372 = vpack.c.b16 %v3267, %v3262
    %v3373 = vpack.c.b16 %v3268, %v3263
    %v3374 = vpack.c.b16 %v3269, %v3264
    %v3375 = vpack.c.b16 %v3270, %v3265
    %v3376 = vpack.c.b16 %v3271, %v3266
    %v3377 = vpack.c.b16 %v3277, %v3272
    %v3378 = vpack.c.b16 %v3278, %v3273
    %v3379 = vpack.c.b16 %v3279, %v3274
    %v3380 = vpack.c.b16 %v3280, %v3275
    %v3381 = vpack.c.b16 %v3281, %v3276
    %v3382 = vpack.c.b16 %v3287, %v3282
    %v3383 = vpack.c.b16 %v3288, %v3283
    %v3384 = vpack.c.b16 %v3289, %v3284
    %v3385 = vpack.c.b16 %v3290, %v3285
    %v3386 = vpack.c.b16 %v3291, %v3286
    %v3387 = vpack.c.b16 %v3297, %v3292
    %v3388 = vpack.c.b16 %v3298, %v3293
    %v3389 = vpack.c.b16 %v3299, %v3294
    %v3390 = vpack.c.b16 %v3300, %v3295
    %v3391 = vpack.c.b16 %v3301, %v3296
    %v3392 = vpack.c.b16 %v3307, %v3302
    %v3393 = vpack.c.b16 %v3308, %v3303
    %v3394 = vpack.c.b16 %v3309, %v3304
    %v3395 = vpack.c.b16 %v3310, %v3305
    %v3396 = vpack.c.b16 %v3311, %v3306
    %v3397 = vpack.c.b16 %v3317, %v3312
    %v3398 = vpack.c.b16 %v3318, %v3313
    %v3399 = vpack.c.b16 %v3319, %v3314
    %v3400 = vpack.c.b16 %v3320, %v3315
    %v3401 = vpack.c.b16 %v3321, %v3316
    %v3402 = vpack.c.b16 %v3327, %v3322
    %v3403 = vpack.c.b16 %v3328, %v3323
    %v3404 = vpack.c.b16 %v3329, %v3324
    %v3405 = vpack.c.b16 %v3330, %v3325
    %v3406 = vpack.c.b16 %v3331, %v3326
    %v3483 = vsel %vm1093, %v2989, 0
    %3485 = vmatpush.bf16.msra.mxu0 %v3367
    %3486 = vmatpush.bf16.msra.mxu0 %v3362
    %3487 = vmatpush.bf16.msra.mxu0 %v3357
    %3488 = vmatpush.bf16.msra.mxu0 %v3352
    %3489 = vmatpush.bf16.msra.mxu0 %v3347
    %3490 = vmatpush.bf16.msra.mxu0 %v3342
    %3491 = vmatpush.bf16.msra.mxu0 %v3337
    %3492 = vmatpush.bf16.msra.mxu0 %v3332
    %3493 = vmatmul.bf16.gmra.mxu0 %v2988
    %v3494 = vpop.f32.mrf.mxu0
    %v3495 = vadd.f32 %v3082, %v3494
    %v3496 = vpop.f32.mrf.mxu0
    %3497 = vdwg.mxu0
    %3498 = vmatpush.bf16.msra.mxu0 0
    %3499 = vmatpush.bf16.msra.mxu0 %v3402
    %3500 = vmatpush.bf16.msra.mxu0 %v3397
    %3501 = vmatpush.bf16.msra.mxu0 %v3392
    %3502 = vmatpush.bf16.msra.mxu0 %v3387
    %3503 = vmatpush.bf16.msra.mxu0 %v3382
    %3504 = vmatpush.bf16.msra.mxu0 %v3377
    %3505 = vmatpush.bf16.msra.mxu0 %v3372
    %3506 = vmatmul.bf16.gmra.mxu0 %v3483
    %v3507 = vpop.f32.mrf.mxu0
    %v3508 = vadd.f32 %v3495, %v3507
    %v3509 = vpop.f32.mrf.mxu0
    %3510 = vdwg.mxu0
    %3511 = vmatpush.bf16.msra.mxu0 %v3368
    %3512 = vmatpush.bf16.msra.mxu0 %v3363
    %3513 = vmatpush.bf16.msra.mxu0 %v3358
    %3514 = vmatpush.bf16.msra.mxu0 %v3353
    %3515 = vmatpush.bf16.msra.mxu0 %v3348
    %3516 = vmatpush.bf16.msra.mxu0 %v3343
    %3517 = vmatpush.bf16.msra.mxu0 %v3338
    %3518 = vmatpush.bf16.msra.mxu0 %v3333
    %3519 = vmatmul.bf16.gmra.mxu0 %v2988
    %v3520 = vpop.f32.mrf.mxu0
    %v3521 = vadd.f32 %v3083, %v3520
    %v3522 = vpop.f32.mrf.mxu0
    %3523 = vdwg.mxu0
    %3524 = vmatpush.bf16.msra.mxu0 0
    %3525 = vmatpush.bf16.msra.mxu0 %v3403
    %3526 = vmatpush.bf16.msra.mxu0 %v3398
    %3527 = vmatpush.bf16.msra.mxu0 %v3393
    %3528 = vmatpush.bf16.msra.mxu0 %v3388
    %3529 = vmatpush.bf16.msra.mxu0 %v3383
    %3530 = vmatpush.bf16.msra.mxu0 %v3378
    %3531 = vmatpush.bf16.msra.mxu0 %v3373
    %3532 = vmatmul.bf16.gmra.mxu0 %v3483
    %v3533 = vpop.f32.mrf.mxu0
    %v3534 = vadd.f32 %v3521, %v3533
    %v3535 = vpop.f32.mrf.mxu0
    %3536 = vdwg.mxu0
    %3537 = vmatpush.bf16.msra.mxu0 %v3369
    %3538 = vmatpush.bf16.msra.mxu0 %v3364
    %3539 = vmatpush.bf16.msra.mxu0 %v3359
    %3540 = vmatpush.bf16.msra.mxu0 %v3354
    %3541 = vmatpush.bf16.msra.mxu0 %v3349
    %3542 = vmatpush.bf16.msra.mxu0 %v3344
    %3543 = vmatpush.bf16.msra.mxu0 %v3339
    %3544 = vmatpush.bf16.msra.mxu0 %v3334
    %3545 = vmatmul.bf16.gmra.mxu0 %v2988
    %v3546 = vpop.f32.mrf.mxu0
    %v3547 = vadd.f32 %v3084, %v3546
    %v3548 = vpop.f32.mrf.mxu0
    %3549 = vdwg.mxu0
    %3550 = vmatpush.bf16.msra.mxu0 0
    %3551 = vmatpush.bf16.msra.mxu0 %v3404
    %3552 = vmatpush.bf16.msra.mxu0 %v3399
    %3553 = vmatpush.bf16.msra.mxu0 %v3394
    %3554 = vmatpush.bf16.msra.mxu0 %v3389
    %3555 = vmatpush.bf16.msra.mxu0 %v3384
    %3556 = vmatpush.bf16.msra.mxu0 %v3379
    %3557 = vmatpush.bf16.msra.mxu0 %v3374
    %3558 = vmatmul.bf16.gmra.mxu0 %v3483
    %v3559 = vpop.f32.mrf.mxu0
    %v3560 = vadd.f32 %v3547, %v3559
    %v3561 = vpop.f32.mrf.mxu0
    %3562 = vdwg.mxu0
    %3563 = vmatpush.bf16.msra.mxu0 %v3370
    %3564 = vmatpush.bf16.msra.mxu0 %v3365
    %3565 = vmatpush.bf16.msra.mxu0 %v3360
    %3566 = vmatpush.bf16.msra.mxu0 %v3355
    %3567 = vmatpush.bf16.msra.mxu0 %v3350
    %3568 = vmatpush.bf16.msra.mxu0 %v3345
    %3569 = vmatpush.bf16.msra.mxu0 %v3340
    %3570 = vmatpush.bf16.msra.mxu0 %v3335
    %3571 = vmatmul.bf16.gmra.mxu0 %v2988
    %v3572 = vpop.f32.mrf.mxu0
    %v3573 = vadd.f32 %v3085, %v3572
    %v3574 = vpop.f32.mrf.mxu0
    %3575 = vdwg.mxu0
    %3576 = vmatpush.bf16.msra.mxu0 0
    %3577 = vmatpush.bf16.msra.mxu0 %v3405
    %3578 = vmatpush.bf16.msra.mxu0 %v3400
    %3579 = vmatpush.bf16.msra.mxu0 %v3395
    %3580 = vmatpush.bf16.msra.mxu0 %v3390
    %3581 = vmatpush.bf16.msra.mxu0 %v3385
    %3582 = vmatpush.bf16.msra.mxu0 %v3380
    %3583 = vmatpush.bf16.msra.mxu0 %v3375
    %3584 = vmatmul.bf16.gmra.mxu0 %v3483
    %v3585 = vpop.f32.mrf.mxu0
    %v3586 = vadd.f32 %v3573, %v3585
    %v3587 = vpop.f32.mrf.mxu0
    %3588 = vdwg.mxu0
    %3589 = vmatpush.bf16.msra.mxu0 %v3371
    %3590 = vmatpush.bf16.msra.mxu0 %v3366
    %3591 = vmatpush.bf16.msra.mxu0 %v3361
    %3592 = vmatpush.bf16.msra.mxu0 %v3356
    %3593 = vmatpush.bf16.msra.mxu0 %v3351
    %3594 = vmatpush.bf16.msra.mxu0 %v3346
    %3595 = vmatpush.bf16.msra.mxu0 %v3341
    %3596 = vmatpush.bf16.msra.mxu0 %v3336
    %3597 = vmatmul.bf16.gmra.mxu0 %v2988
    %v3598 = vpop.f32.mrf.mxu0
    %v3599 = vadd.f32 %v3086, %v3598
    %v3600 = vpop.f32.mrf.mxu0
    %3601 = vdwg.mxu0
    %3602 = vmatpush.bf16.msra.mxu0 0
    %3603 = vmatpush.bf16.msra.mxu0 %v3406
    %3604 = vmatpush.bf16.msra.mxu0 %v3401
    %3605 = vmatpush.bf16.msra.mxu0 %v3396
    %3606 = vmatpush.bf16.msra.mxu0 %v3391
    %3607 = vmatpush.bf16.msra.mxu0 %v3386
    %3608 = vmatpush.bf16.msra.mxu0 %v3381
    %3609 = vmatpush.bf16.msra.mxu0 %v3376
    %3610 = vmatmul.bf16.gmra.mxu0 %v3483
    %v3611 = vpop.f32.mrf.mxu0
    %v3612 = vadd.f32 %v3599, %v3611
    %v3613 = vpop.f32.mrf.mxu0
    %3614 = vdwg.mxu0
    %v3619 = vrot.slane %v3534, 6
    %v3620 = vrot.slane %v3560, 4
    %v3621 = vrot.slane %v3586, 2
    %vm3622 = vcmask 1041408
    %v3623 = vsel %vm3622, %v3508, %v3619
    %vm3624 = vcmask 1045508
    %v3625 = vsel %vm3624, %v3620, %v3621
    %v3626 = vsel %vm1411, %v3623, %v3625
    %3628 = vst [vmem:[#allocation7] sm:$0xff] %v3626
    %3629 = vst [vmem:[#allocation7 + $0x8] sm:$0x3] %v3612
    // Predicated region
    $region86: #{classifier_forward.1} parent=1 // pred_check
      _
    $region87: #{classifier_forward.1} parent=1 // pred_check_branch
      %3631 = sbr.rel (0) target = $region89
    $region88: #{classifier_forward.1} parent=1 // pred_region
      %3633 = vsyncadd [#allocation4], 0
      %s3635 = sshll.u32 [#allocation7], 4
      %s3636 = int_to_ptr.vmem [resolvable:$true] %s3635
      %s3637 = sshll.u32 %s19, 4
      %s3638 = int_to_ptr.hbm [resolvable:$true] %s3637
      %3640 = dma.vmem_to_hbm [thread:$0]  %s3636, 160, %s3638, [#allocation4]
    $region89: #{classifier_forward.1} parent=1 // pred_fallthru
      _
    // Predicated region
    $region90: #{classifier_forward.1} parent=1 // pred_check
      _
    $region91: #{classifier_forward.1} parent=1 // pred_check_branch
      %3642 = sbr.rel (0) target = $region93
    $region92: #{classifier_forward.1} parent=1 // pred_region
      %3644 = dma.done [#allocation4], 160
    $region93: #{classifier_forward.1} parent=1 // pred_fallthru
      _
    %3645 = vsyncpa [#allocation3], 1
    %3646 = vsyncpa [#allocation6], 1
    %3647 = vsyncpa [#allocation4], 1

</llo_original>
